<compile_context>
chip_gen: v5e
topology: v5e:2x2
jax: 0.10.0
libtpu: 0.0.40
codegen_flags: <defaults>
</compile_context>

<pallas_src>
import functools

import jax
import jax.numpy as jnp
import numpy as np
from jax import lax
from jax.experimental import pallas as pl
from jax.experimental.pallas import tpu as pltpu

EMBD = 32          # embd (small test size; PyTorch default is 64)
D_POINTS = 3
OUT_CH = 8
N_POINTS = 128     # number of points
BATCH = 2
BN_EPS = 1e-5
WITH_OA = False    # module default


# ----------------------------- Pallas kernel --------------------------------
def _pt_kernel(x_ref,
               w1_ref, wpre_ref, wqv_ref, wt_ref, w5_ref, w6_ref, wl_ref,
               bpre_ref, bsa_ref, btail_ref, bl_ref,
               out_ref,
               *, with_oa, embd):
    f32 = jnp.float32
    bf16 = jnp.bfloat16
    e = embd
    e4 = embd // 4

    def mm(w, a):
        # Weights are already bf16 (host-side cast); only the activation is cast.
        return jnp.dot(w, a.astype(bf16), preferred_element_type=f32)

    def mm_tn(a, b):
        # result[i, j] = sum_c a[c, i] * b[c, j]  (contract dim 0 of both, no .T).
        return lax.dot_general(a.astype(bf16), b.astype(bf16),
                               dimension_numbers=(((0,), (0,)), ((), ())),
                               preferred_element_type=f32)

    x = x_ref[...]                                              # (3, N)

    # conv1+bn1+relu ; conv2+bn2+relu ; StackedAttention embedding convs 1/2
    h = jnp.maximum(mm(w1_ref[...], x) + bpre_ref[0], 0.0)
    h = jnp.maximum(mm(wpre_ref[0], h) + bpre_ref[1], 0.0)
    h = jnp.maximum(mm(wpre_ref[1], h) + bpre_ref[2], 0.0)
    h = jnp.maximum(mm(wpre_ref[2], h) + bpre_ref[3], 0.0)

    n = h.shape[-1]
    h5_acc = jnp.zeros((2 * e, n), dtype=f32)   # conv5 dense-half accumulator
    g_acc = jnp.zeros((2 * e, 1), dtype=f32)    # conv5 rank-1 (global-max) accumulator

    for i in range(4):                                          # 4 SA layers
        qv = mm(wqv_ref[i], h)                                  # (E/4 + E, N): fused q/v proj
        q = qv[:e4]                                             # (E/4, N); k weight tied to q
        v = qv[e4:] + bsa_ref[i]                                # (E, N)

        # Tied q/k -> energy (and p_exp) is symmetric, so the per-row softmax sums can
        # be obtained with a sublane reduction over columns.
        energy = mm_tn(q, q)                                    # (N, N), f32 accumulation
        # No max-subtraction: activations here are bounded (post-ReLU folded-BN stack),
        # |energy| << exp overflow; softmax result is mathematically identical.
        p = jnp.exp(energy)                                     # (N, N) f32
        p_b = p.astype(bf16)                                    # single cast for the MXU
        rowsum = jnp.sum(p, axis=0, keepdims=True)              # (1, N) == row sums (symmetry)
        r = pl.reciprocal(rowsum, approx=True)                  # (1, N)
        # Fold the softmax row-norm into v (cheap (E,N) multiply) and get the PCT column
        # renorm denominator from the same MXU pass via an appended recip row.
        v_aug = jnp.concatenate([v * r, r], axis=0).astype(bf16)  # (E+1, N)
        res = jnp.dot(v_aug, p_b, preferred_element_type=f32)     # (E+1, N)
        x_r = res[:e] * pl.reciprocal(res[e:e + 1] + 1e-9, approx=True)  # (E, N)

        delta = (h - x_r) if with_oa else x_r
        h = h + jnp.maximum(mm(wt_ref[i], delta) + bsa_ref[4 + i], 0.0)  # trans_conv+bn+relu, residual

        # conv5 accumulated incrementally: dense per-layer slice + rank-1 gmax slice.
        h5_acc = h5_acc + mm(w5_ref[i], h)
        gmax_i = jnp.max(h, axis=-1, keepdims=True)             # (E, 1) global max over points
        g_acc = g_acc + mm(w5_ref[4 + i], gmax_i)

    # conv5+bn5+relu (dp5 is eval-mode identity), conv6+bn6+relu, logits.
    h5 = jnp.maximum(h5_acc + g_acc + btail_ref[0], 0.0)        # (2E, N)
    h6 = jnp.maximum(mm(w6_ref[...], h5) + btail_ref[1], 0.0)   # (2E, N)
    out_ref[...] = mm(wl_ref[...], h6) + bl_ref[...]            # (8, N) lane-dense store


def _full_spec(shape):
    ndim = len(shape)

    def imap(b):
        return (0,) * ndim

    return pl.BlockSpec(shape, imap)


def _cost_estimate(batch, n, e):
    per_sa = (2 * (e + e // 4) * e * n        # fused q/v projection
              + 2 * (e // 4) * n * n          # energy
              + 2 * (e + 1) * n * n           # attention-weighted v (+ renorm row)
              + 2 * e * e * n                 # trans_conv
              + 2 * (2 * e) * e * n           # conv5 dense slice
              + 2 * (2 * e) * e)              # conv5 gmax slice
    flops = batch * (2 * e * 3 * n            # conv1
                     + 3 * 2 * e * e * n      # conv2 + embedding convs
                     + 4 * per_sa
                     + 2 * (2 * e) * (2 * e) * n   # conv6
                     + 2 * OUT_CH * (2 * e) * n)   # logits
    transcendentals = batch * 4 * (n * n + 3 * n)  # exp + approx reciprocals per SA layer
    wbytes = (e * 3 * 2 + 3 * e * e * 2 + 4 * (e + e // 4) * e * 2 + 4 * e * e * 2
              + 8 * 2 * e * e * 2 + (2 * e) * (2 * e) * 2 + OUT_CH * 2 * e * 2
              + (4 * e + 8 * e + 2 * 2 * e + OUT_CH) * 4)
    bytes_accessed = batch * (3 * n * 4 + OUT_CH * n * 4 + wbytes)
    return pl.CostEstimate(flops=int(flops), transcendentals=int(transcendentals),
                           bytes_accessed=int(bytes_accessed))


def naive_point_transformer(x, kparams, *, with_oa=WITH_OA, embd=EMBD):
    """x: (B, N, 3) -> (B, N, 8).  Kernel internally runs in (C, N) layout."""
    B, N, _ = x.shape
    x_cn = jnp.transpose(x, (0, 2, 1))                          # (B, 3, N)

    kern = functools.partial(_pt_kernel, with_oa=with_oa, embd=embd)
    order = ["w1", "w_pre", "wqv", "wt", "w5", "w6", "wl",
             "b_pre", "b_sa", "b_tail", "bl"]
    weights = [kparams[k] for k in order]

    in_specs = [pl.BlockSpec((None, D_POINTS, N), lambda b: (b, 0, 0))]
    in_specs += [_full_spec(tuple(w.shape)) for w in weights]
    out_spec = pl.BlockSpec((None, OUT_CH, N), lambda b: (b, 0, 0))

    out_cn = pl.pallas_call(
        kern,
        out_shape=jax.ShapeDtypeStruct((B, OUT_CH, N), jnp.float32),
        grid_spec=pltpu.PrefetchScalarGridSpec(
            num_scalar_prefetch=0,
            grid=(B,),
            in_specs=in_specs,
            out_specs=out_spec,
        ),
        compiler_params=pltpu.CompilerParams(dimension_semantics=("parallel",)),
        cost_estimate=_cost_estimate(B, N, embd),
    )(x_cn, *weights)
    return jnp.transpose(out_cn, (0, 2, 1))                     # (B, N, 8)


# ----------------------------- parameter setup ------------------------------
def _fold_bn(w, b, gamma, beta, mean, var, eps=BN_EPS):
    """Fold inference-mode BatchNorm1d into preceding 1x1 conv (w: (Cin, Cout))."""
    scale = gamma / jnp.sqrt(var + eps)
    w_f = w * scale[None, :]
    b0 = b if b is not None else jnp.zeros_like(beta)
    b_f = (b0 - mean) * scale + beta
    return w_f.astype(jnp.float32), b_f.reshape(1, -1).astype(jnp.float32)


def init_params(key, embd=EMBD):
    keys = iter(jax.random.split(key, 128))

    def w(shape, s=0.1):
        return (s * jax.random.normal(next(keys), shape)).astype(jnp.float32)

    def bn(c):
        g = jax.random.uniform(next(keys), (c,), minval=0.8, maxval=1.2).astype(jnp.float32)
        beta = w((c,))
        mean = w((c,))
        var = jax.random.uniform(next(keys), (c,), minval=0.5, maxval=1.5).astype(jnp.float32)
        return g, beta, mean, var

    p = {}
    p["w1"], p["b1"] = _fold_bn(w((D_POINTS, embd)), None, *bn(embd))      # conv1 (bias=False) + bn1
    p["w2"], p["b2"] = _fold_bn(w((embd, embd)), None, *bn(embd))          # conv2 (bias=False) + bn2
    p["wa1"], p["ba1"] = _fold_bn(w((embd, embd)), None, *bn(embd))        # StackedAttention conv1+bn1
    p["wa2"], p["ba2"] = _fold_bn(w((embd, embd)), None, *bn(embd))        # StackedAttention conv2+bn2

    wqk, wv, bv, wt, bt = [], [], [], [], []
    for _ in range(4):                                                     # 4 SA layers
        wqk.append(w((embd, embd // 4)))                                   # q_conv == k_conv (tied)
        wv.append(w((embd, embd)))                                         # v_conv (bias=True)
        bv.append(w((embd,)).reshape(1, -1))
        wtf, btf = _fold_bn(w((embd, embd)), w((embd,)), *bn(embd))        # trans_conv + after_norm
        wt.append(wtf)
        bt.append(btf)
    p["wqk"] = jnp.stack(wqk)
    p["wv"] = jnp.stack(wv)
    p["bv"] = jnp.stack(bv)
    p["wt"] = jnp.stack(wt)
    p["bt"] = jnp.stack(bt)

    p["w5"], p["b5"] = _fold_bn(w((embd * 8, embd * 2)), w((embd * 2,)), *bn(embd * 2))
    p["w6"], p["b6"] = _fold_bn(w((embd * 2, embd * 2)), w((embd * 2,)), *bn(embd * 2))
    p["wl"] = w((embd * 2, OUT_CH))
    p["bl"] = w((OUT_CH,)).reshape(1, -1)
    return p


def prepare_kernel_params(p, embd=EMBD):
    """Re-layout (Cin, Cout) reference params into (Cout, Cin) kernel params, pre-cast
    weights to bf16, fuse q/v projections, split conv5 into per-layer dense + rank-1
    (gmax) slices, and pack everything into a few stacked arrays (fewer DMAs)."""
    bf16 = jnp.bfloat16

    def cw(wm):                       # (Cin, Cout) -> (Cout, Cin), bf16
        return jnp.transpose(wm).astype(bf16)

    def cb(bm):                       # (1, C) -> (C, 1), f32 (biases add post-accumulation)
        return jnp.reshape(bm, (-1, 1)).astype(jnp.float32)

    kp = {}
    kp["w1"] = cw(p["w1"])                                                 # (E, 3)
    kp["w_pre"] = jnp.stack([cw(p["w2"]), cw(p["wa1"]), cw(p["wa2"])])     # (3, E, E)
    kp["b_pre"] = jnp.stack([cb(p["b1"]), cb(p["b2"]),
                             cb(p["ba1"]), cb(p["ba2"])])                  # (4, E, 1)

    wqv = []
    for i in range(4):
        fused = jnp.concatenate([p["wqk"][i], p["wv"][i]], axis=1)         # (E, E/4 + E)
        wqv.append(jnp.transpose(fused))                                   # (E/4 + E, E)
    kp["wqv"] = jnp.stack(wqv).astype(bf16)                                # (4, E/4+E, E)
    kp["wt"] = jnp.transpose(p["wt"], (0, 2, 1)).astype(bf16)              # (4, E, E)
    kp["b_sa"] = jnp.concatenate(
        [jnp.transpose(p["bv"], (0, 2, 1)),
         jnp.transpose(p["bt"], (0, 2, 1))], axis=0).astype(jnp.float32)   # (8, E, 1): bv0-3, bt0-3

    w5t = jnp.transpose(p["w5"]).astype(bf16)                              # (2E, 8E)
    w5a = w5t[:, : 4 * embd]                                               # dense half (cat4)
    w5b = w5t[:, 4 * embd:]                                                # rank-1 half (gmax)
    dense = [w5a[:, i * embd:(i + 1) * embd] for i in range(4)]
    gmaxp = [w5b[:, i * embd:(i + 1) * embd] for i in range(4)]
    kp["w5"] = jnp.stack(dense + gmaxp)                                    # (8, 2E, E)
    kp["b_tail"] = jnp.stack([cb(p["b5"]), cb(p["b6"])])                   # (2, 2E, 1)
    kp["w6"] = cw(p["w6"])                                                 # (2E, 2E)
    kp["wl"] = cw(p["wl"])                                                 # (8, 2E)
    kp["bl"] = cb(p["bl"])                                                 # (8, 1)
    return kp


# ----------------------------- pure-JAX reference ---------------------------
def reference(x, p, with_oa=WITH_OA):
    def per_batch(xb):
        h = jax.nn.relu(xb @ p["w1"] + p["b1"])
        h = jax.nn.relu(h @ p["w2"] + p["b2"])
        h = jax.nn.relu(h @ p["wa1"] + p["ba1"])
        h = jax.nn.relu(h @ p["wa2"] + p["ba2"])
        outs = []
        for i in range(4):
            q = h @ p["wqk"][i]
            v = h @ p["wv"][i] + p["bv"][i]
            energy = q @ q.T
            attn = jax.nn.softmax(energy, axis=-1)
            attn = attn / (1e-9 + jnp.sum(attn, axis=0, keepdims=True))
            x_r = attn.T @ v
            delta = (h - x_r) if with_oa else x_r
            x_r = jax.nn.relu(delta @ p["wt"][i] + p["bt"][i])
            h = h + x_r
            outs.append(h)
        cat4 = jnp.concatenate(outs, axis=-1)
        gmax = jnp.max(cat4, axis=0, keepdims=True)
        cat8 = jnp.concatenate([cat4, jnp.broadcast_to(gmax, cat4.shape)], axis=-1)
        h5 = jax.nn.relu(cat8 @ p["w5"] + p["b5"])
        h6 = jax.nn.relu(h5 @ p["w6"] + p["b6"])
        return h6 @ p["wl"] + p["bl"]
    return jax.vmap(per_batch)(x)


if __name__ == "__main__":
    key = jax.random.PRNGKey(0)
    pkey, xkey = jax.random.split(key)
    params = init_params(pkey)
    kparams = prepare_kernel_params(params)
    x = jax.random.normal(xkey, (BATCH, N_POINTS, D_POINTS), dtype=jnp.float32)

    out = jax.block_until_ready(naive_point_transformer(x, kparams))
    assert out.shape == (BATCH, N_POINTS, OUT_CH), out.shape

    ref = jax.block_until_ready(reference(x, params))
    if not np.allclose(np.asarray(out), np.asarray(ref), atol=5e-2, rtol=5e-2):
        diff = np.max(np.abs(np.asarray(out) - np.asarray(ref)))
        raise AssertionError(f"kernel/reference mismatch, max abs diff = {diff}")

    print("KERNEL_OK")
</pallas_src>

<mosaic_0001>
module attributes {stable_mosaic.version = 11 : i64} {
  func.func @_pt_kernel(%arg0: i32, %arg1: memref<1x3x128xf32, #tpu.memory_space<vmem>>, %arg2: memref<32x3xbf16, #tpu.memory_space<vmem>>, %arg3: memref<3x32x32xbf16, #tpu.memory_space<vmem>>, %arg4: memref<4x40x32xbf16, #tpu.memory_space<vmem>>, %arg5: memref<4x32x32xbf16, #tpu.memory_space<vmem>>, %arg6: memref<8x64x32xbf16, #tpu.memory_space<vmem>>, %arg7: memref<64x64xbf16, #tpu.memory_space<vmem>>, %arg8: memref<8x64xbf16, #tpu.memory_space<vmem>>, %arg9: memref<4x32x1xf32, #tpu.memory_space<vmem>>, %arg10: memref<8x32x1xf32, #tpu.memory_space<vmem>>, %arg11: memref<2x64x1xf32, #tpu.memory_space<vmem>>, %arg12: memref<8x1xf32, #tpu.memory_space<vmem>>, %arg13: memref<1x8x128xf32, #tpu.memory_space<vmem>>) attributes {dimension_semantics = [#tpu.dimension_semantics<parallel>], iteration_bounds = array<i64: 2>, scalar_prefetch = 0 : i64, scratch_operands = 0 : i64, tpu.core_type = #tpu.core_type<tc>, window_params = [{transform_indices = @transform_0, window_bounds = array<i64: 1, 3, 128>}, {pipeline_mode = #tpu.pipeline_mode<synchronous>, transform_indices = @transform_1, window_bounds = array<i64: 32, 3>}, {pipeline_mode = #tpu.pipeline_mode<synchronous>, transform_indices = @transform_2, window_bounds = array<i64: 3, 32, 32>}, {pipeline_mode = #tpu.pipeline_mode<synchronous>, transform_indices = @transform_3, window_bounds = array<i64: 4, 40, 32>}, {pipeline_mode = #tpu.pipeline_mode<synchronous>, transform_indices = @transform_4, window_bounds = array<i64: 4, 32, 32>}, {pipeline_mode = #tpu.pipeline_mode<synchronous>, transform_indices = @transform_5, window_bounds = array<i64: 8, 64, 32>}, {pipeline_mode = #tpu.pipeline_mode<synchronous>, transform_indices = @transform_6, window_bounds = array<i64: 64, 64>}, {pipeline_mode = #tpu.pipeline_mode<synchronous>, transform_indices = @transform_7, window_bounds = array<i64: 8, 64>}, {pipeline_mode = #tpu.pipeline_mode<synchronous>, transform_indices = @transform_8, window_bounds = array<i64: 4, 32, 1>}, {pipeline_mode = #tpu.pipeline_mode<synchronous>, transform_indices = @transform_9, window_bounds = array<i64: 8, 32, 1>}, {pipeline_mode = #tpu.pipeline_mode<synchronous>, transform_indices = @transform_10, window_bounds = array<i64: 2, 64, 1>}, {pipeline_mode = #tpu.pipeline_mode<synchronous>, transform_indices = @transform_11, window_bounds = array<i64: 8, 1>}, {transform_indices = @transform_12, window_bounds = array<i64: 1, 8, 128>}]} {
    %c0 = arith.constant 0 : index
    %c0_0 = arith.constant 0 : index
    %c0_1 = arith.constant 0 : index
    %0 = vector.load %arg1[%c0, %c0_0, %c0_1] : memref<1x3x128xf32, #tpu.memory_space<vmem>>, vector<1x3x128xf32>
    %1 = vector.shape_cast %0 : vector<1x3x128xf32> to vector<3x128xf32>
    %c0_2 = arith.constant 0 : index
    %c0_3 = arith.constant 0 : index
    %2 = vector.load %arg2[%c0_2, %c0_3] : memref<32x3xbf16, #tpu.memory_space<vmem>>, vector<32x3xbf16>
    %3 = arith.truncf %1 : vector<3x128xf32> to vector<3x128xbf16>
    %cst = arith.constant dense<0.000000e+00> : vector<32x128xf32>
    %4 = tpu.matmul %2, %3, %cst {dimension_numbers = #tpu.dot_dimension_numbers<[1], [0], [0], [1], [0, 0, 1, 1], [], []>} : vector<32x3xbf16>, vector<3x128xbf16>, vector<32x128xf32> -> vector<32x128xf32>
    %c0_4 = arith.constant 0 : index
    %c0_5 = arith.constant 0 : index
    %c0_6 = arith.constant 0 : index
    %5 = vector.load %arg9[%c0_4, %c0_5, %c0_6] : memref<4x32x1xf32, #tpu.memory_space<vmem>>, vector<1x32x1xf32>
    %6 = vector.shape_cast %5 : vector<1x32x1xf32> to vector<32x1xf32>
    %7 = vector.broadcast %6 : vector<32x1xf32> to vector<32x128xf32>
    %8 = arith.addf %4, %7 : vector<32x128xf32>
    %cst_7 = arith.constant 0.000000e+00 : f32
    %9 = vector.broadcast %cst_7 : f32 to vector<32x128xf32>
    %10 = arith.maximumf %8, %9 : vector<32x128xf32>
    %c0_8 = arith.constant 0 : index
    %c0_9 = arith.constant 0 : index
    %c0_10 = arith.constant 0 : index
    %11 = vector.load %arg3[%c0_8, %c0_9, %c0_10] : memref<3x32x32xbf16, #tpu.memory_space<vmem>>, vector<1x32x32xbf16>
    %12 = vector.shape_cast %11 : vector<1x32x32xbf16> to vector<32x32xbf16>
    %13 = arith.truncf %10 : vector<32x128xf32> to vector<32x128xbf16>
    %cst_11 = arith.constant dense<0.000000e+00> : vector<32x128xf32>
    %14 = tpu.matmul %12, %13, %cst_11 {dimension_numbers = #tpu.dot_dimension_numbers<[1], [0], [0], [1], [0, 0, 1, 1], [], []>} : vector<32x32xbf16>, vector<32x128xbf16>, vector<32x128xf32> -> vector<32x128xf32>
    %c1 = arith.constant 1 : index
    %c0_12 = arith.constant 0 : index
    %c0_13 = arith.constant 0 : index
    %15 = vector.load %arg9[%c1, %c0_12, %c0_13] : memref<4x32x1xf32, #tpu.memory_space<vmem>>, vector<1x32x1xf32>
    %16 = vector.shape_cast %15 : vector<1x32x1xf32> to vector<32x1xf32>
    %17 = vector.broadcast %16 : vector<32x1xf32> to vector<32x128xf32>
    %18 = arith.addf %14, %17 : vector<32x128xf32>
    %cst_14 = arith.constant 0.000000e+00 : f32
    %19 = vector.broadcast %cst_14 : f32 to vector<32x128xf32>
    %20 = arith.maximumf %18, %19 : vector<32x128xf32>
    %c1_15 = arith.constant 1 : index
    %c0_16 = arith.constant 0 : index
    %c0_17 = arith.constant 0 : index
    %21 = vector.load %arg3[%c1_15, %c0_16, %c0_17] : memref<3x32x32xbf16, #tpu.memory_space<vmem>>, vector<1x32x32xbf16>
    %22 = vector.shape_cast %21 : vector<1x32x32xbf16> to vector<32x32xbf16>
    %23 = arith.truncf %20 : vector<32x128xf32> to vector<32x128xbf16>
    %cst_18 = arith.constant dense<0.000000e+00> : vector<32x128xf32>
    %24 = tpu.matmul %22, %23, %cst_18 {dimension_numbers = #tpu.dot_dimension_numbers<[1], [0], [0], [1], [0, 0, 1, 1], [], []>} : vector<32x32xbf16>, vector<32x128xbf16>, vector<32x128xf32> -> vector<32x128xf32>
    %c2 = arith.constant 2 : index
    %c0_19 = arith.constant 0 : index
    %c0_20 = arith.constant 0 : index
    %25 = vector.load %arg9[%c2, %c0_19, %c0_20] : memref<4x32x1xf32, #tpu.memory_space<vmem>>, vector<1x32x1xf32>
    %26 = vector.shape_cast %25 : vector<1x32x1xf32> to vector<32x1xf32>
    %27 = vector.broadcast %26 : vector<32x1xf32> to vector<32x128xf32>
    %28 = arith.addf %24, %27 : vector<32x128xf32>
    %cst_21 = arith.constant 0.000000e+00 : f32
    %29 = vector.broadcast %cst_21 : f32 to vector<32x128xf32>
    %30 = arith.maximumf %28, %29 : vector<32x128xf32>
    %c2_22 = arith.constant 2 : index
    %c0_23 = arith.constant 0 : index
    %c0_24 = arith.constant 0 : index
    %31 = vector.load %arg3[%c2_22, %c0_23, %c0_24] : memref<3x32x32xbf16, #tpu.memory_space<vmem>>, vector<1x32x32xbf16>
    %32 = vector.shape_cast %31 : vector<1x32x32xbf16> to vector<32x32xbf16>
    %33 = arith.truncf %30 : vector<32x128xf32> to vector<32x128xbf16>
    %cst_25 = arith.constant dense<0.000000e+00> : vector<32x128xf32>
    %34 = tpu.matmul %32, %33, %cst_25 {dimension_numbers = #tpu.dot_dimension_numbers<[1], [0], [0], [1], [0, 0, 1, 1], [], []>} : vector<32x32xbf16>, vector<32x128xbf16>, vector<32x128xf32> -> vector<32x128xf32>
    %c3 = arith.constant 3 : index
    %c0_26 = arith.constant 0 : index
    %c0_27 = arith.constant 0 : index
    %35 = vector.load %arg9[%c3, %c0_26, %c0_27] : memref<4x32x1xf32, #tpu.memory_space<vmem>>, vector<1x32x1xf32>
    %36 = vector.shape_cast %35 : vector<1x32x1xf32> to vector<32x1xf32>
    %37 = vector.broadcast %36 : vector<32x1xf32> to vector<32x128xf32>
    %38 = arith.addf %34, %37 : vector<32x128xf32>
    %cst_28 = arith.constant 0.000000e+00 : f32
    %39 = vector.broadcast %cst_28 : f32 to vector<32x128xf32>
    %40 = arith.maximumf %38, %39 : vector<32x128xf32>
    %cst_29 = arith.constant 0.000000e+00 : f32
    %41 = vector.broadcast %cst_29 : f32 to vector<64x128xf32>
    %cst_30 = arith.constant 0.000000e+00 : f32
    %42 = vector.broadcast %cst_30 : f32 to vector<64x1xf32>
    %c0_31 = arith.constant 0 : index
    %c0_32 = arith.constant 0 : index
    %c0_33 = arith.constant 0 : index
    %43 = vector.load %arg4[%c0_31, %c0_32, %c0_33] : memref<4x40x32xbf16, #tpu.memory_space<vmem>>, vector<1x40x32xbf16>
    %44 = vector.shape_cast %43 : vector<1x40x32xbf16> to vector<40x32xbf16>
    %45 = arith.truncf %40 : vector<32x128xf32> to vector<32x128xbf16>
    %cst_34 = arith.constant dense<0.000000e+00> : vector<40x128xf32>
    %46 = tpu.matmul %44, %45, %cst_34 {dimension_numbers = #tpu.dot_dimension_numbers<[1], [0], [0], [1], [0, 0, 1, 1], [], []>} : vector<40x32xbf16>, vector<32x128xbf16>, vector<40x128xf32> -> vector<40x128xf32>
    %47 = vector.extract_strided_slice %46 {offsets = [0, 0], sizes = [8, 128], strides = [1, 1]} : vector<40x128xf32> to vector<8x128xf32>
    %48 = vector.extract_strided_slice %46 {offsets = [8, 0], sizes = [32, 128], strides = [1, 1]} : vector<40x128xf32> to vector<32x128xf32>
    %c0_35 = arith.constant 0 : index
    %c0_36 = arith.constant 0 : index
    %c0_37 = arith.constant 0 : index
    %49 = vector.load %arg10[%c0_35, %c0_36, %c0_37] : memref<8x32x1xf32, #tpu.memory_space<vmem>>, vector<1x32x1xf32>
    %50 = vector.shape_cast %49 : vector<1x32x1xf32> to vector<32x1xf32>
    %51 = vector.broadcast %50 : vector<32x1xf32> to vector<32x128xf32>
    %52 = arith.addf %48, %51 : vector<32x128xf32>
    %53 = arith.truncf %47 : vector<8x128xf32> to vector<8x128xbf16>
    %54 = arith.truncf %47 : vector<8x128xf32> to vector<8x128xbf16>
    %cst_38 = arith.constant dense<0.000000e+00> : vector<128x128xf32>
    %55 = tpu.matmul %53, %54, %cst_38 {dimension_numbers = #tpu.dot_dimension_numbers<[0], [0], [1], [1], [0, 1, 1, 1], [], []>} : vector<8x128xbf16>, vector<8x128xbf16>, vector<128x128xf32> -> vector<128x128xf32>
    %56 = math.exp %55 : vector<128x128xf32>
    %57 = arith.truncf %56 : vector<128x128xf32> to vector<128x128xbf16>
    %cst_39 = arith.constant dense<0.000000e+00> : vector<128xf32>
    %58 = vector.multi_reduction <add>, %56, %cst_39 [0] : vector<128x128xf32> to vector<128xf32>
    %59 = vector.shape_cast %58 : vector<128xf32> to vector<1x128xf32>
    %60 = tpu.reciprocal %59 {approx = true} : vector<1x128xf32> -> vector<1x128xf32>
    %61 = vector.broadcast %60 : vector<1x128xf32> to vector<32x128xf32>
    %62 = arith.mulf %52, %61 : vector<32x128xf32>
    %63 = tpu.concatenate %62, %60 in 0 : vector<32x128xf32>, vector<1x128xf32> -> vector<33x128xf32>
    %64 = arith.truncf %63 : vector<33x128xf32> to vector<33x128xbf16>
    %cst_40 = arith.constant dense<0.000000e+00> : vector<33x128xf32>
    %65 = tpu.matmul %64, %57, %cst_40 {dimension_numbers = #tpu.dot_dimension_numbers<[1], [0], [0], [1], [0, 0, 1, 1], [], []>} : vector<33x128xbf16>, vector<128x128xbf16>, vector<33x128xf32> -> vector<33x128xf32>
    %66 = vector.extract_strided_slice %65 {offsets = [0, 0], sizes = [32, 128], strides = [1, 1]} : vector<33x128xf32> to vector<32x128xf32>
    %67 = vector.extract_strided_slice %65 {offsets = [32, 0], sizes = [1, 128], strides = [1, 1]} : vector<33x128xf32> to vector<1x128xf32>
    %cst_41 = arith.constant 9.99999971E-10 : f32
    %68 = vector.broadcast %cst_41 : f32 to vector<1x128xf32>
    %69 = arith.addf %67, %68 : vector<1x128xf32>
    %70 = tpu.reciprocal %69 {approx = true} : vector<1x128xf32> -> vector<1x128xf32>
    %71 = vector.broadcast %70 : vector<1x128xf32> to vector<32x128xf32>
    %72 = arith.mulf %66, %71 : vector<32x128xf32>
    %c0_42 = arith.constant 0 : index
    %c0_43 = arith.constant 0 : index
    %c0_44 = arith.constant 0 : index
    %73 = vector.load %arg5[%c0_42, %c0_43, %c0_44] : memref<4x32x32xbf16, #tpu.memory_space<vmem>>, vector<1x32x32xbf16>
    %74 = vector.shape_cast %73 : vector<1x32x32xbf16> to vector<32x32xbf16>
    %75 = arith.truncf %72 : vector<32x128xf32> to vector<32x128xbf16>
    %cst_45 = arith.constant dense<0.000000e+00> : vector<32x128xf32>
    %76 = tpu.matmul %74, %75, %cst_45 {dimension_numbers = #tpu.dot_dimension_numbers<[1], [0], [0], [1], [0, 0, 1, 1], [], []>} : vector<32x32xbf16>, vector<32x128xbf16>, vector<32x128xf32> -> vector<32x128xf32>
    %c4 = arith.constant 4 : index
    %c0_46 = arith.constant 0 : index
    %c0_47 = arith.constant 0 : index
    %77 = vector.load %arg10[%c4, %c0_46, %c0_47] : memref<8x32x1xf32, #tpu.memory_space<vmem>>, vector<1x32x1xf32>
    %78 = vector.shape_cast %77 : vector<1x32x1xf32> to vector<32x1xf32>
    %79 = vector.broadcast %78 : vector<32x1xf32> to vector<32x128xf32>
    %80 = arith.addf %76, %79 : vector<32x128xf32>
    %cst_48 = arith.constant 0.000000e+00 : f32
    %81 = vector.broadcast %cst_48 : f32 to vector<32x128xf32>
    %82 = arith.maximumf %80, %81 : vector<32x128xf32>
    %83 = arith.addf %40, %82 : vector<32x128xf32>
    %c0_49 = arith.constant 0 : index
    %c0_50 = arith.constant 0 : index
    %c0_51 = arith.constant 0 : index
    %84 = vector.load %arg6[%c0_49, %c0_50, %c0_51] : memref<8x64x32xbf16, #tpu.memory_space<vmem>>, vector<1x64x32xbf16>
    %85 = vector.shape_cast %84 : vector<1x64x32xbf16> to vector<64x32xbf16>
    %86 = arith.truncf %83 : vector<32x128xf32> to vector<32x128xbf16>
    %cst_52 = arith.constant dense<0.000000e+00> : vector<64x128xf32>
    %87 = tpu.matmul %85, %86, %cst_52 {dimension_numbers = #tpu.dot_dimension_numbers<[1], [0], [0], [1], [0, 0, 1, 1], [], []>} : vector<64x32xbf16>, vector<32x128xbf16>, vector<64x128xf32> -> vector<64x128xf32>
    %88 = arith.addf %41, %87 : vector<64x128xf32>
    %cst_53 = arith.constant dense<0xFF800000> : vector<32xf32>
    %89 = vector.multi_reduction <maximumf>, %83, %cst_53 [1] : vector<32x128xf32> to vector<32xf32>
    %90 = vector.shape_cast %89 : vector<32xf32> to vector<32x1xf32>
    %c4_54 = arith.constant 4 : index
    %c0_55 = arith.constant 0 : index
    %c0_56 = arith.constant 0 : index
    %91 = vector.load %arg6[%c4_54, %c0_55, %c0_56] : memref<8x64x32xbf16, #tpu.memory_space<vmem>>, vector<1x64x32xbf16>
    %92 = vector.shape_cast %91 : vector<1x64x32xbf16> to vector<64x32xbf16>
    %93 = arith.truncf %90 : vector<32x1xf32> to vector<32x1xbf16>
    %cst_57 = arith.constant dense<0.000000e+00> : vector<64x1xf32>
    %94 = tpu.matmul %92, %93, %cst_57 {dimension_numbers = #tpu.dot_dimension_numbers<[1], [0], [0], [1], [0, 0, 1, 1], [], []>} : vector<64x32xbf16>, vector<32x1xbf16>, vector<64x1xf32> -> vector<64x1xf32>
    %95 = arith.addf %42, %94 : vector<64x1xf32>
    %c1_58 = arith.constant 1 : index
    %c0_59 = arith.constant 0 : index
    %c0_60 = arith.constant 0 : index
    %96 = vector.load %arg4[%c1_58, %c0_59, %c0_60] : memref<4x40x32xbf16, #tpu.memory_space<vmem>>, vector<1x40x32xbf16>
    %97 = vector.shape_cast %96 : vector<1x40x32xbf16> to vector<40x32xbf16>
    %98 = arith.truncf %83 : vector<32x128xf32> to vector<32x128xbf16>
    %cst_61 = arith.constant dense<0.000000e+00> : vector<40x128xf32>
    %99 = tpu.matmul %97, %98, %cst_61 {dimension_numbers = #tpu.dot_dimension_numbers<[1], [0], [0], [1], [0, 0, 1, 1], [], []>} : vector<40x32xbf16>, vector<32x128xbf16>, vector<40x128xf32> -> vector<40x128xf32>
    %100 = vector.extract_strided_slice %99 {offsets = [0, 0], sizes = [8, 128], strides = [1, 1]} : vector<40x128xf32> to vector<8x128xf32>
    %101 = vector.extract_strided_slice %99 {offsets = [8, 0], sizes = [32, 128], strides = [1, 1]} : vector<40x128xf32> to vector<32x128xf32>
    %c1_62 = arith.constant 1 : index
    %c0_63 = arith.constant 0 : index
    %c0_64 = arith.constant 0 : index
    %102 = vector.load %arg10[%c1_62, %c0_63, %c0_64] : memref<8x32x1xf32, #tpu.memory_space<vmem>>, vector<1x32x1xf32>
    %103 = vector.shape_cast %102 : vector<1x32x1xf32> to vector<32x1xf32>
    %104 = vector.broadcast %103 : vector<32x1xf32> to vector<32x128xf32>
    %105 = arith.addf %101, %104 : vector<32x128xf32>
    %106 = arith.truncf %100 : vector<8x128xf32> to vector<8x128xbf16>
    %107 = arith.truncf %100 : vector<8x128xf32> to vector<8x128xbf16>
    %cst_65 = arith.constant dense<0.000000e+00> : vector<128x128xf32>
    %108 = tpu.matmul %106, %107, %cst_65 {dimension_numbers = #tpu.dot_dimension_numbers<[0], [0], [1], [1], [0, 1, 1, 1], [], []>} : vector<8x128xbf16>, vector<8x128xbf16>, vector<128x128xf32> -> vector<128x128xf32>
    %109 = math.exp %108 : vector<128x128xf32>
    %110 = arith.truncf %109 : vector<128x128xf32> to vector<128x128xbf16>
    %cst_66 = arith.constant dense<0.000000e+00> : vector<128xf32>
    %111 = vector.multi_reduction <add>, %109, %cst_66 [0] : vector<128x128xf32> to vector<128xf32>
    %112 = vector.shape_cast %111 : vector<128xf32> to vector<1x128xf32>
    %113 = tpu.reciprocal %112 {approx = true} : vector<1x128xf32> -> vector<1x128xf32>
    %114 = vector.broadcast %113 : vector<1x128xf32> to vector<32x128xf32>
    %115 = arith.mulf %105, %114 : vector<32x128xf32>
    %116 = tpu.concatenate %115, %113 in 0 : vector<32x128xf32>, vector<1x128xf32> -> vector<33x128xf32>
    %117 = arith.truncf %116 : vector<33x128xf32> to vector<33x128xbf16>
    %cst_67 = arith.constant dense<0.000000e+00> : vector<33x128xf32>
    %118 = tpu.matmul %117, %110, %cst_67 {dimension_numbers = #tpu.dot_dimension_numbers<[1], [0], [0], [1], [0, 0, 1, 1], [], []>} : vector<33x128xbf16>, vector<128x128xbf16>, vector<33x128xf32> -> vector<33x128xf32>
    %119 = vector.extract_strided_slice %118 {offsets = [0, 0], sizes = [32, 128], strides = [1, 1]} : vector<33x128xf32> to vector<32x128xf32>
    %120 = vector.extract_strided_slice %118 {offsets = [32, 0], sizes = [1, 128], strides = [1, 1]} : vector<33x128xf32> to vector<1x128xf32>
    %cst_68 = arith.constant 9.99999971E-10 : f32
    %121 = vector.broadcast %cst_68 : f32 to vector<1x128xf32>
    %122 = arith.addf %120, %121 : vector<1x128xf32>
    %123 = tpu.reciprocal %122 {approx = true} : vector<1x128xf32> -> vector<1x128xf32>
    %124 = vector.broadcast %123 : vector<1x128xf32> to vector<32x128xf32>
    %125 = arith.mulf %119, %124 : vector<32x128xf32>
    %c1_69 = arith.constant 1 : index
    %c0_70 = arith.constant 0 : index
    %c0_71 = arith.constant 0 : index
    %126 = vector.load %arg5[%c1_69, %c0_70, %c0_71] : memref<4x32x32xbf16, #tpu.memory_space<vmem>>, vector<1x32x32xbf16>
    %127 = vector.shape_cast %126 : vector<1x32x32xbf16> to vector<32x32xbf16>
    %128 = arith.truncf %125 : vector<32x128xf32> to vector<32x128xbf16>
    %cst_72 = arith.constant dense<0.000000e+00> : vector<32x128xf32>
    %129 = tpu.matmul %127, %128, %cst_72 {dimension_numbers = #tpu.dot_dimension_numbers<[1], [0], [0], [1], [0, 0, 1, 1], [], []>} : vector<32x32xbf16>, vector<32x128xbf16>, vector<32x128xf32> -> vector<32x128xf32>
    %c5 = arith.constant 5 : index
    %c0_73 = arith.constant 0 : index
    %c0_74 = arith.constant 0 : index
    %130 = vector.load %arg10[%c5, %c0_73, %c0_74] : memref<8x32x1xf32, #tpu.memory_space<vmem>>, vector<1x32x1xf32>
    %131 = vector.shape_cast %130 : vector<1x32x1xf32> to vector<32x1xf32>
    %132 = vector.broadcast %131 : vector<32x1xf32> to vector<32x128xf32>
    %133 = arith.addf %129, %132 : vector<32x128xf32>
    %cst_75 = arith.constant 0.000000e+00 : f32
    %134 = vector.broadcast %cst_75 : f32 to vector<32x128xf32>
    %135 = arith.maximumf %133, %134 : vector<32x128xf32>
    %136 = arith.addf %83, %135 : vector<32x128xf32>
    %c1_76 = arith.constant 1 : index
    %c0_77 = arith.constant 0 : index
    %c0_78 = arith.constant 0 : index
    %137 = vector.load %arg6[%c1_76, %c0_77, %c0_78] : memref<8x64x32xbf16, #tpu.memory_space<vmem>>, vector<1x64x32xbf16>
    %138 = vector.shape_cast %137 : vector<1x64x32xbf16> to vector<64x32xbf16>
    %139 = arith.truncf %136 : vector<32x128xf32> to vector<32x128xbf16>
    %cst_79 = arith.constant dense<0.000000e+00> : vector<64x128xf32>
    %140 = tpu.matmul %138, %139, %cst_79 {dimension_numbers = #tpu.dot_dimension_numbers<[1], [0], [0], [1], [0, 0, 1, 1], [], []>} : vector<64x32xbf16>, vector<32x128xbf16>, vector<64x128xf32> -> vector<64x128xf32>
    %141 = arith.addf %88, %140 : vector<64x128xf32>
    %cst_80 = arith.constant dense<0xFF800000> : vector<32xf32>
    %142 = vector.multi_reduction <maximumf>, %136, %cst_80 [1] : vector<32x128xf32> to vector<32xf32>
    %143 = vector.shape_cast %142 : vector<32xf32> to vector<32x1xf32>
    %c5_81 = arith.constant 5 : index
    %c0_82 = arith.constant 0 : index
    %c0_83 = arith.constant 0 : index
    %144 = vector.load %arg6[%c5_81, %c0_82, %c0_83] : memref<8x64x32xbf16, #tpu.memory_space<vmem>>, vector<1x64x32xbf16>
    %145 = vector.shape_cast %144 : vector<1x64x32xbf16> to vector<64x32xbf16>
    %146 = arith.truncf %143 : vector<32x1xf32> to vector<32x1xbf16>
    %cst_84 = arith.constant dense<0.000000e+00> : vector<64x1xf32>
    %147 = tpu.matmul %145, %146, %cst_84 {dimension_numbers = #tpu.dot_dimension_numbers<[1], [0], [0], [1], [0, 0, 1, 1], [], []>} : vector<64x32xbf16>, vector<32x1xbf16>, vector<64x1xf32> -> vector<64x1xf32>
    %148 = arith.addf %95, %147 : vector<64x1xf32>
    %c2_85 = arith.constant 2 : index
    %c0_86 = arith.constant 0 : index
    %c0_87 = arith.constant 0 : index
    %149 = vector.load %arg4[%c2_85, %c0_86, %c0_87] : memref<4x40x32xbf16, #tpu.memory_space<vmem>>, vector<1x40x32xbf16>
    %150 = vector.shape_cast %149 : vector<1x40x32xbf16> to vector<40x32xbf16>
    %151 = arith.truncf %136 : vector<32x128xf32> to vector<32x128xbf16>
    %cst_88 = arith.constant dense<0.000000e+00> : vector<40x128xf32>
    %152 = tpu.matmul %150, %151, %cst_88 {dimension_numbers = #tpu.dot_dimension_numbers<[1], [0], [0], [1], [0, 0, 1, 1], [], []>} : vector<40x32xbf16>, vector<32x128xbf16>, vector<40x128xf32> -> vector<40x128xf32>
    %153 = vector.extract_strided_slice %152 {offsets = [0, 0], sizes = [8, 128], strides = [1, 1]} : vector<40x128xf32> to vector<8x128xf32>
    %154 = vector.extract_strided_slice %152 {offsets = [8, 0], sizes = [32, 128], strides = [1, 1]} : vector<40x128xf32> to vector<32x128xf32>
    %c2_89 = arith.constant 2 : index
    %c0_90 = arith.constant 0 : index
    %c0_91 = arith.constant 0 : index
    %155 = vector.load %arg10[%c2_89, %c0_90, %c0_91] : memref<8x32x1xf32, #tpu.memory_space<vmem>>, vector<1x32x1xf32>
    %156 = vector.shape_cast %155 : vector<1x32x1xf32> to vector<32x1xf32>
    %157 = vector.broadcast %156 : vector<32x1xf32> to vector<32x128xf32>
    %158 = arith.addf %154, %157 : vector<32x128xf32>
    %159 = arith.truncf %153 : vector<8x128xf32> to vector<8x128xbf16>
    %160 = arith.truncf %153 : vector<8x128xf32> to vector<8x128xbf16>
    %cst_92 = arith.constant dense<0.000000e+00> : vector<128x128xf32>
    %161 = tpu.matmul %159, %160, %cst_92 {dimension_numbers = #tpu.dot_dimension_numbers<[0], [0], [1], [1], [0, 1, 1, 1], [], []>} : vector<8x128xbf16>, vector<8x128xbf16>, vector<128x128xf32> -> vector<128x128xf32>
    %162 = math.exp %161 : vector<128x128xf32>
    %163 = arith.truncf %162 : vector<128x128xf32> to vector<128x128xbf16>
    %cst_93 = arith.constant dense<0.000000e+00> : vector<128xf32>
    %164 = vector.multi_reduction <add>, %162, %cst_93 [0] : vector<128x128xf32> to vector<128xf32>
    %165 = vector.shape_cast %164 : vector<128xf32> to vector<1x128xf32>
    %166 = tpu.reciprocal %165 {approx = true} : vector<1x128xf32> -> vector<1x128xf32>
    %167 = vector.broadcast %166 : vector<1x128xf32> to vector<32x128xf32>
    %168 = arith.mulf %158, %167 : vector<32x128xf32>
    %169 = tpu.concatenate %168, %166 in 0 : vector<32x128xf32>, vector<1x128xf32> -> vector<33x128xf32>
    %170 = arith.truncf %169 : vector<33x128xf32> to vector<33x128xbf16>
    %cst_94 = arith.constant dense<0.000000e+00> : vector<33x128xf32>
    %171 = tpu.matmul %170, %163, %cst_94 {dimension_numbers = #tpu.dot_dimension_numbers<[1], [0], [0], [1], [0, 0, 1, 1], [], []>} : vector<33x128xbf16>, vector<128x128xbf16>, vector<33x128xf32> -> vector<33x128xf32>
    %172 = vector.extract_strided_slice %171 {offsets = [0, 0], sizes = [32, 128], strides = [1, 1]} : vector<33x128xf32> to vector<32x128xf32>
    %173 = vector.extract_strided_slice %171 {offsets = [32, 0], sizes = [1, 128], strides = [1, 1]} : vector<33x128xf32> to vector<1x128xf32>
    %cst_95 = arith.constant 9.99999971E-10 : f32
    %174 = vector.broadcast %cst_95 : f32 to vector<1x128xf32>
    %175 = arith.addf %173, %174 : vector<1x128xf32>
    %176 = tpu.reciprocal %175 {approx = true} : vector<1x128xf32> -> vector<1x128xf32>
    %177 = vector.broadcast %176 : vector<1x128xf32> to vector<32x128xf32>
    %178 = arith.mulf %172, %177 : vector<32x128xf32>
    %c2_96 = arith.constant 2 : index
    %c0_97 = arith.constant 0 : index
    %c0_98 = arith.constant 0 : index
    %179 = vector.load %arg5[%c2_96, %c0_97, %c0_98] : memref<4x32x32xbf16, #tpu.memory_space<vmem>>, vector<1x32x32xbf16>
    %180 = vector.shape_cast %179 : vector<1x32x32xbf16> to vector<32x32xbf16>
    %181 = arith.truncf %178 : vector<32x128xf32> to vector<32x128xbf16>
    %cst_99 = arith.constant dense<0.000000e+00> : vector<32x128xf32>
    %182 = tpu.matmul %180, %181, %cst_99 {dimension_numbers = #tpu.dot_dimension_numbers<[1], [0], [0], [1], [0, 0, 1, 1], [], []>} : vector<32x32xbf16>, vector<32x128xbf16>, vector<32x128xf32> -> vector<32x128xf32>
    %c6 = arith.constant 6 : index
    %c0_100 = arith.constant 0 : index
    %c0_101 = arith.constant 0 : index
    %183 = vector.load %arg10[%c6, %c0_100, %c0_101] : memref<8x32x1xf32, #tpu.memory_space<vmem>>, vector<1x32x1xf32>
    %184 = vector.shape_cast %183 : vector<1x32x1xf32> to vector<32x1xf32>
    %185 = vector.broadcast %184 : vector<32x1xf32> to vector<32x128xf32>
    %186 = arith.addf %182, %185 : vector<32x128xf32>
    %cst_102 = arith.constant 0.000000e+00 : f32
    %187 = vector.broadcast %cst_102 : f32 to vector<32x128xf32>
    %188 = arith.maximumf %186, %187 : vector<32x128xf32>
    %189 = arith.addf %136, %188 : vector<32x128xf32>
    %c2_103 = arith.constant 2 : index
    %c0_104 = arith.constant 0 : index
    %c0_105 = arith.constant 0 : index
    %190 = vector.load %arg6[%c2_103, %c0_104, %c0_105] : memref<8x64x32xbf16, #tpu.memory_space<vmem>>, vector<1x64x32xbf16>
    %191 = vector.shape_cast %190 : vector<1x64x32xbf16> to vector<64x32xbf16>
    %192 = arith.truncf %189 : vector<32x128xf32> to vector<32x128xbf16>
    %cst_106 = arith.constant dense<0.000000e+00> : vector<64x128xf32>
    %193 = tpu.matmul %191, %192, %cst_106 {dimension_numbers = #tpu.dot_dimension_numbers<[1], [0], [0], [1], [0, 0, 1, 1], [], []>} : vector<64x32xbf16>, vector<32x128xbf16>, vector<64x128xf32> -> vector<64x128xf32>
    %194 = arith.addf %141, %193 : vector<64x128xf32>
    %cst_107 = arith.constant dense<0xFF800000> : vector<32xf32>
    %195 = vector.multi_reduction <maximumf>, %189, %cst_107 [1] : vector<32x128xf32> to vector<32xf32>
    %196 = vector.shape_cast %195 : vector<32xf32> to vector<32x1xf32>
    %c6_108 = arith.constant 6 : index
    %c0_109 = arith.constant 0 : index
    %c0_110 = arith.constant 0 : index
    %197 = vector.load %arg6[%c6_108, %c0_109, %c0_110] : memref<8x64x32xbf16, #tpu.memory_space<vmem>>, vector<1x64x32xbf16>
    %198 = vector.shape_cast %197 : vector<1x64x32xbf16> to vector<64x32xbf16>
    %199 = arith.truncf %196 : vector<32x1xf32> to vector<32x1xbf16>
    %cst_111 = arith.constant dense<0.000000e+00> : vector<64x1xf32>
    %200 = tpu.matmul %198, %199, %cst_111 {dimension_numbers = #tpu.dot_dimension_numbers<[1], [0], [0], [1], [0, 0, 1, 1], [], []>} : vector<64x32xbf16>, vector<32x1xbf16>, vector<64x1xf32> -> vector<64x1xf32>
    %201 = arith.addf %148, %200 : vector<64x1xf32>
    %c3_112 = arith.constant 3 : index
    %c0_113 = arith.constant 0 : index
    %c0_114 = arith.constant 0 : index
    %202 = vector.load %arg4[%c3_112, %c0_113, %c0_114] : memref<4x40x32xbf16, #tpu.memory_space<vmem>>, vector<1x40x32xbf16>
    %203 = vector.shape_cast %202 : vector<1x40x32xbf16> to vector<40x32xbf16>
    %204 = arith.truncf %189 : vector<32x128xf32> to vector<32x128xbf16>
    %cst_115 = arith.constant dense<0.000000e+00> : vector<40x128xf32>
    %205 = tpu.matmul %203, %204, %cst_115 {dimension_numbers = #tpu.dot_dimension_numbers<[1], [0], [0], [1], [0, 0, 1, 1], [], []>} : vector<40x32xbf16>, vector<32x128xbf16>, vector<40x128xf32> -> vector<40x128xf32>
    %206 = vector.extract_strided_slice %205 {offsets = [0, 0], sizes = [8, 128], strides = [1, 1]} : vector<40x128xf32> to vector<8x128xf32>
    %207 = vector.extract_strided_slice %205 {offsets = [8, 0], sizes = [32, 128], strides = [1, 1]} : vector<40x128xf32> to vector<32x128xf32>
    %c3_116 = arith.constant 3 : index
    %c0_117 = arith.constant 0 : index
    %c0_118 = arith.constant 0 : index
    %208 = vector.load %arg10[%c3_116, %c0_117, %c0_118] : memref<8x32x1xf32, #tpu.memory_space<vmem>>, vector<1x32x1xf32>
    %209 = vector.shape_cast %208 : vector<1x32x1xf32> to vector<32x1xf32>
    %210 = vector.broadcast %209 : vector<32x1xf32> to vector<32x128xf32>
    %211 = arith.addf %207, %210 : vector<32x128xf32>
    %212 = arith.truncf %206 : vector<8x128xf32> to vector<8x128xbf16>
    %213 = arith.truncf %206 : vector<8x128xf32> to vector<8x128xbf16>
    %cst_119 = arith.constant dense<0.000000e+00> : vector<128x128xf32>
    %214 = tpu.matmul %212, %213, %cst_119 {dimension_numbers = #tpu.dot_dimension_numbers<[0], [0], [1], [1], [0, 1, 1, 1], [], []>} : vector<8x128xbf16>, vector<8x128xbf16>, vector<128x128xf32> -> vector<128x128xf32>
    %215 = math.exp %214 : vector<128x128xf32>
    %216 = arith.truncf %215 : vector<128x128xf32> to vector<128x128xbf16>
    %cst_120 = arith.constant dense<0.000000e+00> : vector<128xf32>
    %217 = vector.multi_reduction <add>, %215, %cst_120 [0] : vector<128x128xf32> to vector<128xf32>
    %218 = vector.shape_cast %217 : vector<128xf32> to vector<1x128xf32>
    %219 = tpu.reciprocal %218 {approx = true} : vector<1x128xf32> -> vector<1x128xf32>
    %220 = vector.broadcast %219 : vector<1x128xf32> to vector<32x128xf32>
    %221 = arith.mulf %211, %220 : vector<32x128xf32>
    %222 = tpu.concatenate %221, %219 in 0 : vector<32x128xf32>, vector<1x128xf32> -> vector<33x128xf32>
    %223 = arith.truncf %222 : vector<33x128xf32> to vector<33x128xbf16>
    %cst_121 = arith.constant dense<0.000000e+00> : vector<33x128xf32>
    %224 = tpu.matmul %223, %216, %cst_121 {dimension_numbers = #tpu.dot_dimension_numbers<[1], [0], [0], [1], [0, 0, 1, 1], [], []>} : vector<33x128xbf16>, vector<128x128xbf16>, vector<33x128xf32> -> vector<33x128xf32>
    %225 = vector.extract_strided_slice %224 {offsets = [0, 0], sizes = [32, 128], strides = [1, 1]} : vector<33x128xf32> to vector<32x128xf32>
    %226 = vector.extract_strided_slice %224 {offsets = [32, 0], sizes = [1, 128], strides = [1, 1]} : vector<33x128xf32> to vector<1x128xf32>
    %cst_122 = arith.constant 9.99999971E-10 : f32
    %227 = vector.broadcast %cst_122 : f32 to vector<1x128xf32>
    %228 = arith.addf %226, %227 : vector<1x128xf32>
    %229 = tpu.reciprocal %228 {approx = true} : vector<1x128xf32> -> vector<1x128xf32>
    %230 = vector.broadcast %229 : vector<1x128xf32> to vector<32x128xf32>
    %231 = arith.mulf %225, %230 : vector<32x128xf32>
    %c3_123 = arith.constant 3 : index
    %c0_124 = arith.constant 0 : index
    %c0_125 = arith.constant 0 : index
    %232 = vector.load %arg5[%c3_123, %c0_124, %c0_125] : memref<4x32x32xbf16, #tpu.memory_space<vmem>>, vector<1x32x32xbf16>
    %233 = vector.shape_cast %232 : vector<1x32x32xbf16> to vector<32x32xbf16>
    %234 = arith.truncf %231 : vector<32x128xf32> to vector<32x128xbf16>
    %cst_126 = arith.constant dense<0.000000e+00> : vector<32x128xf32>
    %235 = tpu.matmul %233, %234, %cst_126 {dimension_numbers = #tpu.dot_dimension_numbers<[1], [0], [0], [1], [0, 0, 1, 1], [], []>} : vector<32x32xbf16>, vector<32x128xbf16>, vector<32x128xf32> -> vector<32x128xf32>
    %c7 = arith.constant 7 : index
    %c0_127 = arith.constant 0 : index
    %c0_128 = arith.constant 0 : index
    %236 = vector.load %arg10[%c7, %c0_127, %c0_128] : memref<8x32x1xf32, #tpu.memory_space<vmem>>, vector<1x32x1xf32>
    %237 = vector.shape_cast %236 : vector<1x32x1xf32> to vector<32x1xf32>
    %238 = vector.broadcast %237 : vector<32x1xf32> to vector<32x128xf32>
    %239 = arith.addf %235, %238 : vector<32x128xf32>
    %cst_129 = arith.constant 0.000000e+00 : f32
    %240 = vector.broadcast %cst_129 : f32 to vector<32x128xf32>
    %241 = arith.maximumf %239, %240 : vector<32x128xf32>
    %242 = arith.addf %189, %241 : vector<32x128xf32>
    %c3_130 = arith.constant 3 : index
    %c0_131 = arith.constant 0 : index
    %c0_132 = arith.constant 0 : index
    %243 = vector.load %arg6[%c3_130, %c0_131, %c0_132] : memref<8x64x32xbf16, #tpu.memory_space<vmem>>, vector<1x64x32xbf16>
    %244 = vector.shape_cast %243 : vector<1x64x32xbf16> to vector<64x32xbf16>
    %245 = arith.truncf %242 : vector<32x128xf32> to vector<32x128xbf16>
    %cst_133 = arith.constant dense<0.000000e+00> : vector<64x128xf32>
    %246 = tpu.matmul %244, %245, %cst_133 {dimension_numbers = #tpu.dot_dimension_numbers<[1], [0], [0], [1], [0, 0, 1, 1], [], []>} : vector<64x32xbf16>, vector<32x128xbf16>, vector<64x128xf32> -> vector<64x128xf32>
    %247 = arith.addf %194, %246 : vector<64x128xf32>
    %cst_134 = arith.constant dense<0xFF800000> : vector<32xf32>
    %248 = vector.multi_reduction <maximumf>, %242, %cst_134 [1] : vector<32x128xf32> to vector<32xf32>
    %249 = vector.shape_cast %248 : vector<32xf32> to vector<32x1xf32>
    %c7_135 = arith.constant 7 : index
    %c0_136 = arith.constant 0 : index
    %c0_137 = arith.constant 0 : index
    %250 = vector.load %arg6[%c7_135, %c0_136, %c0_137] : memref<8x64x32xbf16, #tpu.memory_space<vmem>>, vector<1x64x32xbf16>
    %251 = vector.shape_cast %250 : vector<1x64x32xbf16> to vector<64x32xbf16>
    %252 = arith.truncf %249 : vector<32x1xf32> to vector<32x1xbf16>
    %cst_138 = arith.constant dense<0.000000e+00> : vector<64x1xf32>
    %253 = tpu.matmul %251, %252, %cst_138 {dimension_numbers = #tpu.dot_dimension_numbers<[1], [0], [0], [1], [0, 0, 1, 1], [], []>} : vector<64x32xbf16>, vector<32x1xbf16>, vector<64x1xf32> -> vector<64x1xf32>
    %254 = arith.addf %201, %253 : vector<64x1xf32>
    %255 = vector.broadcast %254 : vector<64x1xf32> to vector<64x128xf32>
    %256 = arith.addf %247, %255 : vector<64x128xf32>
    %c0_139 = arith.constant 0 : index
    %c0_140 = arith.constant 0 : index
    %c0_141 = arith.constant 0 : index
    %257 = vector.load %arg11[%c0_139, %c0_140, %c0_141] : memref<2x64x1xf32, #tpu.memory_space<vmem>>, vector<1x64x1xf32>
    %258 = vector.shape_cast %257 : vector<1x64x1xf32> to vector<64x1xf32>
    %259 = vector.broadcast %258 : vector<64x1xf32> to vector<64x128xf32>
    %260 = arith.addf %256, %259 : vector<64x128xf32>
    %cst_142 = arith.constant 0.000000e+00 : f32
    %261 = vector.broadcast %cst_142 : f32 to vector<64x128xf32>
    %262 = arith.maximumf %260, %261 : vector<64x128xf32>
    %c0_143 = arith.constant 0 : index
    %c0_144 = arith.constant 0 : index
    %263 = vector.load %arg7[%c0_143, %c0_144] : memref<64x64xbf16, #tpu.memory_space<vmem>>, vector<64x64xbf16>
    %264 = arith.truncf %262 : vector<64x128xf32> to vector<64x128xbf16>
    %cst_145 = arith.constant dense<0.000000e+00> : vector<64x128xf32>
    %265 = tpu.matmul %263, %264, %cst_145 {dimension_numbers = #tpu.dot_dimension_numbers<[1], [0], [0], [1], [0, 0, 1, 1], [], []>} : vector<64x64xbf16>, vector<64x128xbf16>, vector<64x128xf32> -> vector<64x128xf32>
    %c1_146 = arith.constant 1 : index
    %c0_147 = arith.constant 0 : index
    %c0_148 = arith.constant 0 : index
    %266 = vector.load %arg11[%c1_146, %c0_147, %c0_148] : memref<2x64x1xf32, #tpu.memory_space<vmem>>, vector<1x64x1xf32>
    %267 = vector.shape_cast %266 : vector<1x64x1xf32> to vector<64x1xf32>
    %268 = vector.broadcast %267 : vector<64x1xf32> to vector<64x128xf32>
    %269 = arith.addf %265, %268 : vector<64x128xf32>
    %cst_149 = arith.constant 0.000000e+00 : f32
    %270 = vector.broadcast %cst_149 : f32 to vector<64x128xf32>
    %271 = arith.maximumf %269, %270 : vector<64x128xf32>
    %c0_150 = arith.constant 0 : index
    %c0_151 = arith.constant 0 : index
    %272 = vector.load %arg8[%c0_150, %c0_151] : memref<8x64xbf16, #tpu.memory_space<vmem>>, vector<8x64xbf16>
    %273 = arith.truncf %271 : vector<64x128xf32> to vector<64x128xbf16>
    %cst_152 = arith.constant dense<0.000000e+00> : vector<8x128xf32>
    %274 = tpu.matmul %272, %273, %cst_152 {dimension_numbers = #tpu.dot_dimension_numbers<[1], [0], [0], [1], [0, 0, 1, 1], [], []>} : vector<8x64xbf16>, vector<64x128xbf16>, vector<8x128xf32> -> vector<8x128xf32>
    %c0_153 = arith.constant 0 : index
    %c0_154 = arith.constant 0 : index
    %275 = vector.load %arg12[%c0_153, %c0_154] : memref<8x1xf32, #tpu.memory_space<vmem>>, vector<8x1xf32>
    %276 = vector.broadcast %275 : vector<8x1xf32> to vector<8x128xf32>
    %277 = arith.addf %274, %276 : vector<8x128xf32>
    %c0_155 = arith.constant 0 : index
    %c0_156 = arith.constant 0 : index
    %c0_157 = arith.constant 0 : index
    %278 = vector.load %arg13[%c0_155, %c0_156, %c0_157] : memref<1x8x128xf32, #tpu.memory_space<vmem>>, vector<1x8x128xf32>
    %279 = vector.shape_cast %278 : vector<1x8x128xf32> to vector<8x128xf32>
    %280 = vector.shape_cast %277 : vector<8x128xf32> to vector<1x8x128xf32>
    tpu.vector_store %arg13[%c0_155, %c0_156, %c0_157], %280 {strides = array<i32>} : memref<1x8x128xf32, #tpu.memory_space<vmem>>, vector<1x8x128xf32>,
    return
  }
  func.func @transform_0(%arg0: i32) -> (i32, i32, i32) {
    %c0_i32 = arith.constant 0 : i32
    %c0_i32_0 = arith.constant 0 : i32
    %c0_i32_1 = arith.constant 0 : i32
    return %arg0, %c0_i32, %c0_i32_0 : i32, i32, i32
  }
  func.func @transform_1(%arg0: i32) -> (i32, i32) {
    %c0_i32 = arith.constant 0 : i32
    %c0_i32_0 = arith.constant 0 : i32
    %c0_i32_1 = arith.constant 0 : i32
    return %c0_i32, %c0_i32_0 : i32, i32
  }
  func.func @transform_2(%arg0: i32) -> (i32, i32, i32) {
    %c0_i32 = arith.constant 0 : i32
    %c0_i32_0 = arith.constant 0 : i32
    %c0_i32_1 = arith.constant 0 : i32
    %c0_i32_2 = arith.constant 0 : i32
    return %c0_i32, %c0_i32_0, %c0_i32_1 : i32, i32, i32
  }
  func.func @transform_3(%arg0: i32) -> (i32, i32, i32) {
    %c0_i32 = arith.constant 0 : i32
    %c0_i32_0 = arith.constant 0 : i32
    %c0_i32_1 = arith.constant 0 : i32
    %c0_i32_2 = arith.constant 0 : i32
    return %c0_i32, %c0_i32_0, %c0_i32_1 : i32, i32, i32
  }
  func.func @transform_4(%arg0: i32) -> (i32, i32, i32) {
    %c0_i32 = arith.constant 0 : i32
    %c0_i32_0 = arith.constant 0 : i32
    %c0_i32_1 = arith.constant 0 : i32
    %c0_i32_2 = arith.constant 0 : i32
    return %c0_i32, %c0_i32_0, %c0_i32_1 : i32, i32, i32
  }
  func.func @transform_5(%arg0: i32) -> (i32, i32, i32) {
    %c0_i32 = arith.constant 0 : i32
    %c0_i32_0 = arith.constant 0 : i32
    %c0_i32_1 = arith.constant 0 : i32
    %c0_i32_2 = arith.constant 0 : i32
    return %c0_i32, %c0_i32_0, %c0_i32_1 : i32, i32, i32
  }
  func.func @transform_6(%arg0: i32) -> (i32, i32) {
    %c0_i32 = arith.constant 0 : i32
    %c0_i32_0 = arith.constant 0 : i32
    %c0_i32_1 = arith.constant 0 : i32
    return %c0_i32, %c0_i32_0 : i32, i32
  }
  func.func @transform_7(%arg0: i32) -> (i32, i32) {
    %c0_i32 = arith.constant 0 : i32
    %c0_i32_0 = arith.constant 0 : i32
    %c0_i32_1 = arith.constant 0 : i32
    return %c0_i32, %c0_i32_0 : i32, i32
  }
  func.func @transform_8(%arg0: i32) -> (i32, i32, i32) {
    %c0_i32 = arith.constant 0 : i32
    %c0_i32_0 = arith.constant 0 : i32
    %c0_i32_1 = arith.constant 0 : i32
    %c0_i32_2 = arith.constant 0 : i32
    return %c0_i32, %c0_i32_0, %c0_i32_1 : i32, i32, i32
  }
  func.func @transform_9(%arg0: i32) -> (i32, i32, i32) {
    %c0_i32 = arith.constant 0 : i32
    %c0_i32_0 = arith.constant 0 : i32
    %c0_i32_1 = arith.constant 0 : i32
    %c0_i32_2 = arith.constant 0 : i32
    return %c0_i32, %c0_i32_0, %c0_i32_1 : i32, i32, i32
  }
  func.func @transform_10(%arg0: i32) -> (i32, i32, i32) {
    %c0_i32 = arith.constant 0 : i32
    %c0_i32_0 = arith.constant 0 : i32
    %c0_i32_1 = arith.constant 0 : i32
    %c0_i32_2 = arith.constant 0 : i32
    return %c0_i32, %c0_i32_0, %c0_i32_1 : i32, i32, i32
  }
  func.func @transform_11(%arg0: i32) -> (i32, i32) {
    %c0_i32 = arith.constant 0 : i32
    %c0_i32_0 = arith.constant 0 : i32
    %c0_i32_1 = arith.constant 0 : i32
    return %c0_i32, %c0_i32_0 : i32, i32
  }
  func.func @transform_12(%arg0: i32) -> (i32, i32, i32) {
    %c0_i32 = arith.constant 0 : i32
    %c0_i32_0 = arith.constant 0 : i32
    %c0_i32_1 = arith.constant 0 : i32
    return %arg0, %c0_i32, %c0_i32_0 : i32, i32, i32
  }
}

</mosaic_0001>

<llo_original>
// kernel: tpu_custom_call.1
$region0: #{tpu_custom_call.1}
  #allocation0 [shape = 'u32[]', space=smem, size = 0x4, offset = 0x4, fixed_abs, tag = 'smem constant byte address 0x4 - core index']
  #allocation1 [shape = 'u32[72,128]{1,0:T(1,128)}', space=vmem, size = 0x9000, scoped, tag = 'internal scratch']
  %s0 = inlined_call_operand.vmem [shape: f32[2,3,128], index: 0, kind: input, shape index: {}]
  %s1 = inlined_call_operand.vmem [shape: bf16[32,3], index: 1, kind: input, shape index: {}]
  %s2 = inlined_call_operand.vmem [shape: bf16[3,32,32], index: 2, kind: input, shape index: {}]
  %s3 = inlined_call_operand.vmem [shape: bf16[4,40,32], index: 3, kind: input, shape index: {}]
  %s4 = inlined_call_operand.vmem [shape: bf16[4,32,32], index: 4, kind: input, shape index: {}]
  %s5 = inlined_call_operand.vmem [shape: bf16[8,64,32], index: 5, kind: input, shape index: {}]
  %s6 = inlined_call_operand.vmem [shape: bf16[64,64], index: 6, kind: input, shape index: {}]
  %s7 = inlined_call_operand.vmem [shape: bf16[8,64], index: 7, kind: input, shape index: {}]
  %s8 = inlined_call_operand.vmem [shape: f32[4,32,1], index: 8, kind: input, shape index: {}]
  %s9 = inlined_call_operand.vmem [shape: f32[8,32,1], index: 9, kind: input, shape index: {}]
  %s10 = inlined_call_operand.vmem [shape: f32[2,64,1], index: 10, kind: input, shape index: {}]
  %s11 = inlined_call_operand.vmem [shape: f32[8,1], index: 11, kind: input, shape index: {}]
  %s12 = inlined_call_operand.hbm [shape: f32[2,8,128], index: 12, kind: output, shape index: {}]
  %s13 = sld [smem:[#allocation0]]
  $region81: #{tpu_custom_call.1} parent=0
    _
  %s15 = ssub.s32 1, %s13
  %s16 = scalar_select 0, %s15, %s13
  $region1: #{tpu_custom_call.1} parent=0
    #allocation2 [shape = 'u8[8192]{0}', space=vmem, size = 0x2000, scoped, tag = 'output window, operand 0']
    #allocation3 [shape = 's32[2]{0}', space=sflag, size = 0x8, scoped, tag = 'scoped memory for tpu_custom_call.1']
    %17 = vsyncpa [#allocation3], 0
    %s18 = scalar_lea.sflag [#allocation3], 1
    %19 = vsyncpa %s18, 0
    loop: start=0, step=1, limit=4
    $region2: #{tpu_custom_call.1} parent=1 // loop_pre_header
      _
    $region3: #{tpu_custom_call.1} parent=1 // loop_header
      %s21 = sphi 0, %s25
      %p22 = scmp.ge.s32.totalorder %s21, 4
      %s31 = sphi 0, %s33
      %s34 = sphi 0, %s31
      %s35 = sphi 0, %s34
      %s51 = sphi 0, %s35
      %s55 = sphi 0, %s55
      %s57 = sphi 0, %s55
      %s58 = sphi 0, %s57
      %s72 = sphi 0, %s58
      %s76 = sphi 0, %s76
      %s78 = sphi 0, %s76
      %s79 = sphi 0, %s78
      %s93 = sphi 0, %s79
      %s97 = sphi 0, %s97
      %s99 = sphi 0, %s97
      %s100 = sphi 0, %s99
      %s114 = sphi 0, %s100
      %s118 = sphi 0, %s118
      %s120 = sphi 0, %s118
      %s121 = sphi 0, %s120
      %s135 = sphi 0, %s121
      %s139 = sphi 0, %s139
      %s141 = sphi 0, %s139
      %s142 = sphi 0, %s141
      %s156 = sphi 0, %s142
      %s160 = sphi 0, %s160
      %s162 = sphi 0, %s160
      %s163 = sphi 0, %s162
      %s177 = sphi 0, %s163
      %s181 = sphi 0, %s181
      %s183 = sphi 0, %s181
      %s184 = sphi 0, %s183
      %s198 = sphi 0, %s184
      %s202 = sphi 0, %s202
      %s204 = sphi 0, %s202
      %s205 = sphi 0, %s204
      %s219 = sphi 0, %s205
      %s223 = sphi 0, %s223
      %s225 = sphi 0, %s223
      %s226 = sphi 0, %s225
      %s240 = sphi 0, %s226
      %s244 = sphi 0, %s244
      %s246 = sphi 0, %s244
      %s247 = sphi 0, %s246
      %s261 = sphi 0, %s247
      %s265 = sphi 0, %s265
      %s267 = sphi 0, %s265
      %s268 = sphi 0, %s267
      %s282 = sphi 0, %s268
      %s288 = sphi 0, %s290
      %s291 = sphi 0, %s288
      %s292 = sphi 0, %s291
      %s308 = sphi 0, %s292
    $region4: #{tpu_custom_call.1} parent=1 // loop_header_branch
      %24 = sbr.rel (%p22) target = $region8
    $region5: #{tpu_custom_call.1} parent=1 // loop_body
      %s26 = ssub.s32 %s21, 1
      %s27 = ssub.s32 %s21, 2
      %s28 = sadd.s32 %s21, 1
      %s29 = ssub.s32 %s21, %s28
      %p30 = scmp.eq.s32.totalorder %s29, 0
      %s32 = sadd.s32 %s31, 1
      %s33 = scalar_select %p30, %s31, %s32
      %p36 = pneg %p30
      %p37 = scmp.eq.s32.totalorder %s21, 1
      %p38 = por %p36, %p37
      %p39 = scmp.ne.s32.totalorder %s31, %s34
      %p40 = scmp.eq.s32.totalorder %s21, 0
      %p41 = por %p39, %p40
      %p42 = scmp.ne.s32.totalorder %s31, %s34
      %p43 = scmp.eq.s32.totalorder %s26, 1
      %p44 = por %p42, %p43
      %p45 = scmp.ne.s32.totalorder %s34, %s35
      %p46 = scmp.eq.s32.totalorder %s26, 0
      %p47 = por %p45, %p46
      %p48 = scmp.ne.s32.totalorder %s34, %s35
      %p49 = scmp.eq.s32.totalorder %s27, 1
      %p50 = por %p48, %p49
      %p52 = scmp.ne.s32.totalorder %s35, %s51
      %p53 = scmp.eq.s32.totalorder %s27, 0
      %p54 = por %p52, %p53
      %s56 = sadd.s32 %s55, 1
      %p59 = scmp.eq.s32.totalorder %s21, 1
      %p60 = scmp.ne.s32.totalorder %s55, %s57
      %p61 = scmp.eq.s32.totalorder %s21, 0
      %p62 = por %p60, %p61
      %p63 = scmp.ne.s32.totalorder %s55, %s57
      %p64 = scmp.eq.s32.totalorder %s26, 1
      %p65 = por %p63, %p64
      %p66 = scmp.ne.s32.totalorder %s57, %s58
      %p67 = scmp.eq.s32.totalorder %s26, 0
      %p68 = por %p66, %p67
      %p69 = scmp.ne.s32.totalorder %s57, %s58
      %p70 = scmp.eq.s32.totalorder %s27, 1
      %p71 = por %p69, %p70
      %p73 = scmp.ne.s32.totalorder %s58, %s72
      %p74 = scmp.eq.s32.totalorder %s27, 0
      %p75 = por %p73, %p74
      %s77 = sadd.s32 %s76, 1
      %p80 = scmp.eq.s32.totalorder %s21, 1
      %p81 = scmp.ne.s32.totalorder %s76, %s78
      %p82 = scmp.eq.s32.totalorder %s21, 0
      %p83 = por %p81, %p82
      %p84 = scmp.ne.s32.totalorder %s76, %s78
      %p85 = scmp.eq.s32.totalorder %s26, 1
      %p86 = por %p84, %p85
      %p87 = scmp.ne.s32.totalorder %s78, %s79
      %p88 = scmp.eq.s32.totalorder %s26, 0
      %p89 = por %p87, %p88
      %p90 = scmp.ne.s32.totalorder %s78, %s79
      %p91 = scmp.eq.s32.totalorder %s27, 1
      %p92 = por %p90, %p91
      %p94 = scmp.ne.s32.totalorder %s79, %s93
      %p95 = scmp.eq.s32.totalorder %s27, 0
      %p96 = por %p94, %p95
      %s98 = sadd.s32 %s97, 1
      %p101 = scmp.eq.s32.totalorder %s21, 1
      %p102 = scmp.ne.s32.totalorder %s97, %s99
      %p103 = scmp.eq.s32.totalorder %s21, 0
      %p104 = por %p102, %p103
      %p105 = scmp.ne.s32.totalorder %s97, %s99
      %p106 = scmp.eq.s32.totalorder %s26, 1
      %p107 = por %p105, %p106
      %p108 = scmp.ne.s32.totalorder %s99, %s100
      %p109 = scmp.eq.s32.totalorder %s26, 0
      %p110 = por %p108, %p109
      %p111 = scmp.ne.s32.totalorder %s99, %s100
      %p112 = scmp.eq.s32.totalorder %s27, 1
      %p113 = por %p111, %p112
      %p115 = scmp.ne.s32.totalorder %s100, %s114
      %p116 = scmp.eq.s32.totalorder %s27, 0
      %p117 = por %p115, %p116
      %s119 = sadd.s32 %s118, 1
      %p122 = scmp.eq.s32.totalorder %s21, 1
      %p123 = scmp.ne.s32.totalorder %s118, %s120
      %p124 = scmp.eq.s32.totalorder %s21, 0
      %p125 = por %p123, %p124
      %p126 = scmp.ne.s32.totalorder %s118, %s120
      %p127 = scmp.eq.s32.totalorder %s26, 1
      %p128 = por %p126, %p127
      %p129 = scmp.ne.s32.totalorder %s120, %s121
      %p130 = scmp.eq.s32.totalorder %s26, 0
      %p131 = por %p129, %p130
      %p132 = scmp.ne.s32.totalorder %s120, %s121
      %p133 = scmp.eq.s32.totalorder %s27, 1
      %p134 = por %p132, %p133
      %p136 = scmp.ne.s32.totalorder %s121, %s135
      %p137 = scmp.eq.s32.totalorder %s27, 0
      %p138 = por %p136, %p137
      %s140 = sadd.s32 %s139, 1
      %p143 = scmp.eq.s32.totalorder %s21, 1
      %p144 = scmp.ne.s32.totalorder %s139, %s141
      %p145 = scmp.eq.s32.totalorder %s21, 0
      %p146 = por %p144, %p145
      %p147 = scmp.ne.s32.totalorder %s139, %s141
      %p148 = scmp.eq.s32.totalorder %s26, 1
      %p149 = por %p147, %p148
      %p150 = scmp.ne.s32.totalorder %s141, %s142
      %p151 = scmp.eq.s32.totalorder %s26, 0
      %p152 = por %p150, %p151
      %p153 = scmp.ne.s32.totalorder %s141, %s142
      %p154 = scmp.eq.s32.totalorder %s27, 1
      %p155 = por %p153, %p154
      %p157 = scmp.ne.s32.totalorder %s142, %s156
      %p158 = scmp.eq.s32.totalorder %s27, 0
      %p159 = por %p157, %p158
      %s161 = sadd.s32 %s160, 1
      %p164 = scmp.eq.s32.totalorder %s21, 1
      %p165 = scmp.ne.s32.totalorder %s160, %s162
      %p166 = scmp.eq.s32.totalorder %s21, 0
      %p167 = por %p165, %p166
      %p168 = scmp.ne.s32.totalorder %s160, %s162
      %p169 = scmp.eq.s32.totalorder %s26, 1
      %p170 = por %p168, %p169
      %p171 = scmp.ne.s32.totalorder %s162, %s163
      %p172 = scmp.eq.s32.totalorder %s26, 0
      %p173 = por %p171, %p172
      %p174 = scmp.ne.s32.totalorder %s162, %s163
      %p175 = scmp.eq.s32.totalorder %s27, 1
      %p176 = por %p174, %p175
      %p178 = scmp.ne.s32.totalorder %s163, %s177
      %p179 = scmp.eq.s32.totalorder %s27, 0
      %p180 = por %p178, %p179
      %s182 = sadd.s32 %s181, 1
      %p185 = scmp.eq.s32.totalorder %s21, 1
      %p186 = scmp.ne.s32.totalorder %s181, %s183
      %p187 = scmp.eq.s32.totalorder %s21, 0
      %p188 = por %p186, %p187
      %p189 = scmp.ne.s32.totalorder %s181, %s183
      %p190 = scmp.eq.s32.totalorder %s26, 1
      %p191 = por %p189, %p190
      %p192 = scmp.ne.s32.totalorder %s183, %s184
      %p193 = scmp.eq.s32.totalorder %s26, 0
      %p194 = por %p192, %p193
      %p195 = scmp.ne.s32.totalorder %s183, %s184
      %p196 = scmp.eq.s32.totalorder %s27, 1
      %p197 = por %p195, %p196
      %p199 = scmp.ne.s32.totalorder %s184, %s198
      %p200 = scmp.eq.s32.totalorder %s27, 0
      %p201 = por %p199, %p200
      %s203 = sadd.s32 %s202, 1
      %p206 = scmp.eq.s32.totalorder %s21, 1
      %p207 = scmp.ne.s32.totalorder %s202, %s204
      %p208 = scmp.eq.s32.totalorder %s21, 0
      %p209 = por %p207, %p208
      %p210 = scmp.ne.s32.totalorder %s202, %s204
      %p211 = scmp.eq.s32.totalorder %s26, 1
      %p212 = por %p210, %p211
      %p213 = scmp.ne.s32.totalorder %s204, %s205
      %p214 = scmp.eq.s32.totalorder %s26, 0
      %p215 = por %p213, %p214
      %p216 = scmp.ne.s32.totalorder %s204, %s205
      %p217 = scmp.eq.s32.totalorder %s27, 1
      %p218 = por %p216, %p217
      %p220 = scmp.ne.s32.totalorder %s205, %s219
      %p221 = scmp.eq.s32.totalorder %s27, 0
      %p222 = por %p220, %p221
      %s224 = sadd.s32 %s223, 1
      %p227 = scmp.eq.s32.totalorder %s21, 1
      %p228 = scmp.ne.s32.totalorder %s223, %s225
      %p229 = scmp.eq.s32.totalorder %s21, 0
      %p230 = por %p228, %p229
      %p231 = scmp.ne.s32.totalorder %s223, %s225
      %p232 = scmp.eq.s32.totalorder %s26, 1
      %p233 = por %p231, %p232
      %p234 = scmp.ne.s32.totalorder %s225, %s226
      %p235 = scmp.eq.s32.totalorder %s26, 0
      %p236 = por %p234, %p235
      %p237 = scmp.ne.s32.totalorder %s225, %s226
      %p238 = scmp.eq.s32.totalorder %s27, 1
      %p239 = por %p237, %p238
      %p241 = scmp.ne.s32.totalorder %s226, %s240
      %p242 = scmp.eq.s32.totalorder %s27, 0
      %p243 = por %p241, %p242
      %s245 = sadd.s32 %s244, 1
      %p248 = scmp.eq.s32.totalorder %s21, 1
      %p249 = scmp.ne.s32.totalorder %s244, %s246
      %p250 = scmp.eq.s32.totalorder %s21, 0
      %p251 = por %p249, %p250
      %p252 = scmp.ne.s32.totalorder %s244, %s246
      %p253 = scmp.eq.s32.totalorder %s26, 1
      %p254 = por %p252, %p253
      %p255 = scmp.ne.s32.totalorder %s246, %s247
      %p256 = scmp.eq.s32.totalorder %s26, 0
      %p257 = por %p255, %p256
      %p258 = scmp.ne.s32.totalorder %s246, %s247
      %p259 = scmp.eq.s32.totalorder %s27, 1
      %p260 = por %p258, %p259
      %p262 = scmp.ne.s32.totalorder %s247, %s261
      %p263 = scmp.eq.s32.totalorder %s27, 0
      %p264 = por %p262, %p263
      %s266 = sadd.s32 %s265, 1
      %p269 = scmp.eq.s32.totalorder %s21, 1
      %p270 = scmp.ne.s32.totalorder %s265, %s267
      %p271 = scmp.eq.s32.totalorder %s21, 0
      %p272 = por %p270, %p271
      %p273 = scmp.ne.s32.totalorder %s265, %s267
      %p274 = scmp.eq.s32.totalorder %s26, 1
      %p275 = por %p273, %p274
      %p276 = scmp.ne.s32.totalorder %s267, %s268
      %p277 = scmp.eq.s32.totalorder %s26, 0
      %p278 = por %p276, %p277
      %p279 = scmp.ne.s32.totalorder %s267, %s268
      %p280 = scmp.eq.s32.totalorder %s27, 1
      %p281 = por %p279, %p280
      %p283 = scmp.ne.s32.totalorder %s268, %s282
      %p284 = scmp.eq.s32.totalorder %s27, 0
      %p285 = por %p283, %p284
      %s286 = ssub.s32 %s21, %s28
      %p287 = scmp.eq.s32.totalorder %s286, 0
      %s289 = sadd.s32 %s288, 1
      %s290 = scalar_select %p287, %s288, %s289
      %p293 = pneg %p287
      %p294 = scmp.eq.s32.totalorder %s21, 1
      %p295 = por %p293, %p294
      %p296 = scmp.ne.s32.totalorder %s288, %s291
      %p297 = scmp.eq.s32.totalorder %s21, 0
      %p298 = por %p296, %p297
      %p299 = scmp.ne.s32.totalorder %s288, %s291
      %p300 = scmp.eq.s32.totalorder %s26, 1
      %p301 = por %p299, %p300
      %p302 = scmp.ne.s32.totalorder %s291, %s292
      %p303 = scmp.eq.s32.totalorder %s26, 0
      %p304 = por %p302, %p303
      %p305 = scmp.ne.s32.totalorder %s291, %s292
      %p306 = scmp.eq.s32.totalorder %s27, 1
      %p307 = por %p305, %p306
      %p309 = scmp.ne.s32.totalorder %s292, %s308
      %p310 = scmp.eq.s32.totalorder %s27, 0
      %p311 = por %p309, %p310
      %p312 = scmp.le.s32.totalorder 1, %s21
      %p313 = scmp.lt.s32.totalorder %s21, 3
      %p314 = pnand %p312, %p313
      %p315 = pneg %p314
      // Predicated region
      $region9: #{tpu_custom_call.1} parent=5 // pred_check
        _
      $region10: #{tpu_custom_call.1} parent=5 // pred_check_branch
        %317 = sbr.rel (%p314) target = $region12
      $region11: #{tpu_custom_call.1} parent=5 // pred_region
        %s318 = ssub.s32 %s21, 1
        // Predicated region
        $region13: #{tpu_custom_call.1} parent=11 // pred_check
          %p319 = pneg %p68
        $region14: #{tpu_custom_call.1} parent=11 // pred_check_branch
          %321 = sbr.rel (%p319) target = $region16
        $region15: #{tpu_custom_call.1} parent=11 // pred_region
          _
        $region16: #{tpu_custom_call.1} parent=11 // pred_fallthru
          _
        // Predicated region
        $region17: #{tpu_custom_call.1} parent=11 // pred_check
          %p322 = pneg %p89
        $region18: #{tpu_custom_call.1} parent=11 // pred_check_branch
          %324 = sbr.rel (%p322) target = $region20
        $region19: #{tpu_custom_call.1} parent=11 // pred_region
          _
        $region20: #{tpu_custom_call.1} parent=11 // pred_fallthru
          _
        // Predicated region
        $region21: #{tpu_custom_call.1} parent=11 // pred_check
          %p325 = pneg %p110
        $region22: #{tpu_custom_call.1} parent=11 // pred_check_branch
          %327 = sbr.rel (%p325) target = $region24
        $region23: #{tpu_custom_call.1} parent=11 // pred_region
          _
        $region24: #{tpu_custom_call.1} parent=11 // pred_fallthru
          _
        // Predicated region
        $region25: #{tpu_custom_call.1} parent=11 // pred_check
          %p328 = pneg %p131
        $region26: #{tpu_custom_call.1} parent=11 // pred_check_branch
          %330 = sbr.rel (%p328) target = $region28
        $region27: #{tpu_custom_call.1} parent=11 // pred_region
          _
        $region28: #{tpu_custom_call.1} parent=11 // pred_fallthru
          _
        // Predicated region
        $region29: #{tpu_custom_call.1} parent=11 // pred_check
          %p331 = pneg %p152
        $region30: #{tpu_custom_call.1} parent=11 // pred_check_branch
          %333 = sbr.rel (%p331) target = $region32
        $region31: #{tpu_custom_call.1} parent=11 // pred_region
          _
        $region32: #{tpu_custom_call.1} parent=11 // pred_fallthru
          _
        // Predicated region
        $region33: #{tpu_custom_call.1} parent=11 // pred_check
          %p334 = pneg %p173
        $region34: #{tpu_custom_call.1} parent=11 // pred_check_branch
          %336 = sbr.rel (%p334) target = $region36
        $region35: #{tpu_custom_call.1} parent=11 // pred_region
          _
        $region36: #{tpu_custom_call.1} parent=11 // pred_fallthru
          _
        // Predicated region
        $region37: #{tpu_custom_call.1} parent=11 // pred_check
          %p337 = pneg %p194
        $region38: #{tpu_custom_call.1} parent=11 // pred_check_branch
          %339 = sbr.rel (%p337) target = $region40
        $region39: #{tpu_custom_call.1} parent=11 // pred_region
          _
        $region40: #{tpu_custom_call.1} parent=11 // pred_fallthru
          _
        // Predicated region
        $region41: #{tpu_custom_call.1} parent=11 // pred_check
          %p340 = pneg %p215
        $region42: #{tpu_custom_call.1} parent=11 // pred_check_branch
          %342 = sbr.rel (%p340) target = $region44
        $region43: #{tpu_custom_call.1} parent=11 // pred_region
          _
        $region44: #{tpu_custom_call.1} parent=11 // pred_fallthru
          _
        // Predicated region
        $region45: #{tpu_custom_call.1} parent=11 // pred_check
          %p343 = pneg %p236
        $region46: #{tpu_custom_call.1} parent=11 // pred_check_branch
          %345 = sbr.rel (%p343) target = $region48
        $region47: #{tpu_custom_call.1} parent=11 // pred_region
          _
        $region48: #{tpu_custom_call.1} parent=11 // pred_fallthru
          _
        // Predicated region
        $region49: #{tpu_custom_call.1} parent=11 // pred_check
          %p346 = pneg %p257
        $region50: #{tpu_custom_call.1} parent=11 // pred_check_branch
          %348 = sbr.rel (%p346) target = $region52
        $region51: #{tpu_custom_call.1} parent=11 // pred_region
          _
        $region52: #{tpu_custom_call.1} parent=11 // pred_fallthru
          _
        // Predicated region
        $region53: #{tpu_custom_call.1} parent=11 // pred_check
          %p349 = pneg %p278
        $region54: #{tpu_custom_call.1} parent=11 // pred_check_branch
          %351 = sbr.rel (%p349) target = $region56
        $region55: #{tpu_custom_call.1} parent=11 // pred_region
          _
        $region56: #{tpu_custom_call.1} parent=11 // pred_fallthru
          _
      $region12: #{tpu_custom_call.1} parent=5 // pred_fallthru
        _
      %p352 = scmp.lt.s32.totalorder %s21, 2
      // Predicated region
      $region57: #{tpu_custom_call.1} parent=5 // pred_check
        %p353 = pneg %p352
      $region58: #{tpu_custom_call.1} parent=5 // pred_check_branch
        %355 = sbr.rel (%p353) target = $region60
      $region59: #{tpu_custom_call.1} parent=5 // pred_region
        // Predicated region
        $region61: #{tpu_custom_call.1} parent=59 // pred_check
          %p356 = pneg %p41
        $region62: #{tpu_custom_call.1} parent=59 // pred_check_branch
          %358 = sbr.rel (%p356) target = $region64
        $region63: #{tpu_custom_call.1} parent=59 // pred_region
          %p359 = scmp.lt.s32.totalorder %s21, 1
          %s360 = scalar_select %p359, %s21, 1
          %s361 = smul.addr %s360, 4
          %s362 = scalar_lea.vmem %s0, %s361
        $region64: #{tpu_custom_call.1} parent=59 // pred_fallthru
          _
      $region60: #{tpu_custom_call.1} parent=5 // pred_fallthru
        _
      %p363 = scmp.le.s32.totalorder 1, %s21
      %p364 = scmp.lt.s32.totalorder %s21, 3
      %p365 = pnand %p363, %p364
      %p366 = pneg %p365
      // Predicated region
      $region65: #{tpu_custom_call.1} parent=5 // pred_check
        _
      $region66: #{tpu_custom_call.1} parent=5 // pred_check_branch
        %368 = sbr.rel (%p365) target = $region68
      $region67: #{tpu_custom_call.1} parent=5 // pred_region
        %s369 = ssub.s32 %s21, 1
        %p370 = scmp.lt.s32.totalorder %s26, 1
        %s371 = scalar_select %p370, %s26, 1
        %s372 = smul.addr %s371, 4
        %s373 = scalar_lea.vmem %s0, %s372
        %p374 = pneg %p47
        %p375 = pneg %p44
        %p376 = pneg %p68
        %p377 = pneg %p65
        %p378 = pneg %p89
        %p379 = pneg %p86
        %p380 = pneg %p110
        %p381 = pneg %p107
        %p382 = pneg %p131
        %p383 = pneg %p128
        %p384 = pneg %p152
        %p385 = pneg %p149
        %p386 = pneg %p173
        %p387 = pneg %p170
        %p388 = pneg %p194
        %p389 = pneg %p191
        %p390 = pneg %p215
        %p391 = pneg %p212
        %p392 = pneg %p236
        %p393 = pneg %p233
        %p394 = pneg %p257
        %p395 = pneg %p254
        %p396 = pneg %p278
        %p397 = pneg %p275
        %p398 = pneg %p304
        %p399 = pneg %p301
        %s400 = sand.u32 %s291, 1
        %s401 = scalar_lea.sflag [#allocation3], %s400
        %s402 = sand.u32 %s291, 1
        %s403 = smul.addr %s402, 8
        %s404 = scalar_lea.vmem [#allocation2], %s403
        %p405 = scmp.lt.s32.totalorder %s26, 1
        %s406 = scalar_select %p405, %s26, 1
        %s407 = smul.addr %s406, 4
        %s408 = scalar_lea.vmem %s0, %s407
        %v410 = vld [vmem:[%s408] sm:$0x7]
        %v411 = vld [vmem:[%s1] sm:$0xf]
        %v412 = vld [vmem:[%s1 + $0x4] sm:$0xf]
        %v413 = vld [vmem:[%s1 + $0x8] sm:$0xf]
        %v414 = vld [vmem:[%s1 + $0xc] sm:$0xf]
        %v415 = vpack.c.bf16 %v410, %v410
        %v416 = vld [vmem:[%s8] sm:$0xff]
        %v417 = vld [vmem:[%s8 + $0x8] sm:$0xff]
        %v418 = vld [vmem:[%s8 + $0x10] sm:$0xff]
        %v419 = vld [vmem:[%s8 + $0x18] sm:$0xff]
        %421 = vset.pattern.permute.xlu0 0
        %422 = vperm.xlu0 %421, %v416
        %v423 = vpop.permute.xlu0 %422
        %426 = vset.pattern.permute.xlu0 0
        %427 = vperm.xlu0 %426, %v417
        %v428 = vpop.permute.xlu0 %427
        %431 = vset.pattern.permute.xlu0 0
        %432 = vperm.xlu0 %431, %v418
        %v433 = vpop.permute.xlu0 %432
        %436 = vset.pattern.permute.xlu0 0
        %437 = vperm.xlu0 %436, %v419
        %v438 = vpop.permute.xlu0 %437
        %v444 = vunpack.c.l.b16 %v411
        %v445 = vunpack.c.l.b16 %v412
        %v446 = vunpack.c.l.b16 %v413
        %v447 = vunpack.c.l.b16 %v414
        %v448 = vpack.c.b16 %v445, %v444
        %v449 = vpack.c.b16 %v447, %v446
        %vm450 = vcmask 23552
        %v452 = vsel %vm450, %v448, 0
        %v455 = vsel %vm450, %v449, 0
        %vm457 = vcmask 1040384
        %vm458 = vcmask 1041408
        %v459 = vsel %vm457, 4294967295, 65535
        %v460 = vsel %vm458, %v459, 0
        %v462 = vand.u32 %v415, %v460
        %464 = vmatpush.bf16.msra.mxu0 0
        %465 = vmatpush.bf16.msra.mxu0 0
        %466 = vmatpush.bf16.msra.mxu0 0
        %467 = vmatpush.bf16.msra.mxu0 0
        %468 = vmatpush.bf16.msra.mxu0 0
        %469 = vmatpush.bf16.msra.mxu0 0
        %470 = vmatpush.bf16.msra.mxu0 0
        %471 = vmatpush.bf16.msra.mxu0 %v462
        %472 = vmatmul.bf16.gmra.mxu0 %v452
        %v473 = vpop.f32.mrf.mxu0
        %v474 = vadd.f32 %v423, %v473
        %v475 = vpop.f32.mrf.mxu0
        %v476 = vadd.f32 %v428, %v475
        %477 = vmatmul.bf16.gmra.mxu0 %v455
        %v478 = vpop.f32.mrf.mxu0
        %v479 = vadd.f32 %v433, %v478
        %v480 = vpop.f32.mrf.mxu0
        %v481 = vadd.f32 %v438, %v480
        %482 = vdwg.mxu0
        %v483 = vmax.f32 %v474, 0.0
        %v484 = vmax.f32 %v476, 0.0
        %v485 = vmax.f32 %v479, 0.0
        %v486 = vmax.f32 %v481, 0.0
        %v487 = vld [vmem:[%s2] sm:$0xf]
        %v488 = vld [vmem:[%s2 + $0x4] sm:$0xf]
        %v489 = vld [vmem:[%s2 + $0x8] sm:$0xf]
        %v490 = vld [vmem:[%s2 + $0xc] sm:$0xf]
        %v491 = vpack.c.bf16 %v484, %v483
        %v492 = vpack.c.bf16 %v486, %v485
        %s493 = scalar_lea.vmem %s8, 32
        %v494 = vld [vmem:[%s493] sm:$0xff]
        %v495 = vld [vmem:[%s493 + $0x8] sm:$0xff]
        %v496 = vld [vmem:[%s493 + $0x10] sm:$0xff]
        %v497 = vld [vmem:[%s493 + $0x18] sm:$0xff]
        %499 = vset.pattern.permute.xlu0 0
        %500 = vperm.xlu0 %499, %v494
        %v501 = vpop.permute.xlu0 %500
        %504 = vset.pattern.permute.xlu0 0
        %505 = vperm.xlu0 %504, %v495
        %v506 = vpop.permute.xlu0 %505
        %509 = vset.pattern.permute.xlu0 0
        %510 = vperm.xlu0 %509, %v496
        %v511 = vpop.permute.xlu0 %510
        %514 = vset.pattern.permute.xlu0 0
        %515 = vperm.xlu0 %514, %v497
        %v516 = vpop.permute.xlu0 %515
        %v522 = vunpack.c.l.b16 %v487
        %v523 = vunpack.c.l.b16 %v488
        %v524 = vunpack.c.l.b16 %v489
        %v525 = vunpack.c.l.b16 %v490
        %v526 = vpack.c.b16 %v523, %v522
        %v527 = vpack.c.b16 %v525, %v524
        %vm528 = vcmask 261120
        %v530 = vsel %vm528, %v526, 0
        %v533 = vsel %vm528, %v527, 0
        %535 = vmatpush.bf16.msra.mxu0 0
        %536 = vmatpush.bf16.msra.mxu0 0
        %537 = vmatpush.bf16.msra.mxu0 0
        %538 = vmatpush.bf16.msra.mxu0 0
        %539 = vmatpush.bf16.msra.mxu0 0
        %540 = vmatpush.bf16.msra.mxu0 0
        %541 = vmatpush.bf16.msra.mxu0 %v492
        %542 = vmatpush.bf16.msra.mxu0 %v491
        %543 = vmatmul.bf16.gmra.mxu0 %v530
        %v544 = vpop.f32.mrf.mxu0
        %v545 = vadd.f32 %v501, %v544
        %v546 = vpop.f32.mrf.mxu0
        %v547 = vadd.f32 %v506, %v546
        %548 = vmatmul.bf16.gmra.mxu0 %v533
        %v549 = vpop.f32.mrf.mxu0
        %v550 = vadd.f32 %v511, %v549
        %v551 = vpop.f32.mrf.mxu0
        %v552 = vadd.f32 %v516, %v551
        %553 = vdwg.mxu0
        %v554 = vmax.f32 %v545, 0.0
        %v555 = vmax.f32 %v547, 0.0
        %v556 = vmax.f32 %v550, 0.0
        %v557 = vmax.f32 %v552, 0.0
        %s558 = scalar_lea.vmem %s2, 16
        %v559 = vld [vmem:[%s558] sm:$0xf]
        %v560 = vld [vmem:[%s558 + $0x4] sm:$0xf]
        %v561 = vld [vmem:[%s558 + $0x8] sm:$0xf]
        %v562 = vld [vmem:[%s558 + $0xc] sm:$0xf]
        %v563 = vpack.c.bf16 %v555, %v554
        %v564 = vpack.c.bf16 %v557, %v556
        %s565 = scalar_lea.vmem %s8, 64
        %v566 = vld [vmem:[%s565] sm:$0xff]
        %v567 = vld [vmem:[%s565 + $0x8] sm:$0xff]
        %v568 = vld [vmem:[%s565 + $0x10] sm:$0xff]
        %v569 = vld [vmem:[%s565 + $0x18] sm:$0xff]
        %571 = vset.pattern.permute.xlu0 0
        %572 = vperm.xlu0 %571, %v566
        %v573 = vpop.permute.xlu0 %572
        %576 = vset.pattern.permute.xlu0 0
        %577 = vperm.xlu0 %576, %v567
        %v578 = vpop.permute.xlu0 %577
        %581 = vset.pattern.permute.xlu0 0
        %582 = vperm.xlu0 %581, %v568
        %v583 = vpop.permute.xlu0 %582
        %586 = vset.pattern.permute.xlu0 0
        %587 = vperm.xlu0 %586, %v569
        %v588 = vpop.permute.xlu0 %587
        %v594 = vunpack.c.l.b16 %v559
        %v595 = vunpack.c.l.b16 %v560
        %v596 = vunpack.c.l.b16 %v561
        %v597 = vunpack.c.l.b16 %v562
        %v598 = vpack.c.b16 %v595, %v594
        %v599 = vpack.c.b16 %v597, %v596
        %v601 = vsel %vm528, %v598, 0
        %v604 = vsel %vm528, %v599, 0
        %606 = vmatpush.bf16.msra.mxu0 0
        %607 = vmatpush.bf16.msra.mxu0 0
        %608 = vmatpush.bf16.msra.mxu0 0
        %609 = vmatpush.bf16.msra.mxu0 0
        %610 = vmatpush.bf16.msra.mxu0 0
        %611 = vmatpush.bf16.msra.mxu0 0
        %612 = vmatpush.bf16.msra.mxu0 %v564
        %613 = vmatpush.bf16.msra.mxu0 %v563
        %614 = vmatmul.bf16.gmra.mxu0 %v601
        %v615 = vpop.f32.mrf.mxu0
        %v616 = vadd.f32 %v573, %v615
        %v617 = vpop.f32.mrf.mxu0
        %v618 = vadd.f32 %v578, %v617
        %619 = vmatmul.bf16.gmra.mxu0 %v604
        %v620 = vpop.f32.mrf.mxu0
        %v621 = vadd.f32 %v583, %v620
        %v622 = vpop.f32.mrf.mxu0
        %v623 = vadd.f32 %v588, %v622
        %624 = vdwg.mxu0
        %v625 = vmax.f32 %v616, 0.0
        %v626 = vmax.f32 %v618, 0.0
        %v627 = vmax.f32 %v621, 0.0
        %v628 = vmax.f32 %v623, 0.0
        %s629 = scalar_lea.vmem %s2, 32
        %v630 = vld [vmem:[%s629] sm:$0xf]
        %v631 = vld [vmem:[%s629 + $0x4] sm:$0xf]
        %v632 = vld [vmem:[%s629 + $0x8] sm:$0xf]
        %v633 = vld [vmem:[%s629 + $0xc] sm:$0xf]
        %v634 = vpack.c.bf16 %v626, %v625
        %v635 = vpack.c.bf16 %v628, %v627
        %s636 = scalar_lea.vmem %s8, 96
        %v637 = vld [vmem:[%s636] sm:$0xff]
        %v638 = vld [vmem:[%s636 + $0x8] sm:$0xff]
        %v639 = vld [vmem:[%s636 + $0x10] sm:$0xff]
        %v640 = vld [vmem:[%s636 + $0x18] sm:$0xff]
        %642 = vset.pattern.permute.xlu0 0
        %643 = vperm.xlu0 %642, %v637
        %v644 = vpop.permute.xlu0 %643
        %647 = vset.pattern.permute.xlu0 0
        %648 = vperm.xlu0 %647, %v638
        %v649 = vpop.permute.xlu0 %648
        %652 = vset.pattern.permute.xlu0 0
        %653 = vperm.xlu0 %652, %v639
        %v654 = vpop.permute.xlu0 %653
        %657 = vset.pattern.permute.xlu0 0
        %658 = vperm.xlu0 %657, %v640
        %v659 = vpop.permute.xlu0 %658
        %v665 = vunpack.c.l.b16 %v630
        %v666 = vunpack.c.l.b16 %v631
        %v667 = vunpack.c.l.b16 %v632
        %v668 = vunpack.c.l.b16 %v633
        %v669 = vpack.c.b16 %v666, %v665
        %v670 = vpack.c.b16 %v668, %v667
        %v672 = vsel %vm528, %v669, 0
        %v675 = vsel %vm528, %v670, 0
        %677 = vmatpush.bf16.msra.mxu0 0
        %678 = vmatpush.bf16.msra.mxu0 0
        %679 = vmatpush.bf16.msra.mxu0 0
        %680 = vmatpush.bf16.msra.mxu0 0
        %681 = vmatpush.bf16.msra.mxu0 0
        %682 = vmatpush.bf16.msra.mxu0 0
        %683 = vmatpush.bf16.msra.mxu0 %v635
        %684 = vmatpush.bf16.msra.mxu0 %v634
        %685 = vmatmul.bf16.gmra.mxu0 %v672
        %v686 = vpop.f32.mrf.mxu0
        %v687 = vadd.f32 %v644, %v686
        %v688 = vpop.f32.mrf.mxu0
        %v689 = vadd.f32 %v649, %v688
        %690 = vmatmul.bf16.gmra.mxu0 %v675
        %v691 = vpop.f32.mrf.mxu0
        %v692 = vadd.f32 %v654, %v691
        %v693 = vpop.f32.mrf.mxu0
        %v694 = vadd.f32 %v659, %v693
        %695 = vdwg.mxu0
        %v696 = vmax.f32 %v687, 0.0
        %v697 = vmax.f32 %v689, 0.0
        %v698 = vmax.f32 %v692, 0.0
        %v699 = vmax.f32 %v694, 0.0
        %v700 = vld [vmem:[%s3] sm:$0xf]
        %v701 = vld [vmem:[%s3 + $0x4] sm:$0xf]
        %v702 = vld [vmem:[%s3 + $0x8] sm:$0xf]
        %v703 = vld [vmem:[%s3 + $0xc] sm:$0xf]
        %v704 = vld [vmem:[%s3 + $0x10] sm:$0xf]
        %v705 = vpack.c.bf16 %v697, %v696
        %v706 = vpack.c.bf16 %v699, %v698
        %v712 = vunpack.c.l.b16 %v700
        %v713 = vunpack.c.l.b16 %v701
        %v714 = vunpack.c.l.b16 %v702
        %v715 = vunpack.c.l.b16 %v703
        %v716 = vunpack.c.l.b16 %v704
        %v717 = vpack.c.b16 %v713, %v712
        %v718 = vpack.c.b16 %v715, %v714
        %v719 = vpack.c.b16 %v716, %v716
        %v721 = vsel %vm528, %v717, 0
        %v724 = vsel %vm528, %v718, 0
        %v727 = vsel %vm528, %v719, 0
        %729 = vmatpush.bf16.msra.mxu0 0
        %730 = vmatpush.bf16.msra.mxu0 0
        %731 = vmatpush.bf16.msra.mxu0 0
        %732 = vmatpush.bf16.msra.mxu0 0
        %733 = vmatpush.bf16.msra.mxu0 0
        %734 = vmatpush.bf16.msra.mxu0 0
        %735 = vmatpush.bf16.msra.mxu0 %v706
        %736 = vmatpush.bf16.msra.mxu0 %v705
        %737 = vmatmul.bf16.gmra.mxu0 %v721
        %v738 = vpop.f32.mrf.mxu0
        %v739 = vadd.f32 0.0, %v738
        %v740 = vpop.f32.mrf.mxu0
        %v741 = vadd.f32 0.0, %v740
        %742 = vmatmul.bf16.gmra.mxu0 %v724
        %v743 = vpop.f32.mrf.mxu0
        %v744 = vadd.f32 0.0, %v743
        %v745 = vpop.f32.mrf.mxu0
        %v746 = vadd.f32 0.0, %v745
        %747 = vmatmul.bf16.gmra.mxu0 %v727
        %v748 = vpop.f32.mrf.mxu0
        %v749 = vadd.f32 0.0, %v748
        %v750 = vpop.f32.mrf.mxu0
        %751 = vdwg.mxu0
        %v752 = vld [vmem:[%s9] sm:$0xff]
        %v753 = vld [vmem:[%s9 + $0x8] sm:$0xff]
        %v754 = vld [vmem:[%s9 + $0x10] sm:$0xff]
        %v755 = vld [vmem:[%s9 + $0x18] sm:$0xff]
        %757 = vset.pattern.permute.xlu0 0
        %758 = vperm.xlu0 %757, %v752
        %v759 = vpop.permute.xlu0 %758
        %762 = vset.pattern.permute.xlu0 0
        %763 = vperm.xlu0 %762, %v753
        %v764 = vpop.permute.xlu0 %763
        %767 = vset.pattern.permute.xlu0 0
        %768 = vperm.xlu0 %767, %v754
        %v769 = vpop.permute.xlu0 %768
        %772 = vset.pattern.permute.xlu0 0
        %773 = vperm.xlu0 %772, %v755
        %v774 = vpop.permute.xlu0 %773
        %v776 = vadd.f32 %v741, %v759
        %v777 = vadd.f32 %v744, %v764
        %v778 = vadd.f32 %v746, %v769
        %v779 = vadd.f32 %v749, %v774
        %v780 = vpack.c.bf16 %v739, %v739
        %781 = vxpose.xlu0.c.b16.start [1/8] %v780, 128
        %782 = vxpose.xlu0.c.b16.cont [2/8] 0, 128
        %783 = vxpose.xlu0.c.b16.cont [3/8] 0, 128
        %784 = vxpose.xlu0.c.b16.cont [4/8] 0, 128
        %785 = vxpose.xlu0.c.b16.cont [5/8] 0, 128
        %786 = vxpose.xlu0.c.b16.cont [6/8] 0, 128
        %787 = vxpose.xlu0.c.b16.cont [7/8] 0, 128
        %788 = vxpose.xlu0.c.b16.end [8/8] 0, 128
        %v789 = vpop.trf.xlu0
        %v790 = vpop.trf.xlu0
        %v791 = vpop.trf.xlu0
        %v792 = vpop.trf.xlu0
        %v793 = vpop.trf.xlu0
        %v794 = vpop.trf.xlu0
        %v795 = vpop.trf.xlu0
        %v796 = vpop.trf.xlu0
        %vm797 = vcmask 64512
        %v799 = vsel %vm797, %v789, 0
        %v802 = vsel %vm797, %v790, 0
        %v805 = vsel %vm797, %v791, 0
        %v808 = vsel %vm797, %v792, 0
        %v811 = vsel %vm797, %v793, 0
        %v814 = vsel %vm797, %v794, 0
        %v817 = vsel %vm797, %v795, 0
        %v820 = vsel %vm797, %v796, 0
        %vm822 = vcmask 1043456
        %v824 = vsel %vm822, %v780, 0
        %826 = vmatpush.bf16.msra.mxu0 0
        %827 = vmatpush.bf16.msra.mxu0 0
        %828 = vmatpush.bf16.msra.mxu0 0
        %829 = vmatpush.bf16.msra.mxu0 0
        %830 = vmatpush.bf16.msra.mxu0 0
        %831 = vmatpush.bf16.msra.mxu0 0
        %832 = vmatpush.bf16.msra.mxu0 0
        %833 = vmatpush.bf16.msra.mxu0 %v824
        %834 = vmatmul.bf16.gmra.mxu0 %v799
        %v835 = vpop.f32.mrf.mxu0
        %v836 = vadd.f32 0.0, %v835
        %v837 = vpop.f32.mrf.mxu0
        %v838 = vadd.f32 0.0, %v837
        %839 = vmatmul.bf16.gmra.mxu0 %v802
        %v840 = vpop.f32.mrf.mxu0
        %v841 = vadd.f32 0.0, %v840
        %v842 = vpop.f32.mrf.mxu0
        %v843 = vadd.f32 0.0, %v842
        %844 = vmatmul.bf16.gmra.mxu0 %v805
        %v845 = vpop.f32.mrf.mxu0
        %v846 = vadd.f32 0.0, %v845
        %v847 = vpop.f32.mrf.mxu0
        %v848 = vadd.f32 0.0, %v847
        %849 = vmatmul.bf16.gmra.mxu0 %v808
        %v850 = vpop.f32.mrf.mxu0
        %v851 = vadd.f32 0.0, %v850
        %v852 = vpop.f32.mrf.mxu0
        %v853 = vadd.f32 0.0, %v852
        %854 = vmatmul.bf16.gmra.mxu0 %v811
        %v855 = vpop.f32.mrf.mxu0
        %v856 = vadd.f32 0.0, %v855
        %v857 = vpop.f32.mrf.mxu0
        %v858 = vadd.f32 0.0, %v857
        %859 = vmatmul.bf16.gmra.mxu0 %v814
        %v860 = vpop.f32.mrf.mxu0
        %v861 = vadd.f32 0.0, %v860
        %v862 = vpop.f32.mrf.mxu0
        %v863 = vadd.f32 0.0, %v862
        %864 = vmatmul.bf16.gmra.mxu0 %v817
        %v865 = vpop.f32.mrf.mxu0
        %v866 = vadd.f32 0.0, %v865
        %v867 = vpop.f32.mrf.mxu0
        %v868 = vadd.f32 0.0, %v867
        %869 = vmatmul.bf16.gmra.mxu0 %v820
        %v870 = vpop.f32.mrf.mxu0
        %v871 = vadd.f32 0.0, %v870
        %v872 = vpop.f32.mrf.mxu0
        %v873 = vadd.f32 0.0, %v872
        %874 = vdwg.mxu0
        %v875 = vmul.f32 %v836, 1.442695
        %v876 = vpow.pop %v875
        %v877 = vmul.f32 %v838, 1.442695
        %v878 = vpow.pop %v877
        %v879 = vmul.f32 %v841, 1.442695
        %v880 = vpow.pop %v879
        %v881 = vmul.f32 %v843, 1.442695
        %v882 = vpow.pop %v881
        %v883 = vmul.f32 %v846, 1.442695
        %v884 = vpow.pop %v883
        %v885 = vmul.f32 %v848, 1.442695
        %v886 = vpow.pop %v885
        %v887 = vmul.f32 %v851, 1.442695
        %v888 = vpow.pop %v887
        %v889 = vmul.f32 %v853, 1.442695
        %v890 = vpow.pop %v889
        %v891 = vmul.f32 %v856, 1.442695
        %v892 = vpow.pop %v891
        %v893 = vmul.f32 %v858, 1.442695
        %v894 = vpow.pop %v893
        %v895 = vmul.f32 %v861, 1.442695
        %v896 = vpow.pop %v895
        %v897 = vmul.f32 %v863, 1.442695
        %v898 = vpow.pop %v897
        %v899 = vmul.f32 %v866, 1.442695
        %v900 = vpow.pop %v899
        %v901 = vmul.f32 %v868, 1.442695
        %v902 = vpow.pop %v901
        %v903 = vmul.f32 %v871, 1.442695
        %v904 = vpow.pop %v903
        %v905 = vmul.f32 %v873, 1.442695
        %v906 = vpow.pop %v905
        %v907 = vpack.c.bf16 %v878, %v876
        %v908 = vpack.c.bf16 %v882, %v880
        %v909 = vpack.c.bf16 %v886, %v884
        %v910 = vpack.c.bf16 %v890, %v888
        %v911 = vpack.c.bf16 %v894, %v892
        %v912 = vpack.c.bf16 %v898, %v896
        %v913 = vpack.c.bf16 %v902, %v900
        %v914 = vpack.c.bf16 %v906, %v904
        %v915 = vadd.f32 %v876, %v878
        %v916 = vadd.f32 %v915, %v880
        %v917 = vadd.f32 %v916, %v882
        %v918 = vadd.f32 %v917, %v884
        %v919 = vadd.f32 %v918, %v886
        %v920 = vadd.f32 %v919, %v888
        %v921 = vadd.f32 %v920, %v890
        %v922 = vadd.f32 %v921, %v892
        %v923 = vadd.f32 %v922, %v894
        %v924 = vadd.f32 %v923, %v896
        %v925 = vadd.f32 %v924, %v898
        %v926 = vadd.f32 %v925, %v900
        %v927 = vadd.f32 %v926, %v902
        %v928 = vadd.f32 %v927, %v904
        %v929 = vadd.f32 %v928, %v906
        %v930 = vrot.slane %v929, 4
        %v931 = vadd.f32 %v929, %v930
        %v932 = vrot.slane %v931, 2
        %v933 = vadd.f32 %v931, %v932
        %v934 = vrot.slane %v933, 1
        %v935 = vadd.f32 %v933, %v934
        %v936 = vrcp.pop %v935
        %v937 = vmul.f32 %v776, %v936
        %v938 = vmul.f32 %v777, %v936
        %v939 = vmul.f32 %v778, %v936
        %v940 = vmul.f32 %v779, %v936
        %v941 = vpack.c.bf16 %v938, %v937
        %v942 = vpack.c.bf16 %v940, %v939
        %v943 = vpack.c.bf16 %v936, %v936
        %944 = vmatpush.bf16.msra.mxu0 %v914
        %945 = vmatpush.bf16.msra.mxu0 %v913
        %946 = vmatpush.bf16.msra.mxu0 %v912
        %947 = vmatpush.bf16.msra.mxu0 %v911
        %948 = vmatpush.bf16.msra.mxu0 %v910
        %949 = vmatpush.bf16.msra.mxu0 %v909
        %950 = vmatpush.bf16.msra.mxu0 %v908
        %951 = vmatpush.bf16.msra.mxu0 %v907
        %952 = vmatmul.bf16.gmra.mxu0 %v941
        %v953 = vpop.f32.mrf.mxu0
        %v954 = vadd.f32 0.0, %v953
        %v955 = vpop.f32.mrf.mxu0
        %v956 = vadd.f32 0.0, %v955
        %957 = vmatmul.bf16.gmra.mxu0 %v942
        %v958 = vpop.f32.mrf.mxu0
        %v959 = vadd.f32 0.0, %v958
        %v960 = vpop.f32.mrf.mxu0
        %v961 = vadd.f32 0.0, %v960
        %962 = vmatmul.bf16.gmra.mxu0 %v943
        %v963 = vpop.f32.mrf.mxu0
        %v964 = vadd.f32 0.0, %v963
        %v965 = vpop.f32.mrf.mxu0
        %966 = vdwg.mxu0
        %v967 = vadd.f32 %v964, 1e-09
        %v968 = vrcp.pop %v967
        %v969 = vperm.slane %v968, 0
        %v970 = vmul.f32 %v954, %v969
        %v971 = vmul.f32 %v956, %v969
        %v972 = vmul.f32 %v959, %v969
        %v973 = vmul.f32 %v961, %v969
        %v974 = vld [vmem:[%s4] sm:$0xf]
        %v975 = vld [vmem:[%s4 + $0x4] sm:$0xf]
        %v976 = vld [vmem:[%s4 + $0x8] sm:$0xf]
        %v977 = vld [vmem:[%s4 + $0xc] sm:$0xf]
        %v978 = vpack.c.bf16 %v971, %v970
        %v979 = vpack.c.bf16 %v973, %v972
        %s980 = scalar_lea.vmem %s9, 128
        %v981 = vld [vmem:[%s980] sm:$0xff]
        %v982 = vld [vmem:[%s980 + $0x8] sm:$0xff]
        %v983 = vld [vmem:[%s980 + $0x10] sm:$0xff]
        %v984 = vld [vmem:[%s980 + $0x18] sm:$0xff]
        %986 = vset.pattern.permute.xlu0 0
        %987 = vperm.xlu0 %986, %v981
        %v988 = vpop.permute.xlu0 %987
        %991 = vset.pattern.permute.xlu0 0
        %992 = vperm.xlu0 %991, %v982
        %v993 = vpop.permute.xlu0 %992
        %996 = vset.pattern.permute.xlu0 0
        %997 = vperm.xlu0 %996, %v983
        %v998 = vpop.permute.xlu0 %997
        %1001 = vset.pattern.permute.xlu0 0
        %1002 = vperm.xlu0 %1001, %v984
        %v1003 = vpop.permute.xlu0 %1002
        %v1009 = vunpack.c.l.b16 %v974
        %v1010 = vunpack.c.l.b16 %v975
        %v1011 = vunpack.c.l.b16 %v976
        %v1012 = vunpack.c.l.b16 %v977
        %v1013 = vpack.c.b16 %v1010, %v1009
        %v1014 = vpack.c.b16 %v1012, %v1011
        %v1016 = vsel %vm528, %v1013, 0
        %v1019 = vsel %vm528, %v1014, 0
        %1021 = vmatpush.bf16.msra.mxu0 0
        %1022 = vmatpush.bf16.msra.mxu0 0
        %1023 = vmatpush.bf16.msra.mxu0 0
        %1024 = vmatpush.bf16.msra.mxu0 0
        %1025 = vmatpush.bf16.msra.mxu0 0
        %1026 = vmatpush.bf16.msra.mxu0 0
        %1027 = vmatpush.bf16.msra.mxu0 %v979
        %1028 = vmatpush.bf16.msra.mxu0 %v978
        %1029 = vmatmul.bf16.gmra.mxu0 %v1016
        %v1030 = vpop.f32.mrf.mxu0
        %v1031 = vadd.f32 %v988, %v1030
        %v1032 = vpop.f32.mrf.mxu0
        %v1033 = vadd.f32 %v993, %v1032
        %1034 = vmatmul.bf16.gmra.mxu0 %v1019
        %v1035 = vpop.f32.mrf.mxu0
        %v1036 = vadd.f32 %v998, %v1035
        %v1037 = vpop.f32.mrf.mxu0
        %v1038 = vadd.f32 %v1003, %v1037
        %1039 = vdwg.mxu0
        %v1040 = vmax.f32 %v1031, 0.0
        %v1041 = vmax.f32 %v1033, 0.0
        %v1042 = vmax.f32 %v1036, 0.0
        %v1043 = vmax.f32 %v1038, 0.0
        %v1044 = vadd.f32 %v696, %v1040
        %v1045 = vadd.f32 %v697, %v1041
        %v1046 = vadd.f32 %v698, %v1042
        %v1047 = vadd.f32 %v699, %v1043
        %v1048 = vld [vmem:[%s5] sm:$0xf]
        %v1049 = vld [vmem:[%s5 + $0x4] sm:$0xf]
        %v1050 = vld [vmem:[%s5 + $0x8] sm:$0xf]
        %v1051 = vld [vmem:[%s5 + $0xc] sm:$0xf]
        %v1052 = vld [vmem:[%s5 + $0x10] sm:$0xf]
        %v1053 = vld [vmem:[%s5 + $0x14] sm:$0xf]
        %v1054 = vld [vmem:[%s5 + $0x18] sm:$0xf]
        %v1055 = vld [vmem:[%s5 + $0x1c] sm:$0xf]
        %v1056 = vpack.c.bf16 %v1045, %v1044
        %v1057 = vpack.c.bf16 %v1047, %v1046
        %1058 = vmax.xlane.f32.xlu0 %v1044
        %v1059 = vpop.xlane.xlu0 %1058
        %1060 = vmax.xlane.f32.xlu0 %v1045
        %v1061 = vpop.xlane.xlu0 %1060
        %1062 = vmax.xlane.f32.xlu0 %v1046
        %v1063 = vpop.xlane.xlu0 %1062
        %1064 = vmax.xlane.f32.xlu0 %v1047
        %v1065 = vpop.xlane.xlu0 %1064
        %s1066 = scalar_lea.vmem %s5, 128
        %v1067 = vld [vmem:[%s1066] sm:$0xf]
        %v1068 = vld [vmem:[%s1066 + $0x4] sm:$0xf]
        %v1069 = vld [vmem:[%s1066 + $0x8] sm:$0xf]
        %v1070 = vld [vmem:[%s1066 + $0xc] sm:$0xf]
        %v1071 = vld [vmem:[%s1066 + $0x10] sm:$0xf]
        %v1072 = vld [vmem:[%s1066 + $0x14] sm:$0xf]
        %v1073 = vld [vmem:[%s1066 + $0x18] sm:$0xf]
        %v1074 = vld [vmem:[%s1066 + $0x1c] sm:$0xf]
        %v1075 = vpack.c.bf16 %v1061, %v1059
        %v1076 = vpack.c.bf16 %v1065, %v1063
        %s1077 = scalar_lea.vmem %s3, 20
        %v1078 = vld [vmem:[%s1077] sm:$0xf]
        %v1079 = vld [vmem:[%s1077 + $0x4] sm:$0xf]
        %v1080 = vld [vmem:[%s1077 + $0x8] sm:$0xf]
        %v1081 = vld [vmem:[%s1077 + $0xc] sm:$0xf]
        %v1082 = vld [vmem:[%s1077 + $0x10] sm:$0xf]
        %v1088 = vunpack.c.l.b16 %v1078
        %v1089 = vunpack.c.l.b16 %v1079
        %v1090 = vunpack.c.l.b16 %v1080
        %v1091 = vunpack.c.l.b16 %v1081
        %v1092 = vunpack.c.l.b16 %v1082
        %v1093 = vpack.c.b16 %v1089, %v1088
        %v1094 = vpack.c.b16 %v1091, %v1090
        %v1095 = vpack.c.b16 %v1092, %v1092
        %v1097 = vsel %vm528, %v1093, 0
        %v1100 = vsel %vm528, %v1094, 0
        %v1103 = vsel %vm528, %v1095, 0
        %1105 = vmatpush.bf16.msra.mxu0 0
        %1106 = vmatpush.bf16.msra.mxu0 0
        %1107 = vmatpush.bf16.msra.mxu0 0
        %1108 = vmatpush.bf16.msra.mxu0 0
        %1109 = vmatpush.bf16.msra.mxu0 0
        %1110 = vmatpush.bf16.msra.mxu0 0
        %1111 = vmatpush.bf16.msra.mxu0 %v1057
        %1112 = vmatpush.bf16.msra.mxu0 %v1056
        %1113 = vmatmul.bf16.gmra.mxu0 %v1097
        %v1114 = vpop.f32.mrf.mxu0
        %v1115 = vadd.f32 0.0, %v1114
        %v1116 = vpop.f32.mrf.mxu0
        %v1117 = vadd.f32 0.0, %v1116
        %1118 = vmatmul.bf16.gmra.mxu0 %v1100
        %v1119 = vpop.f32.mrf.mxu0
        %v1120 = vadd.f32 0.0, %v1119
        %v1121 = vpop.f32.mrf.mxu0
        %v1122 = vadd.f32 0.0, %v1121
        %1123 = vmatmul.bf16.gmra.mxu0 %v1103
        %v1124 = vpop.f32.mrf.mxu0
        %v1125 = vadd.f32 0.0, %v1124
        %v1126 = vpop.f32.mrf.mxu0
        %1127 = vdwg.mxu0
        %s1128 = scalar_lea.vmem %s9, 32
        %v1129 = vld [vmem:[%s1128] sm:$0xff]
        %v1130 = vld [vmem:[%s1128 + $0x8] sm:$0xff]
        %v1131 = vld [vmem:[%s1128 + $0x10] sm:$0xff]
        %v1132 = vld [vmem:[%s1128 + $0x18] sm:$0xff]
        %1134 = vset.pattern.permute.xlu0 0
        %1135 = vperm.xlu0 %1134, %v1129
        %v1136 = vpop.permute.xlu0 %1135
        %1139 = vset.pattern.permute.xlu0 0
        %1140 = vperm.xlu0 %1139, %v1130
        %v1141 = vpop.permute.xlu0 %1140
        %1144 = vset.pattern.permute.xlu0 0
        %1145 = vperm.xlu0 %1144, %v1131
        %v1146 = vpop.permute.xlu0 %1145
        %1149 = vset.pattern.permute.xlu0 0
        %1150 = vperm.xlu0 %1149, %v1132
        %v1151 = vpop.permute.xlu0 %1150
        %v1153 = vadd.f32 %v1117, %v1136
        %v1154 = vadd.f32 %v1120, %v1141
        %v1155 = vadd.f32 %v1122, %v1146
        %v1156 = vadd.f32 %v1125, %v1151
        %v1157 = vpack.c.bf16 %v1115, %v1115
        %1158 = vxpose.xlu0.c.b16.start [1/8] %v1157, 128
        %1159 = vxpose.xlu0.c.b16.cont [2/8] 0, 128
        %1160 = vxpose.xlu0.c.b16.cont [3/8] 0, 128
        %1161 = vxpose.xlu0.c.b16.cont [4/8] 0, 128
        %1162 = vxpose.xlu0.c.b16.cont [5/8] 0, 128
        %1163 = vxpose.xlu0.c.b16.cont [6/8] 0, 128
        %1164 = vxpose.xlu0.c.b16.cont [7/8] 0, 128
        %1165 = vxpose.xlu0.c.b16.end [8/8] 0, 128
        %v1166 = vpop.trf.xlu0
        %v1167 = vpop.trf.xlu0
        %v1168 = vpop.trf.xlu0
        %v1169 = vpop.trf.xlu0
        %v1170 = vpop.trf.xlu0
        %v1171 = vpop.trf.xlu0
        %v1172 = vpop.trf.xlu0
        %v1173 = vpop.trf.xlu0
        %v1175 = vsel %vm797, %v1166, 0
        %v1178 = vsel %vm797, %v1167, 0
        %v1181 = vsel %vm797, %v1168, 0
        %v1184 = vsel %vm797, %v1169, 0
        %v1187 = vsel %vm797, %v1170, 0
        %v1190 = vsel %vm797, %v1171, 0
        %v1193 = vsel %vm797, %v1172, 0
        %v1196 = vsel %vm797, %v1173, 0
        %v1199 = vsel %vm822, %v1157, 0
        %1201 = vmatpush.bf16.msra.mxu0 0
        %1202 = vmatpush.bf16.msra.mxu0 0
        %1203 = vmatpush.bf16.msra.mxu0 0
        %1204 = vmatpush.bf16.msra.mxu0 0
        %1205 = vmatpush.bf16.msra.mxu0 0
        %1206 = vmatpush.bf16.msra.mxu0 0
        %1207 = vmatpush.bf16.msra.mxu0 0
        %1208 = vmatpush.bf16.msra.mxu0 %v1199
        %1209 = vmatmul.bf16.gmra.mxu0 %v1175
        %v1210 = vpop.f32.mrf.mxu0
        %v1211 = vadd.f32 0.0, %v1210
        %v1212 = vpop.f32.mrf.mxu0
        %v1213 = vadd.f32 0.0, %v1212
        %1214 = vmatmul.bf16.gmra.mxu0 %v1178
        %v1215 = vpop.f32.mrf.mxu0
        %v1216 = vadd.f32 0.0, %v1215
        %v1217 = vpop.f32.mrf.mxu0
        %v1218 = vadd.f32 0.0, %v1217
        %1219 = vmatmul.bf16.gmra.mxu0 %v1181
        %v1220 = vpop.f32.mrf.mxu0
        %v1221 = vadd.f32 0.0, %v1220
        %v1222 = vpop.f32.mrf.mxu0
        %v1223 = vadd.f32 0.0, %v1222
        %1224 = vmatmul.bf16.gmra.mxu0 %v1184
        %v1225 = vpop.f32.mrf.mxu0
        %v1226 = vadd.f32 0.0, %v1225
        %v1227 = vpop.f32.mrf.mxu0
        %v1228 = vadd.f32 0.0, %v1227
        %1229 = vmatmul.bf16.gmra.mxu0 %v1187
        %v1230 = vpop.f32.mrf.mxu0
        %v1231 = vadd.f32 0.0, %v1230
        %v1232 = vpop.f32.mrf.mxu0
        %v1233 = vadd.f32 0.0, %v1232
        %1234 = vmatmul.bf16.gmra.mxu0 %v1190
        %v1235 = vpop.f32.mrf.mxu0
        %v1236 = vadd.f32 0.0, %v1235
        %v1237 = vpop.f32.mrf.mxu0
        %v1238 = vadd.f32 0.0, %v1237
        %1239 = vmatmul.bf16.gmra.mxu0 %v1193
        %v1240 = vpop.f32.mrf.mxu0
        %v1241 = vadd.f32 0.0, %v1240
        %v1242 = vpop.f32.mrf.mxu0
        %v1243 = vadd.f32 0.0, %v1242
        %1244 = vmatmul.bf16.gmra.mxu0 %v1196
        %v1245 = vpop.f32.mrf.mxu0
        %v1246 = vadd.f32 0.0, %v1245
        %v1247 = vpop.f32.mrf.mxu0
        %v1248 = vadd.f32 0.0, %v1247
        %1249 = vdwg.mxu0
        %v1250 = vmul.f32 %v1211, 1.442695
        %v1251 = vpow.pop %v1250
        %v1252 = vmul.f32 %v1213, 1.442695
        %v1253 = vpow.pop %v1252
        %v1254 = vmul.f32 %v1216, 1.442695
        %v1255 = vpow.pop %v1254
        %v1256 = vmul.f32 %v1218, 1.442695
        %v1257 = vpow.pop %v1256
        %v1258 = vmul.f32 %v1221, 1.442695
        %v1259 = vpow.pop %v1258
        %v1260 = vmul.f32 %v1223, 1.442695
        %v1261 = vpow.pop %v1260
        %v1262 = vmul.f32 %v1226, 1.442695
        %v1263 = vpow.pop %v1262
        %v1264 = vmul.f32 %v1228, 1.442695
        %v1265 = vpow.pop %v1264
        %v1266 = vmul.f32 %v1231, 1.442695
        %v1267 = vpow.pop %v1266
        %v1268 = vmul.f32 %v1233, 1.442695
        %v1269 = vpow.pop %v1268
        %v1270 = vmul.f32 %v1236, 1.442695
        %v1271 = vpow.pop %v1270
        %v1272 = vmul.f32 %v1238, 1.442695
        %v1273 = vpow.pop %v1272
        %v1274 = vmul.f32 %v1241, 1.442695
        %v1275 = vpow.pop %v1274
        %v1276 = vmul.f32 %v1243, 1.442695
        %v1277 = vpow.pop %v1276
        %v1278 = vmul.f32 %v1246, 1.442695
        %v1279 = vpow.pop %v1278
        %v1280 = vmul.f32 %v1248, 1.442695
        %v1281 = vpow.pop %v1280
        %v1282 = vpack.c.bf16 %v1253, %v1251
        %v1283 = vpack.c.bf16 %v1257, %v1255
        %v1284 = vpack.c.bf16 %v1261, %v1259
        %v1285 = vpack.c.bf16 %v1265, %v1263
        %v1286 = vpack.c.bf16 %v1269, %v1267
        %v1287 = vpack.c.bf16 %v1273, %v1271
        %v1288 = vpack.c.bf16 %v1277, %v1275
        %v1289 = vpack.c.bf16 %v1281, %v1279
        %v1290 = vadd.f32 %v1251, %v1253
        %v1291 = vadd.f32 %v1290, %v1255
        %v1292 = vadd.f32 %v1291, %v1257
        %v1293 = vadd.f32 %v1292, %v1259
        %v1294 = vadd.f32 %v1293, %v1261
        %v1295 = vadd.f32 %v1294, %v1263
        %v1296 = vadd.f32 %v1295, %v1265
        %v1297 = vadd.f32 %v1296, %v1267
        %v1298 = vadd.f32 %v1297, %v1269
        %v1299 = vadd.f32 %v1298, %v1271
        %v1300 = vadd.f32 %v1299, %v1273
        %v1301 = vadd.f32 %v1300, %v1275
        %v1302 = vadd.f32 %v1301, %v1277
        %v1303 = vadd.f32 %v1302, %v1279
        %v1304 = vadd.f32 %v1303, %v1281
        %v1305 = vrot.slane %v1304, 4
        %v1306 = vadd.f32 %v1304, %v1305
        %v1307 = vrot.slane %v1306, 2
        %v1308 = vadd.f32 %v1306, %v1307
        %v1309 = vrot.slane %v1308, 1
        %v1310 = vadd.f32 %v1308, %v1309
        %v1311 = vrcp.pop %v1310
        %v1312 = vmul.f32 %v1153, %v1311
        %v1313 = vmul.f32 %v1154, %v1311
        %v1314 = vmul.f32 %v1155, %v1311
        %v1315 = vmul.f32 %v1156, %v1311
        %v1316 = vpack.c.bf16 %v1313, %v1312
        %v1317 = vpack.c.bf16 %v1315, %v1314
        %v1318 = vpack.c.bf16 %v1311, %v1311
        %1319 = vmatpush.bf16.msra.mxu0 %v1289
        %1320 = vmatpush.bf16.msra.mxu0 %v1288
        %1321 = vmatpush.bf16.msra.mxu0 %v1287
        %1322 = vmatpush.bf16.msra.mxu0 %v1286
        %1323 = vmatpush.bf16.msra.mxu0 %v1285
        %1324 = vmatpush.bf16.msra.mxu0 %v1284
        %1325 = vmatpush.bf16.msra.mxu0 %v1283
        %1326 = vmatpush.bf16.msra.mxu0 %v1282
        %1327 = vmatmul.bf16.gmra.mxu0 %v1316
        %v1328 = vpop.f32.mrf.mxu0
        %v1329 = vadd.f32 0.0, %v1328
        %v1330 = vpop.f32.mrf.mxu0
        %v1331 = vadd.f32 0.0, %v1330
        %1332 = vmatmul.bf16.gmra.mxu0 %v1317
        %v1333 = vpop.f32.mrf.mxu0
        %v1334 = vadd.f32 0.0, %v1333
        %v1335 = vpop.f32.mrf.mxu0
        %v1336 = vadd.f32 0.0, %v1335
        %1337 = vmatmul.bf16.gmra.mxu0 %v1318
        %v1338 = vpop.f32.mrf.mxu0
        %v1339 = vadd.f32 0.0, %v1338
        %v1340 = vpop.f32.mrf.mxu0
        %1341 = vdwg.mxu0
        %v1342 = vadd.f32 %v1339, 1e-09
        %v1343 = vrcp.pop %v1342
        %v1344 = vperm.slane %v1343, 0
        %v1345 = vmul.f32 %v1329, %v1344
        %v1346 = vmul.f32 %v1331, %v1344
        %v1347 = vmul.f32 %v1334, %v1344
        %v1348 = vmul.f32 %v1336, %v1344
        %s1349 = scalar_lea.vmem %s4, 16
        %v1350 = vld [vmem:[%s1349] sm:$0xf]
        %v1351 = vld [vmem:[%s1349 + $0x4] sm:$0xf]
        %v1352 = vld [vmem:[%s1349 + $0x8] sm:$0xf]
        %v1353 = vld [vmem:[%s1349 + $0xc] sm:$0xf]
        %v1354 = vpack.c.bf16 %v1346, %v1345
        %v1355 = vpack.c.bf16 %v1348, %v1347
        %s1356 = scalar_lea.vmem %s9, 160
        %v1357 = vld [vmem:[%s1356] sm:$0xff]
        %v1358 = vld [vmem:[%s1356 + $0x8] sm:$0xff]
        %v1359 = vld [vmem:[%s1356 + $0x10] sm:$0xff]
        %v1360 = vld [vmem:[%s1356 + $0x18] sm:$0xff]
        %1362 = vset.pattern.permute.xlu0 0
        %1363 = vperm.xlu0 %1362, %v1357
        %v1364 = vpop.permute.xlu0 %1363
        %1367 = vset.pattern.permute.xlu0 0
        %1368 = vperm.xlu0 %1367, %v1358
        %v1369 = vpop.permute.xlu0 %1368
        %1372 = vset.pattern.permute.xlu0 0
        %1373 = vperm.xlu0 %1372, %v1359
        %v1374 = vpop.permute.xlu0 %1373
        %1377 = vset.pattern.permute.xlu0 0
        %1378 = vperm.xlu0 %1377, %v1360
        %v1379 = vpop.permute.xlu0 %1378
        %v1385 = vunpack.c.l.b16 %v1350
        %v1386 = vunpack.c.l.b16 %v1351
        %v1387 = vunpack.c.l.b16 %v1352
        %v1388 = vunpack.c.l.b16 %v1353
        %v1389 = vpack.c.b16 %v1386, %v1385
        %v1390 = vpack.c.b16 %v1388, %v1387
        %v1392 = vsel %vm528, %v1389, 0
        %v1395 = vsel %vm528, %v1390, 0
        %1397 = vmatpush.bf16.msra.mxu0 0
        %1398 = vmatpush.bf16.msra.mxu0 0
        %1399 = vmatpush.bf16.msra.mxu0 0
        %1400 = vmatpush.bf16.msra.mxu0 0
        %1401 = vmatpush.bf16.msra.mxu0 0
        %1402 = vmatpush.bf16.msra.mxu0 0
        %1403 = vmatpush.bf16.msra.mxu0 %v1355
        %1404 = vmatpush.bf16.msra.mxu0 %v1354
        %1405 = vmatmul.bf16.gmra.mxu0 %v1392
        %v1406 = vpop.f32.mrf.mxu0
        %v1407 = vadd.f32 %v1364, %v1406
        %v1408 = vpop.f32.mrf.mxu0
        %v1409 = vadd.f32 %v1369, %v1408
        %1410 = vmatmul.bf16.gmra.mxu0 %v1395
        %v1411 = vpop.f32.mrf.mxu0
        %v1412 = vadd.f32 %v1374, %v1411
        %v1413 = vpop.f32.mrf.mxu0
        %v1414 = vadd.f32 %v1379, %v1413
        %1415 = vdwg.mxu0
        %v1416 = vmax.f32 %v1407, 0.0
        %v1417 = vmax.f32 %v1409, 0.0
        %v1418 = vmax.f32 %v1412, 0.0
        %v1419 = vmax.f32 %v1414, 0.0
        %v1420 = vadd.f32 %v1044, %v1416
        %v1421 = vadd.f32 %v1045, %v1417
        %v1422 = vadd.f32 %v1046, %v1418
        %v1423 = vadd.f32 %v1047, %v1419
        %s1424 = scalar_lea.vmem %s5, 32
        %v1425 = vld [vmem:[%s1424] sm:$0xf]
        %v1426 = vld [vmem:[%s1424 + $0x4] sm:$0xf]
        %v1427 = vld [vmem:[%s1424 + $0x8] sm:$0xf]
        %v1428 = vld [vmem:[%s1424 + $0xc] sm:$0xf]
        %v1429 = vld [vmem:[%s1424 + $0x10] sm:$0xf]
        %v1430 = vld [vmem:[%s1424 + $0x14] sm:$0xf]
        %v1431 = vld [vmem:[%s1424 + $0x18] sm:$0xf]
        %v1432 = vld [vmem:[%s1424 + $0x1c] sm:$0xf]
        %v1433 = vpack.c.bf16 %v1421, %v1420
        %v1434 = vpack.c.bf16 %v1423, %v1422
        %v1443 = vunpack.c.l.b16 %v1425
        %v1444 = vunpack.c.l.b16 %v1426
        %v1445 = vunpack.c.l.b16 %v1427
        %v1446 = vunpack.c.l.b16 %v1428
        %v1447 = vunpack.c.l.b16 %v1429
        %v1448 = vunpack.c.l.b16 %v1430
        %v1449 = vunpack.c.l.b16 %v1431
        %v1450 = vunpack.c.l.b16 %v1432
        %v1451 = vpack.c.b16 %v1444, %v1443
        %v1452 = vpack.c.b16 %v1446, %v1445
        %v1453 = vpack.c.b16 %v1448, %v1447
        %v1454 = vpack.c.b16 %v1450, %v1449
        %v1456 = vsel %vm528, %v1451, 0
        %v1459 = vsel %vm528, %v1452, 0
        %v1462 = vsel %vm528, %v1453, 0
        %v1465 = vsel %vm528, %v1454, 0
        %1467 = vmatpush.bf16.msra.mxu0 0
        %1468 = vmatpush.bf16.msra.mxu0 0
        %1469 = vmatpush.bf16.msra.mxu0 0
        %1470 = vmatpush.bf16.msra.mxu0 0
        %1471 = vmatpush.bf16.msra.mxu0 0
        %1472 = vmatpush.bf16.msra.mxu0 0
        %1473 = vmatpush.bf16.msra.mxu0 %v1434
        %1474 = vmatpush.bf16.msra.mxu0 %v1433
        %1475 = vmatmul.bf16.gmra.mxu0 %v1456
        %v1476 = vpop.f32.mrf.mxu0
        %v1477 = vadd.f32 0.0, %v1476
        %v1478 = vpop.f32.mrf.mxu0
        %v1479 = vadd.f32 0.0, %v1478
        %1480 = vmatmul.bf16.gmra.mxu0 %v1459
        %v1481 = vpop.f32.mrf.mxu0
        %v1482 = vadd.f32 0.0, %v1481
        %v1483 = vpop.f32.mrf.mxu0
        %v1484 = vadd.f32 0.0, %v1483
        %1485 = vmatmul.bf16.gmra.mxu0 %v1462
        %v1486 = vpop.f32.mrf.mxu0
        %v1487 = vadd.f32 0.0, %v1486
        %v1488 = vpop.f32.mrf.mxu0
        %v1489 = vadd.f32 0.0, %v1488
        %1490 = vmatmul.bf16.gmra.mxu0 %v1465
        %v1491 = vpop.f32.mrf.mxu0
        %v1492 = vadd.f32 0.0, %v1491
        %v1493 = vpop.f32.mrf.mxu0
        %v1494 = vadd.f32 0.0, %v1493
        %1495 = vdwg.mxu0
        %v1504 = vunpack.c.l.b16 %v1048
        %v1505 = vunpack.c.l.b16 %v1049
        %v1506 = vunpack.c.l.b16 %v1050
        %v1507 = vunpack.c.l.b16 %v1051
        %v1508 = vunpack.c.l.b16 %v1052
        %v1509 = vunpack.c.l.b16 %v1053
        %v1510 = vunpack.c.l.b16 %v1054
        %v1511 = vunpack.c.l.b16 %v1055
        %v1512 = vpack.c.b16 %v1505, %v1504
        %v1513 = vpack.c.b16 %v1507, %v1506
        %v1514 = vpack.c.b16 %v1509, %v1508
        %v1515 = vpack.c.b16 %v1511, %v1510
        %v1517 = vsel %vm528, %v1512, 0
        %v1520 = vsel %vm528, %v1513, 0
        %v1523 = vsel %vm528, %v1514, 0
        %v1526 = vsel %vm528, %v1515, 0
        %1528 = vmatpush.bf16.msra.mxu0 0
        %1529 = vmatpush.bf16.msra.mxu0 0
        %1530 = vmatpush.bf16.msra.mxu0 0
        %1531 = vmatpush.bf16.msra.mxu0 0
        %1532 = vmatpush.bf16.msra.mxu0 0
        %1533 = vmatpush.bf16.msra.mxu0 0
        %1534 = vmatpush.bf16.msra.mxu0 %v1057
        %1535 = vmatpush.bf16.msra.mxu0 %v1056
        %1536 = vmatmul.bf16.gmra.mxu0 %v1517
        %v1537 = vpop.f32.mrf.mxu0
        %v1538 = vadd.f32 %v1477, %v1537
        %v1539 = vpop.f32.mrf.mxu0
        %v1540 = vadd.f32 %v1479, %v1539
        %1541 = vmatmul.bf16.gmra.mxu0 %v1520
        %v1542 = vpop.f32.mrf.mxu0
        %v1543 = vadd.f32 %v1482, %v1542
        %v1544 = vpop.f32.mrf.mxu0
        %v1545 = vadd.f32 %v1484, %v1544
        %1546 = vmatmul.bf16.gmra.mxu0 %v1523
        %v1547 = vpop.f32.mrf.mxu0
        %v1548 = vadd.f32 %v1487, %v1547
        %v1549 = vpop.f32.mrf.mxu0
        %v1550 = vadd.f32 %v1489, %v1549
        %1551 = vmatmul.bf16.gmra.mxu0 %v1526
        %v1552 = vpop.f32.mrf.mxu0
        %v1553 = vadd.f32 %v1492, %v1552
        %v1554 = vpop.f32.mrf.mxu0
        %v1555 = vadd.f32 %v1494, %v1554
        %1556 = vdwg.mxu0
        %1557 = vmax.xlane.f32.xlu0 %v1420
        %v1558 = vpop.xlane.xlu0 %1557
        %1559 = vmax.xlane.f32.xlu0 %v1421
        %v1560 = vpop.xlane.xlu0 %1559
        %1561 = vmax.xlane.f32.xlu0 %v1422
        %v1562 = vpop.xlane.xlu0 %1561
        %1563 = vmax.xlane.f32.xlu0 %v1423
        %v1564 = vpop.xlane.xlu0 %1563
        %s1565 = scalar_lea.vmem %s5, 160
        %v1566 = vld [vmem:[%s1565] sm:$0xf]
        %v1567 = vld [vmem:[%s1565 + $0x4] sm:$0xf]
        %v1568 = vld [vmem:[%s1565 + $0x8] sm:$0xf]
        %v1569 = vld [vmem:[%s1565 + $0xc] sm:$0xf]
        %v1570 = vld [vmem:[%s1565 + $0x10] sm:$0xf]
        %v1571 = vld [vmem:[%s1565 + $0x14] sm:$0xf]
        %v1572 = vld [vmem:[%s1565 + $0x18] sm:$0xf]
        %v1573 = vld [vmem:[%s1565 + $0x1c] sm:$0xf]
        %v1574 = vpack.c.bf16 %v1560, %v1558
        %v1575 = vpack.c.bf16 %v1564, %v1562
        %v1584 = vunpack.c.l.b16 %v1566
        %v1585 = vunpack.c.l.b16 %v1567
        %v1586 = vunpack.c.l.b16 %v1568
        %v1587 = vunpack.c.l.b16 %v1569
        %v1588 = vunpack.c.l.b16 %v1570
        %v1589 = vunpack.c.l.b16 %v1571
        %v1590 = vunpack.c.l.b16 %v1572
        %v1591 = vunpack.c.l.b16 %v1573
        %v1592 = vpack.c.b16 %v1585, %v1584
        %v1593 = vpack.c.b16 %v1587, %v1586
        %v1594 = vpack.c.b16 %v1589, %v1588
        %v1595 = vpack.c.b16 %v1591, %v1590
        %v1597 = vsel %vm528, %v1592, 0
        %v1600 = vsel %vm528, %v1593, 0
        %v1603 = vsel %vm528, %v1594, 0
        %v1606 = vsel %vm528, %v1595, 0
        %1608 = vmatpush.bf16.msra.mxu0 0
        %1609 = vmatpush.bf16.msra.mxu0 0
        %1610 = vmatpush.bf16.msra.mxu0 0
        %1611 = vmatpush.bf16.msra.mxu0 0
        %1612 = vmatpush.bf16.msra.mxu0 0
        %1613 = vmatpush.bf16.msra.mxu0 0
        %1614 = vmatpush.bf16.msra.mxu0 %v1575
        %1615 = vmatpush.bf16.msra.mxu0 %v1574
        %1616 = vmatmul.bf16.gmra.mxu0 %v1597
        %v1617 = vpop.f32.mrf.mxu0
        %v1618 = vadd.f32 0.0, %v1617
        %v1619 = vpop.f32.mrf.mxu0
        %v1620 = vadd.f32 0.0, %v1619
        %1621 = vmatmul.bf16.gmra.mxu0 %v1600
        %v1622 = vpop.f32.mrf.mxu0
        %v1623 = vadd.f32 0.0, %v1622
        %v1624 = vpop.f32.mrf.mxu0
        %v1625 = vadd.f32 0.0, %v1624
        %1626 = vmatmul.bf16.gmra.mxu0 %v1603
        %v1627 = vpop.f32.mrf.mxu0
        %v1628 = vadd.f32 0.0, %v1627
        %v1629 = vpop.f32.mrf.mxu0
        %v1630 = vadd.f32 0.0, %v1629
        %1631 = vmatmul.bf16.gmra.mxu0 %v1606
        %v1632 = vpop.f32.mrf.mxu0
        %v1633 = vadd.f32 0.0, %v1632
        %v1634 = vpop.f32.mrf.mxu0
        %v1635 = vadd.f32 0.0, %v1634
        %1636 = vdwg.mxu0
        %v1645 = vunpack.c.l.b16 %v1067
        %v1646 = vunpack.c.l.b16 %v1068
        %v1647 = vunpack.c.l.b16 %v1069
        %v1648 = vunpack.c.l.b16 %v1070
        %v1649 = vunpack.c.l.b16 %v1071
        %v1650 = vunpack.c.l.b16 %v1072
        %v1651 = vunpack.c.l.b16 %v1073
        %v1652 = vunpack.c.l.b16 %v1074
        %v1653 = vpack.c.b16 %v1646, %v1645
        %v1654 = vpack.c.b16 %v1648, %v1647
        %v1655 = vpack.c.b16 %v1650, %v1649
        %v1656 = vpack.c.b16 %v1652, %v1651
        %v1658 = vsel %vm528, %v1653, 0
        %v1661 = vsel %vm528, %v1654, 0
        %v1664 = vsel %vm528, %v1655, 0
        %v1667 = vsel %vm528, %v1656, 0
        %1669 = vmatpush.bf16.msra.mxu0 0
        %1670 = vmatpush.bf16.msra.mxu0 0
        %1671 = vmatpush.bf16.msra.mxu0 0
        %1672 = vmatpush.bf16.msra.mxu0 0
        %1673 = vmatpush.bf16.msra.mxu0 0
        %1674 = vmatpush.bf16.msra.mxu0 0
        %1675 = vmatpush.bf16.msra.mxu0 %v1076
        %1676 = vmatpush.bf16.msra.mxu0 %v1075
        %1677 = vmatmul.bf16.gmra.mxu0 %v1658
        %v1678 = vpop.f32.mrf.mxu0
        %v1679 = vadd.f32 %v1618, %v1678
        %v1680 = vpop.f32.mrf.mxu0
        %v1681 = vadd.f32 %v1620, %v1680
        %1682 = vmatmul.bf16.gmra.mxu0 %v1661
        %v1683 = vpop.f32.mrf.mxu0
        %v1684 = vadd.f32 %v1623, %v1683
        %v1685 = vpop.f32.mrf.mxu0
        %v1686 = vadd.f32 %v1625, %v1685
        %1687 = vmatmul.bf16.gmra.mxu0 %v1664
        %v1688 = vpop.f32.mrf.mxu0
        %v1689 = vadd.f32 %v1628, %v1688
        %v1690 = vpop.f32.mrf.mxu0
        %v1691 = vadd.f32 %v1630, %v1690
        %1692 = vmatmul.bf16.gmra.mxu0 %v1667
        %v1693 = vpop.f32.mrf.mxu0
        %v1694 = vadd.f32 %v1633, %v1693
        %v1695 = vpop.f32.mrf.mxu0
        %v1696 = vadd.f32 %v1635, %v1695
        %1697 = vdwg.mxu0
        %s1698 = scalar_lea.vmem %s3, 40
        %v1699 = vld [vmem:[%s1698] sm:$0xf]
        %v1700 = vld [vmem:[%s1698 + $0x4] sm:$0xf]
        %v1701 = vld [vmem:[%s1698 + $0x8] sm:$0xf]
        %v1702 = vld [vmem:[%s1698 + $0xc] sm:$0xf]
        %v1703 = vld [vmem:[%s1698 + $0x10] sm:$0xf]
        %v1709 = vunpack.c.l.b16 %v1699
        %v1710 = vunpack.c.l.b16 %v1700
        %v1711 = vunpack.c.l.b16 %v1701
        %v1712 = vunpack.c.l.b16 %v1702
        %v1713 = vunpack.c.l.b16 %v1703
        %v1714 = vpack.c.b16 %v1710, %v1709
        %v1715 = vpack.c.b16 %v1712, %v1711
        %v1716 = vpack.c.b16 %v1713, %v1713
        %v1718 = vsel %vm528, %v1714, 0
        %v1721 = vsel %vm528, %v1715, 0
        %v1724 = vsel %vm528, %v1716, 0
        %1726 = vmatpush.bf16.msra.mxu0 0
        %1727 = vmatpush.bf16.msra.mxu0 0
        %1728 = vmatpush.bf16.msra.mxu0 0
        %1729 = vmatpush.bf16.msra.mxu0 0
        %1730 = vmatpush.bf16.msra.mxu0 0
        %1731 = vmatpush.bf16.msra.mxu0 0
        %1732 = vmatpush.bf16.msra.mxu0 %v1434
        %1733 = vmatpush.bf16.msra.mxu0 %v1433
        %1734 = vmatmul.bf16.gmra.mxu0 %v1718
        %v1735 = vpop.f32.mrf.mxu0
        %v1736 = vadd.f32 0.0, %v1735
        %v1737 = vpop.f32.mrf.mxu0
        %v1738 = vadd.f32 0.0, %v1737
        %1739 = vmatmul.bf16.gmra.mxu0 %v1721
        %v1740 = vpop.f32.mrf.mxu0
        %v1741 = vadd.f32 0.0, %v1740
        %v1742 = vpop.f32.mrf.mxu0
        %v1743 = vadd.f32 0.0, %v1742
        %1744 = vmatmul.bf16.gmra.mxu0 %v1724
        %v1745 = vpop.f32.mrf.mxu0
        %v1746 = vadd.f32 0.0, %v1745
        %v1747 = vpop.f32.mrf.mxu0
        %1748 = vdwg.mxu0
        %s1749 = scalar_lea.vmem %s9, 64
        %v1750 = vld [vmem:[%s1749] sm:$0xff]
        %v1751 = vld [vmem:[%s1749 + $0x8] sm:$0xff]
        %v1752 = vld [vmem:[%s1749 + $0x10] sm:$0xff]
        %v1753 = vld [vmem:[%s1749 + $0x18] sm:$0xff]
        %1755 = vset.pattern.permute.xlu0 0
        %1756 = vperm.xlu0 %1755, %v1750
        %v1757 = vpop.permute.xlu0 %1756
        %1760 = vset.pattern.permute.xlu0 0
        %1761 = vperm.xlu0 %1760, %v1751
        %v1762 = vpop.permute.xlu0 %1761
        %1765 = vset.pattern.permute.xlu0 0
        %1766 = vperm.xlu0 %1765, %v1752
        %v1767 = vpop.permute.xlu0 %1766
        %1770 = vset.pattern.permute.xlu0 0
        %1771 = vperm.xlu0 %1770, %v1753
        %v1772 = vpop.permute.xlu0 %1771
        %v1774 = vadd.f32 %v1738, %v1757
        %v1775 = vadd.f32 %v1741, %v1762
        %v1776 = vadd.f32 %v1743, %v1767
        %v1777 = vadd.f32 %v1746, %v1772
        %v1778 = vpack.c.bf16 %v1736, %v1736
        %1779 = vxpose.xlu0.c.b16.start [1/8] %v1778, 128
        %1780 = vxpose.xlu0.c.b16.cont [2/8] 0, 128
        %1781 = vxpose.xlu0.c.b16.cont [3/8] 0, 128
        %1782 = vxpose.xlu0.c.b16.cont [4/8] 0, 128
        %1783 = vxpose.xlu0.c.b16.cont [5/8] 0, 128
        %1784 = vxpose.xlu0.c.b16.cont [6/8] 0, 128
        %1785 = vxpose.xlu0.c.b16.cont [7/8] 0, 128
        %1786 = vxpose.xlu0.c.b16.end [8/8] 0, 128
        %v1787 = vpop.trf.xlu0
        %v1788 = vpop.trf.xlu0
        %v1789 = vpop.trf.xlu0
        %v1790 = vpop.trf.xlu0
        %v1791 = vpop.trf.xlu0
        %v1792 = vpop.trf.xlu0
        %v1793 = vpop.trf.xlu0
        %v1794 = vpop.trf.xlu0
        %v1796 = vsel %vm797, %v1787, 0
        %v1799 = vsel %vm797, %v1788, 0
        %v1802 = vsel %vm797, %v1789, 0
        %v1805 = vsel %vm797, %v1790, 0
        %v1808 = vsel %vm797, %v1791, 0
        %v1811 = vsel %vm797, %v1792, 0
        %v1814 = vsel %vm797, %v1793, 0
        %v1817 = vsel %vm797, %v1794, 0
        %v1820 = vsel %vm822, %v1778, 0
        %1822 = vmatpush.bf16.msra.mxu0 0
        %1823 = vmatpush.bf16.msra.mxu0 0
        %1824 = vmatpush.bf16.msra.mxu0 0
        %1825 = vmatpush.bf16.msra.mxu0 0
        %1826 = vmatpush.bf16.msra.mxu0 0
        %1827 = vmatpush.bf16.msra.mxu0 0
        %1828 = vmatpush.bf16.msra.mxu0 0
        %1829 = vmatpush.bf16.msra.mxu0 %v1820
        %1830 = vmatmul.bf16.gmra.mxu0 %v1796
        %v1831 = vpop.f32.mrf.mxu0
        %v1832 = vadd.f32 0.0, %v1831
        %v1833 = vpop.f32.mrf.mxu0
        %v1834 = vadd.f32 0.0, %v1833
        %1835 = vmatmul.bf16.gmra.mxu0 %v1799
        %v1836 = vpop.f32.mrf.mxu0
        %v1837 = vadd.f32 0.0, %v1836
        %v1838 = vpop.f32.mrf.mxu0
        %v1839 = vadd.f32 0.0, %v1838
        %1840 = vmatmul.bf16.gmra.mxu0 %v1802
        %v1841 = vpop.f32.mrf.mxu0
        %v1842 = vadd.f32 0.0, %v1841
        %v1843 = vpop.f32.mrf.mxu0
        %v1844 = vadd.f32 0.0, %v1843
        %1845 = vmatmul.bf16.gmra.mxu0 %v1805
        %v1846 = vpop.f32.mrf.mxu0
        %v1847 = vadd.f32 0.0, %v1846
        %v1848 = vpop.f32.mrf.mxu0
        %v1849 = vadd.f32 0.0, %v1848
        %1850 = vmatmul.bf16.gmra.mxu0 %v1808
        %v1851 = vpop.f32.mrf.mxu0
        %v1852 = vadd.f32 0.0, %v1851
        %v1853 = vpop.f32.mrf.mxu0
        %v1854 = vadd.f32 0.0, %v1853
        %1855 = vmatmul.bf16.gmra.mxu0 %v1811
        %v1856 = vpop.f32.mrf.mxu0
        %v1857 = vadd.f32 0.0, %v1856
        %v1858 = vpop.f32.mrf.mxu0
        %v1859 = vadd.f32 0.0, %v1858
        %1860 = vmatmul.bf16.gmra.mxu0 %v1814
        %v1861 = vpop.f32.mrf.mxu0
        %v1862 = vadd.f32 0.0, %v1861
        %v1863 = vpop.f32.mrf.mxu0
        %v1864 = vadd.f32 0.0, %v1863
        %1865 = vmatmul.bf16.gmra.mxu0 %v1817
        %v1866 = vpop.f32.mrf.mxu0
        %v1867 = vadd.f32 0.0, %v1866
        %v1868 = vpop.f32.mrf.mxu0
        %v1869 = vadd.f32 0.0, %v1868
        %1870 = vdwg.mxu0
        %v1871 = vmul.f32 %v1832, 1.442695
        %v1872 = vpow.pop %v1871
        %v1873 = vmul.f32 %v1834, 1.442695
        %v1874 = vpow.pop %v1873
        %v1875 = vmul.f32 %v1837, 1.442695
        %v1876 = vpow.pop %v1875
        %v1877 = vmul.f32 %v1839, 1.442695
        %v1878 = vpow.pop %v1877
        %v1879 = vmul.f32 %v1842, 1.442695
        %v1880 = vpow.pop %v1879
        %v1881 = vmul.f32 %v1844, 1.442695
        %v1882 = vpow.pop %v1881
        %v1883 = vmul.f32 %v1847, 1.442695
        %v1884 = vpow.pop %v1883
        %v1885 = vmul.f32 %v1849, 1.442695
        %v1886 = vpow.pop %v1885
        %v1887 = vmul.f32 %v1852, 1.442695
        %v1888 = vpow.pop %v1887
        %v1889 = vmul.f32 %v1854, 1.442695
        %v1890 = vpow.pop %v1889
        %v1891 = vmul.f32 %v1857, 1.442695
        %v1892 = vpow.pop %v1891
        %v1893 = vmul.f32 %v1859, 1.442695
        %v1894 = vpow.pop %v1893
        %v1895 = vmul.f32 %v1862, 1.442695
        %v1896 = vpow.pop %v1895
        %v1897 = vmul.f32 %v1864, 1.442695
        %v1898 = vpow.pop %v1897
        %v1899 = vmul.f32 %v1867, 1.442695
        %v1900 = vpow.pop %v1899
        %v1901 = vmul.f32 %v1869, 1.442695
        %v1902 = vpow.pop %v1901
        %v1903 = vpack.c.bf16 %v1874, %v1872
        %v1904 = vpack.c.bf16 %v1878, %v1876
        %v1905 = vpack.c.bf16 %v1882, %v1880
        %v1906 = vpack.c.bf16 %v1886, %v1884
        %v1907 = vpack.c.bf16 %v1890, %v1888
        %v1908 = vpack.c.bf16 %v1894, %v1892
        %v1909 = vpack.c.bf16 %v1898, %v1896
        %v1910 = vpack.c.bf16 %v1902, %v1900
        %v1911 = vadd.f32 %v1872, %v1874
        %v1912 = vadd.f32 %v1911, %v1876
        %v1913 = vadd.f32 %v1912, %v1878
        %v1914 = vadd.f32 %v1913, %v1880
        %v1915 = vadd.f32 %v1914, %v1882
        %v1916 = vadd.f32 %v1915, %v1884
        %v1917 = vadd.f32 %v1916, %v1886
        %v1918 = vadd.f32 %v1917, %v1888
        %v1919 = vadd.f32 %v1918, %v1890
        %v1920 = vadd.f32 %v1919, %v1892
        %v1921 = vadd.f32 %v1920, %v1894
        %v1922 = vadd.f32 %v1921, %v1896
        %v1923 = vadd.f32 %v1922, %v1898
        %v1924 = vadd.f32 %v1923, %v1900
        %v1925 = vadd.f32 %v1924, %v1902
        %v1926 = vrot.slane %v1925, 4
        %v1927 = vadd.f32 %v1925, %v1926
        %v1928 = vrot.slane %v1927, 2
        %v1929 = vadd.f32 %v1927, %v1928
        %v1930 = vrot.slane %v1929, 1
        %v1931 = vadd.f32 %v1929, %v1930
        %v1932 = vrcp.pop %v1931
        %v1933 = vmul.f32 %v1774, %v1932
        %v1934 = vmul.f32 %v1775, %v1932
        %v1935 = vmul.f32 %v1776, %v1932
        %v1936 = vmul.f32 %v1777, %v1932
        %v1937 = vpack.c.bf16 %v1934, %v1933
        %v1938 = vpack.c.bf16 %v1936, %v1935
        %v1939 = vpack.c.bf16 %v1932, %v1932
        %1940 = vmatpush.bf16.msra.mxu0 %v1910
        %1941 = vmatpush.bf16.msra.mxu0 %v1909
        %1942 = vmatpush.bf16.msra.mxu0 %v1908
        %1943 = vmatpush.bf16.msra.mxu0 %v1907
        %1944 = vmatpush.bf16.msra.mxu0 %v1906
        %1945 = vmatpush.bf16.msra.mxu0 %v1905
        %1946 = vmatpush.bf16.msra.mxu0 %v1904
        %1947 = vmatpush.bf16.msra.mxu0 %v1903
        %1948 = vmatmul.bf16.gmra.mxu0 %v1937
        %v1949 = vpop.f32.mrf.mxu0
        %v1950 = vadd.f32 0.0, %v1949
        %v1951 = vpop.f32.mrf.mxu0
        %v1952 = vadd.f32 0.0, %v1951
        %1953 = vmatmul.bf16.gmra.mxu0 %v1938
        %v1954 = vpop.f32.mrf.mxu0
        %v1955 = vadd.f32 0.0, %v1954
        %v1956 = vpop.f32.mrf.mxu0
        %v1957 = vadd.f32 0.0, %v1956
        %1958 = vmatmul.bf16.gmra.mxu0 %v1939
        %v1959 = vpop.f32.mrf.mxu0
        %v1960 = vadd.f32 0.0, %v1959
        %v1961 = vpop.f32.mrf.mxu0
        %1962 = vdwg.mxu0
        %v1963 = vadd.f32 %v1960, 1e-09
        %v1964 = vrcp.pop %v1963
        %v1965 = vperm.slane %v1964, 0
        %v1966 = vmul.f32 %v1950, %v1965
        %v1967 = vmul.f32 %v1952, %v1965
        %v1968 = vmul.f32 %v1955, %v1965
        %v1969 = vmul.f32 %v1957, %v1965
        %s1970 = scalar_lea.vmem %s4, 32
        %v1971 = vld [vmem:[%s1970] sm:$0xf]
        %v1972 = vld [vmem:[%s1970 + $0x4] sm:$0xf]
        %v1973 = vld [vmem:[%s1970 + $0x8] sm:$0xf]
        %v1974 = vld [vmem:[%s1970 + $0xc] sm:$0xf]
        %v1975 = vpack.c.bf16 %v1967, %v1966
        %v1976 = vpack.c.bf16 %v1969, %v1968
        %s1977 = scalar_lea.vmem %s9, 192
        %v1978 = vld [vmem:[%s1977] sm:$0xff]
        %v1979 = vld [vmem:[%s1977 + $0x8] sm:$0xff]
        %v1980 = vld [vmem:[%s1977 + $0x10] sm:$0xff]
        %v1981 = vld [vmem:[%s1977 + $0x18] sm:$0xff]
        %1983 = vset.pattern.permute.xlu0 0
        %1984 = vperm.xlu0 %1983, %v1978
        %v1985 = vpop.permute.xlu0 %1984
        %1988 = vset.pattern.permute.xlu0 0
        %1989 = vperm.xlu0 %1988, %v1979
        %v1990 = vpop.permute.xlu0 %1989
        %1993 = vset.pattern.permute.xlu0 0
        %1994 = vperm.xlu0 %1993, %v1980
        %v1995 = vpop.permute.xlu0 %1994
        %1998 = vset.pattern.permute.xlu0 0
        %1999 = vperm.xlu0 %1998, %v1981
        %v2000 = vpop.permute.xlu0 %1999
        %v2006 = vunpack.c.l.b16 %v1971
        %v2007 = vunpack.c.l.b16 %v1972
        %v2008 = vunpack.c.l.b16 %v1973
        %v2009 = vunpack.c.l.b16 %v1974
        %v2010 = vpack.c.b16 %v2007, %v2006
        %v2011 = vpack.c.b16 %v2009, %v2008
        %v2013 = vsel %vm528, %v2010, 0
        %v2016 = vsel %vm528, %v2011, 0
        %2018 = vmatpush.bf16.msra.mxu0 0
        %2019 = vmatpush.bf16.msra.mxu0 0
        %2020 = vmatpush.bf16.msra.mxu0 0
        %2021 = vmatpush.bf16.msra.mxu0 0
        %2022 = vmatpush.bf16.msra.mxu0 0
        %2023 = vmatpush.bf16.msra.mxu0 0
        %2024 = vmatpush.bf16.msra.mxu0 %v1976
        %2025 = vmatpush.bf16.msra.mxu0 %v1975
        %2026 = vmatmul.bf16.gmra.mxu0 %v2013
        %v2027 = vpop.f32.mrf.mxu0
        %v2028 = vadd.f32 %v1985, %v2027
        %v2029 = vpop.f32.mrf.mxu0
        %v2030 = vadd.f32 %v1990, %v2029
        %2031 = vmatmul.bf16.gmra.mxu0 %v2016
        %v2032 = vpop.f32.mrf.mxu0
        %v2033 = vadd.f32 %v1995, %v2032
        %v2034 = vpop.f32.mrf.mxu0
        %v2035 = vadd.f32 %v2000, %v2034
        %2036 = vdwg.mxu0
        %v2037 = vmax.f32 %v2028, 0.0
        %v2038 = vmax.f32 %v2030, 0.0
        %v2039 = vmax.f32 %v2033, 0.0
        %v2040 = vmax.f32 %v2035, 0.0
        %v2041 = vadd.f32 %v1420, %v2037
        %v2042 = vadd.f32 %v1421, %v2038
        %v2043 = vadd.f32 %v1422, %v2039
        %v2044 = vadd.f32 %v1423, %v2040
        %s2045 = scalar_lea.vmem %s5, 64
        %v2046 = vld [vmem:[%s2045] sm:$0xf]
        %v2047 = vld [vmem:[%s2045 + $0x4] sm:$0xf]
        %v2048 = vld [vmem:[%s2045 + $0x8] sm:$0xf]
        %v2049 = vld [vmem:[%s2045 + $0xc] sm:$0xf]
        %v2050 = vld [vmem:[%s2045 + $0x10] sm:$0xf]
        %v2051 = vld [vmem:[%s2045 + $0x14] sm:$0xf]
        %v2052 = vld [vmem:[%s2045 + $0x18] sm:$0xf]
        %v2053 = vld [vmem:[%s2045 + $0x1c] sm:$0xf]
        %v2054 = vpack.c.bf16 %v2042, %v2041
        %v2055 = vpack.c.bf16 %v2044, %v2043
        %v2064 = vunpack.c.l.b16 %v2046
        %v2065 = vunpack.c.l.b16 %v2047
        %v2066 = vunpack.c.l.b16 %v2048
        %v2067 = vunpack.c.l.b16 %v2049
        %v2068 = vunpack.c.l.b16 %v2050
        %v2069 = vunpack.c.l.b16 %v2051
        %v2070 = vunpack.c.l.b16 %v2052
        %v2071 = vunpack.c.l.b16 %v2053
        %v2072 = vpack.c.b16 %v2065, %v2064
        %v2073 = vpack.c.b16 %v2067, %v2066
        %v2074 = vpack.c.b16 %v2069, %v2068
        %v2075 = vpack.c.b16 %v2071, %v2070
        %v2077 = vsel %vm528, %v2072, 0
        %v2080 = vsel %vm528, %v2073, 0
        %v2083 = vsel %vm528, %v2074, 0
        %v2086 = vsel %vm528, %v2075, 0
        %2088 = vmatpush.bf16.msra.mxu0 0
        %2089 = vmatpush.bf16.msra.mxu0 0
        %2090 = vmatpush.bf16.msra.mxu0 0
        %2091 = vmatpush.bf16.msra.mxu0 0
        %2092 = vmatpush.bf16.msra.mxu0 0
        %2093 = vmatpush.bf16.msra.mxu0 0
        %2094 = vmatpush.bf16.msra.mxu0 %v2055
        %2095 = vmatpush.bf16.msra.mxu0 %v2054
        %2096 = vmatmul.bf16.gmra.mxu0 %v2077
        %v2097 = vpop.f32.mrf.mxu0
        %v2098 = vadd.f32 0.0, %v2097
        %v2099 = vpop.f32.mrf.mxu0
        %v2100 = vadd.f32 0.0, %v2099
        %2101 = vmatmul.bf16.gmra.mxu0 %v2080
        %v2102 = vpop.f32.mrf.mxu0
        %v2103 = vadd.f32 0.0, %v2102
        %v2104 = vpop.f32.mrf.mxu0
        %v2105 = vadd.f32 0.0, %v2104
        %2106 = vmatmul.bf16.gmra.mxu0 %v2083
        %v2107 = vpop.f32.mrf.mxu0
        %v2108 = vadd.f32 0.0, %v2107
        %v2109 = vpop.f32.mrf.mxu0
        %v2110 = vadd.f32 0.0, %v2109
        %2111 = vmatmul.bf16.gmra.mxu0 %v2086
        %v2112 = vpop.f32.mrf.mxu0
        %v2113 = vadd.f32 0.0, %v2112
        %v2114 = vpop.f32.mrf.mxu0
        %v2115 = vadd.f32 0.0, %v2114
        %2116 = vdwg.mxu0
        %v2117 = vadd.f32 %v1538, %v2098
        %v2118 = vadd.f32 %v1540, %v2100
        %v2119 = vadd.f32 %v1543, %v2103
        %v2120 = vadd.f32 %v1545, %v2105
        %v2121 = vadd.f32 %v1548, %v2108
        %v2122 = vadd.f32 %v1550, %v2110
        %v2123 = vadd.f32 %v1553, %v2113
        %v2124 = vadd.f32 %v1555, %v2115
        %2125 = vmax.xlane.f32.xlu0 %v2041
        %v2126 = vpop.xlane.xlu0 %2125
        %2127 = vmax.xlane.f32.xlu0 %v2042
        %v2128 = vpop.xlane.xlu0 %2127
        %2129 = vmax.xlane.f32.xlu0 %v2043
        %v2130 = vpop.xlane.xlu0 %2129
        %2131 = vmax.xlane.f32.xlu0 %v2044
        %v2132 = vpop.xlane.xlu0 %2131
        %s2133 = scalar_lea.vmem %s5, 192
        %v2134 = vld [vmem:[%s2133] sm:$0xf]
        %v2135 = vld [vmem:[%s2133 + $0x4] sm:$0xf]
        %v2136 = vld [vmem:[%s2133 + $0x8] sm:$0xf]
        %v2137 = vld [vmem:[%s2133 + $0xc] sm:$0xf]
        %v2138 = vld [vmem:[%s2133 + $0x10] sm:$0xf]
        %v2139 = vld [vmem:[%s2133 + $0x14] sm:$0xf]
        %v2140 = vld [vmem:[%s2133 + $0x18] sm:$0xf]
        %v2141 = vld [vmem:[%s2133 + $0x1c] sm:$0xf]
        %v2142 = vpack.c.bf16 %v2128, %v2126
        %v2143 = vpack.c.bf16 %v2132, %v2130
        %v2152 = vunpack.c.l.b16 %v2134
        %v2153 = vunpack.c.l.b16 %v2135
        %v2154 = vunpack.c.l.b16 %v2136
        %v2155 = vunpack.c.l.b16 %v2137
        %v2156 = vunpack.c.l.b16 %v2138
        %v2157 = vunpack.c.l.b16 %v2139
        %v2158 = vunpack.c.l.b16 %v2140
        %v2159 = vunpack.c.l.b16 %v2141
        %v2160 = vpack.c.b16 %v2153, %v2152
        %v2161 = vpack.c.b16 %v2155, %v2154
        %v2162 = vpack.c.b16 %v2157, %v2156
        %v2163 = vpack.c.b16 %v2159, %v2158
        %v2165 = vsel %vm528, %v2160, 0
        %v2168 = vsel %vm528, %v2161, 0
        %v2171 = vsel %vm528, %v2162, 0
        %v2174 = vsel %vm528, %v2163, 0
        %2176 = vmatpush.bf16.msra.mxu0 0
        %2177 = vmatpush.bf16.msra.mxu0 0
        %2178 = vmatpush.bf16.msra.mxu0 0
        %2179 = vmatpush.bf16.msra.mxu0 0
        %2180 = vmatpush.bf16.msra.mxu0 0
        %2181 = vmatpush.bf16.msra.mxu0 0
        %2182 = vmatpush.bf16.msra.mxu0 %v2143
        %2183 = vmatpush.bf16.msra.mxu0 %v2142
        %2184 = vmatmul.bf16.gmra.mxu0 %v2165
        %v2185 = vpop.f32.mrf.mxu0
        %v2186 = vadd.f32 0.0, %v2185
        %v2187 = vpop.f32.mrf.mxu0
        %v2188 = vadd.f32 0.0, %v2187
        %2189 = vmatmul.bf16.gmra.mxu0 %v2168
        %v2190 = vpop.f32.mrf.mxu0
        %v2191 = vadd.f32 0.0, %v2190
        %v2192 = vpop.f32.mrf.mxu0
        %v2193 = vadd.f32 0.0, %v2192
        %2194 = vmatmul.bf16.gmra.mxu0 %v2171
        %v2195 = vpop.f32.mrf.mxu0
        %v2196 = vadd.f32 0.0, %v2195
        %v2197 = vpop.f32.mrf.mxu0
        %v2198 = vadd.f32 0.0, %v2197
        %2199 = vmatmul.bf16.gmra.mxu0 %v2174
        %v2200 = vpop.f32.mrf.mxu0
        %v2201 = vadd.f32 0.0, %v2200
        %v2202 = vpop.f32.mrf.mxu0
        %v2203 = vadd.f32 0.0, %v2202
        %2204 = vdwg.mxu0
        %v2205 = vadd.f32 %v1679, %v2186
        %v2206 = vadd.f32 %v1681, %v2188
        %v2207 = vadd.f32 %v1684, %v2191
        %v2208 = vadd.f32 %v1686, %v2193
        %v2209 = vadd.f32 %v1689, %v2196
        %v2210 = vadd.f32 %v1691, %v2198
        %v2211 = vadd.f32 %v1694, %v2201
        %v2212 = vadd.f32 %v1696, %v2203
        %s2213 = scalar_lea.vmem %s3, 60
        %v2214 = vld [vmem:[%s2213] sm:$0xf]
        %v2215 = vld [vmem:[%s2213 + $0x4] sm:$0xf]
        %v2216 = vld [vmem:[%s2213 + $0x8] sm:$0xf]
        %v2217 = vld [vmem:[%s2213 + $0xc] sm:$0xf]
        %v2218 = vld [vmem:[%s2213 + $0x10] sm:$0xf]
        %v2224 = vunpack.c.l.b16 %v2214
        %v2225 = vunpack.c.l.b16 %v2215
        %v2226 = vunpack.c.l.b16 %v2216
        %v2227 = vunpack.c.l.b16 %v2217
        %v2228 = vunpack.c.l.b16 %v2218
        %v2229 = vpack.c.b16 %v2225, %v2224
        %v2230 = vpack.c.b16 %v2227, %v2226
        %v2231 = vpack.c.b16 %v2228, %v2228
        %v2233 = vsel %vm528, %v2229, 0
        %v2236 = vsel %vm528, %v2230, 0
        %v2239 = vsel %vm528, %v2231, 0
        %2241 = vmatpush.bf16.msra.mxu0 0
        %2242 = vmatpush.bf16.msra.mxu0 0
        %2243 = vmatpush.bf16.msra.mxu0 0
        %2244 = vmatpush.bf16.msra.mxu0 0
        %2245 = vmatpush.bf16.msra.mxu0 0
        %2246 = vmatpush.bf16.msra.mxu0 0
        %2247 = vmatpush.bf16.msra.mxu0 %v2055
        %2248 = vmatpush.bf16.msra.mxu0 %v2054
        %2249 = vmatmul.bf16.gmra.mxu0 %v2233
        %v2250 = vpop.f32.mrf.mxu0
        %v2251 = vadd.f32 0.0, %v2250
        %v2252 = vpop.f32.mrf.mxu0
        %v2253 = vadd.f32 0.0, %v2252
        %2254 = vmatmul.bf16.gmra.mxu0 %v2236
        %v2255 = vpop.f32.mrf.mxu0
        %v2256 = vadd.f32 0.0, %v2255
        %v2257 = vpop.f32.mrf.mxu0
        %v2258 = vadd.f32 0.0, %v2257
        %2259 = vmatmul.bf16.gmra.mxu0 %v2239
        %v2260 = vpop.f32.mrf.mxu0
        %v2261 = vadd.f32 0.0, %v2260
        %v2262 = vpop.f32.mrf.mxu0
        %2263 = vdwg.mxu0
        %s2264 = scalar_lea.vmem %s9, 96
        %v2265 = vld [vmem:[%s2264] sm:$0xff]
        %v2266 = vld [vmem:[%s2264 + $0x8] sm:$0xff]
        %v2267 = vld [vmem:[%s2264 + $0x10] sm:$0xff]
        %v2268 = vld [vmem:[%s2264 + $0x18] sm:$0xff]
        %2270 = vset.pattern.permute.xlu0 0
        %2271 = vperm.xlu0 %2270, %v2265
        %v2272 = vpop.permute.xlu0 %2271
        %2275 = vset.pattern.permute.xlu0 0
        %2276 = vperm.xlu0 %2275, %v2266
        %v2277 = vpop.permute.xlu0 %2276
        %2280 = vset.pattern.permute.xlu0 0
        %2281 = vperm.xlu0 %2280, %v2267
        %v2282 = vpop.permute.xlu0 %2281
        %2285 = vset.pattern.permute.xlu0 0
        %2286 = vperm.xlu0 %2285, %v2268
        %v2287 = vpop.permute.xlu0 %2286
        %v2289 = vadd.f32 %v2253, %v2272
        %v2290 = vadd.f32 %v2256, %v2277
        %v2291 = vadd.f32 %v2258, %v2282
        %v2292 = vadd.f32 %v2261, %v2287
        %v2293 = vpack.c.bf16 %v2251, %v2251
        %2294 = vxpose.xlu0.c.b16.start [1/8] %v2293, 128
        %2295 = vxpose.xlu0.c.b16.cont [2/8] 0, 128
        %2296 = vxpose.xlu0.c.b16.cont [3/8] 0, 128
        %2297 = vxpose.xlu0.c.b16.cont [4/8] 0, 128
        %2298 = vxpose.xlu0.c.b16.cont [5/8] 0, 128
        %2299 = vxpose.xlu0.c.b16.cont [6/8] 0, 128
        %2300 = vxpose.xlu0.c.b16.cont [7/8] 0, 128
        %2301 = vxpose.xlu0.c.b16.end [8/8] 0, 128
        %v2302 = vpop.trf.xlu0
        %v2303 = vpop.trf.xlu0
        %v2304 = vpop.trf.xlu0
        %v2305 = vpop.trf.xlu0
        %v2306 = vpop.trf.xlu0
        %v2307 = vpop.trf.xlu0
        %v2308 = vpop.trf.xlu0
        %v2309 = vpop.trf.xlu0
        %v2311 = vsel %vm797, %v2302, 0
        %v2314 = vsel %vm797, %v2303, 0
        %v2317 = vsel %vm797, %v2304, 0
        %v2320 = vsel %vm797, %v2305, 0
        %v2323 = vsel %vm797, %v2306, 0
        %v2326 = vsel %vm797, %v2307, 0
        %v2329 = vsel %vm797, %v2308, 0
        %v2332 = vsel %vm797, %v2309, 0
        %v2335 = vsel %vm822, %v2293, 0
        %2337 = vmatpush.bf16.msra.mxu0 0
        %2338 = vmatpush.bf16.msra.mxu0 0
        %2339 = vmatpush.bf16.msra.mxu0 0
        %2340 = vmatpush.bf16.msra.mxu0 0
        %2341 = vmatpush.bf16.msra.mxu0 0
        %2342 = vmatpush.bf16.msra.mxu0 0
        %2343 = vmatpush.bf16.msra.mxu0 0
        %2344 = vmatpush.bf16.msra.mxu0 %v2335
        %2345 = vmatmul.bf16.gmra.mxu0 %v2311
        %v2346 = vpop.f32.mrf.mxu0
        %v2347 = vadd.f32 0.0, %v2346
        %v2348 = vpop.f32.mrf.mxu0
        %v2349 = vadd.f32 0.0, %v2348
        %2350 = vmatmul.bf16.gmra.mxu0 %v2314
        %v2351 = vpop.f32.mrf.mxu0
        %v2352 = vadd.f32 0.0, %v2351
        %v2353 = vpop.f32.mrf.mxu0
        %v2354 = vadd.f32 0.0, %v2353
        %2355 = vmatmul.bf16.gmra.mxu0 %v2317
        %v2356 = vpop.f32.mrf.mxu0
        %v2357 = vadd.f32 0.0, %v2356
        %v2358 = vpop.f32.mrf.mxu0
        %v2359 = vadd.f32 0.0, %v2358
        %2360 = vmatmul.bf16.gmra.mxu0 %v2320
        %v2361 = vpop.f32.mrf.mxu0
        %v2362 = vadd.f32 0.0, %v2361
        %v2363 = vpop.f32.mrf.mxu0
        %v2364 = vadd.f32 0.0, %v2363
        %2365 = vmatmul.bf16.gmra.mxu0 %v2323
        %v2366 = vpop.f32.mrf.mxu0
        %v2367 = vadd.f32 0.0, %v2366
        %v2368 = vpop.f32.mrf.mxu0
        %v2369 = vadd.f32 0.0, %v2368
        %2370 = vmatmul.bf16.gmra.mxu0 %v2326
        %v2371 = vpop.f32.mrf.mxu0
        %v2372 = vadd.f32 0.0, %v2371
        %v2373 = vpop.f32.mrf.mxu0
        %v2374 = vadd.f32 0.0, %v2373
        %2375 = vmatmul.bf16.gmra.mxu0 %v2329
        %v2376 = vpop.f32.mrf.mxu0
        %v2377 = vadd.f32 0.0, %v2376
        %v2378 = vpop.f32.mrf.mxu0
        %v2379 = vadd.f32 0.0, %v2378
        %2380 = vmatmul.bf16.gmra.mxu0 %v2332
        %v2381 = vpop.f32.mrf.mxu0
        %v2382 = vadd.f32 0.0, %v2381
        %v2383 = vpop.f32.mrf.mxu0
        %v2384 = vadd.f32 0.0, %v2383
        %2385 = vdwg.mxu0
        %v2386 = vmul.f32 %v2347, 1.442695
        %v2387 = vpow.pop %v2386
        %v2388 = vmul.f32 %v2349, 1.442695
        %v2389 = vpow.pop %v2388
        %v2390 = vmul.f32 %v2352, 1.442695
        %v2391 = vpow.pop %v2390
        %v2392 = vmul.f32 %v2354, 1.442695
        %v2393 = vpow.pop %v2392
        %v2394 = vmul.f32 %v2357, 1.442695
        %v2395 = vpow.pop %v2394
        %v2396 = vmul.f32 %v2359, 1.442695
        %v2397 = vpow.pop %v2396
        %v2398 = vmul.f32 %v2362, 1.442695
        %v2399 = vpow.pop %v2398
        %v2400 = vmul.f32 %v2364, 1.442695
        %v2401 = vpow.pop %v2400
        %v2402 = vmul.f32 %v2367, 1.442695
        %v2403 = vpow.pop %v2402
        %v2404 = vmul.f32 %v2369, 1.442695
        %v2405 = vpow.pop %v2404
        %v2406 = vmul.f32 %v2372, 1.442695
        %v2407 = vpow.pop %v2406
        %v2408 = vmul.f32 %v2374, 1.442695
        %v2409 = vpow.pop %v2408
        %v2410 = vmul.f32 %v2377, 1.442695
        %v2411 = vpow.pop %v2410
        %v2412 = vmul.f32 %v2379, 1.442695
        %v2413 = vpow.pop %v2412
        %v2414 = vmul.f32 %v2382, 1.442695
        %v2415 = vpow.pop %v2414
        %v2416 = vmul.f32 %v2384, 1.442695
        %v2417 = vpow.pop %v2416
        %v2418 = vpack.c.bf16 %v2389, %v2387
        %v2419 = vpack.c.bf16 %v2393, %v2391
        %v2420 = vpack.c.bf16 %v2397, %v2395
        %v2421 = vpack.c.bf16 %v2401, %v2399
        %v2422 = vpack.c.bf16 %v2405, %v2403
        %v2423 = vpack.c.bf16 %v2409, %v2407
        %v2424 = vpack.c.bf16 %v2413, %v2411
        %v2425 = vpack.c.bf16 %v2417, %v2415
        %v2426 = vadd.f32 %v2387, %v2389
        %v2427 = vadd.f32 %v2426, %v2391
        %v2428 = vadd.f32 %v2427, %v2393
        %v2429 = vadd.f32 %v2428, %v2395
        %v2430 = vadd.f32 %v2429, %v2397
        %v2431 = vadd.f32 %v2430, %v2399
        %v2432 = vadd.f32 %v2431, %v2401
        %v2433 = vadd.f32 %v2432, %v2403
        %v2434 = vadd.f32 %v2433, %v2405
        %v2435 = vadd.f32 %v2434, %v2407
        %v2436 = vadd.f32 %v2435, %v2409
        %v2437 = vadd.f32 %v2436, %v2411
        %v2438 = vadd.f32 %v2437, %v2413
        %v2439 = vadd.f32 %v2438, %v2415
        %v2440 = vadd.f32 %v2439, %v2417
        %v2441 = vrot.slane %v2440, 4
        %v2442 = vadd.f32 %v2440, %v2441
        %v2443 = vrot.slane %v2442, 2
        %v2444 = vadd.f32 %v2442, %v2443
        %v2445 = vrot.slane %v2444, 1
        %v2446 = vadd.f32 %v2444, %v2445
        %v2447 = vrcp.pop %v2446
        %v2448 = vmul.f32 %v2289, %v2447
        %v2449 = vmul.f32 %v2290, %v2447
        %v2450 = vmul.f32 %v2291, %v2447
        %v2451 = vmul.f32 %v2292, %v2447
        %v2452 = vpack.c.bf16 %v2449, %v2448
        %v2453 = vpack.c.bf16 %v2451, %v2450
        %v2454 = vpack.c.bf16 %v2447, %v2447
        %2455 = vmatpush.bf16.msra.mxu0 %v2425
        %2456 = vmatpush.bf16.msra.mxu0 %v2424
        %2457 = vmatpush.bf16.msra.mxu0 %v2423
        %2458 = vmatpush.bf16.msra.mxu0 %v2422
        %2459 = vmatpush.bf16.msra.mxu0 %v2421
        %2460 = vmatpush.bf16.msra.mxu0 %v2420
        %2461 = vmatpush.bf16.msra.mxu0 %v2419
        %2462 = vmatpush.bf16.msra.mxu0 %v2418
        %2463 = vmatmul.bf16.gmra.mxu0 %v2452
        %v2464 = vpop.f32.mrf.mxu0
        %v2465 = vadd.f32 0.0, %v2464
        %v2466 = vpop.f32.mrf.mxu0
        %v2467 = vadd.f32 0.0, %v2466
        %2468 = vmatmul.bf16.gmra.mxu0 %v2453
        %v2469 = vpop.f32.mrf.mxu0
        %v2470 = vadd.f32 0.0, %v2469
        %v2471 = vpop.f32.mrf.mxu0
        %v2472 = vadd.f32 0.0, %v2471
        %2473 = vmatmul.bf16.gmra.mxu0 %v2454
        %v2474 = vpop.f32.mrf.mxu0
        %v2475 = vadd.f32 0.0, %v2474
        %v2476 = vpop.f32.mrf.mxu0
        %2477 = vdwg.mxu0
        %v2478 = vadd.f32 %v2475, 1e-09
        %v2479 = vrcp.pop %v2478
        %v2480 = vperm.slane %v2479, 0
        %v2481 = vmul.f32 %v2465, %v2480
        %v2482 = vmul.f32 %v2467, %v2480
        %v2483 = vmul.f32 %v2470, %v2480
        %v2484 = vmul.f32 %v2472, %v2480
        %s2485 = scalar_lea.vmem %s4, 48
        %v2486 = vld [vmem:[%s2485] sm:$0xf]
        %v2487 = vld [vmem:[%s2485 + $0x4] sm:$0xf]
        %v2488 = vld [vmem:[%s2485 + $0x8] sm:$0xf]
        %v2489 = vld [vmem:[%s2485 + $0xc] sm:$0xf]
        %v2490 = vpack.c.bf16 %v2482, %v2481
        %v2491 = vpack.c.bf16 %v2484, %v2483
        %s2492 = scalar_lea.vmem %s9, 224
        %v2493 = vld [vmem:[%s2492] sm:$0xff]
        %v2494 = vld [vmem:[%s2492 + $0x8] sm:$0xff]
        %v2495 = vld [vmem:[%s2492 + $0x10] sm:$0xff]
        %v2496 = vld [vmem:[%s2492 + $0x18] sm:$0xff]
        %2498 = vset.pattern.permute.xlu0 0
        %2499 = vperm.xlu0 %2498, %v2493
        %v2500 = vpop.permute.xlu0 %2499
        %2503 = vset.pattern.permute.xlu0 0
        %2504 = vperm.xlu0 %2503, %v2494
        %v2505 = vpop.permute.xlu0 %2504
        %2508 = vset.pattern.permute.xlu0 0
        %2509 = vperm.xlu0 %2508, %v2495
        %v2510 = vpop.permute.xlu0 %2509
        %2513 = vset.pattern.permute.xlu0 0
        %2514 = vperm.xlu0 %2513, %v2496
        %v2515 = vpop.permute.xlu0 %2514
        %v2521 = vunpack.c.l.b16 %v2486
        %v2522 = vunpack.c.l.b16 %v2487
        %v2523 = vunpack.c.l.b16 %v2488
        %v2524 = vunpack.c.l.b16 %v2489
        %v2525 = vpack.c.b16 %v2522, %v2521
        %v2526 = vpack.c.b16 %v2524, %v2523
        %v2528 = vsel %vm528, %v2525, 0
        %v2531 = vsel %vm528, %v2526, 0
        %2533 = vmatpush.bf16.msra.mxu0 0
        %2534 = vmatpush.bf16.msra.mxu0 0
        %2535 = vmatpush.bf16.msra.mxu0 0
        %2536 = vmatpush.bf16.msra.mxu0 0
        %2537 = vmatpush.bf16.msra.mxu0 0
        %2538 = vmatpush.bf16.msra.mxu0 0
        %2539 = vmatpush.bf16.msra.mxu0 %v2491
        %2540 = vmatpush.bf16.msra.mxu0 %v2490
        %2541 = vmatmul.bf16.gmra.mxu0 %v2528
        %v2542 = vpop.f32.mrf.mxu0
        %v2543 = vadd.f32 %v2500, %v2542
        %v2544 = vpop.f32.mrf.mxu0
        %v2545 = vadd.f32 %v2505, %v2544
        %2546 = vmatmul.bf16.gmra.mxu0 %v2531
        %v2547 = vpop.f32.mrf.mxu0
        %v2548 = vadd.f32 %v2510, %v2547
        %v2549 = vpop.f32.mrf.mxu0
        %v2550 = vadd.f32 %v2515, %v2549
        %2551 = vdwg.mxu0
        %v2552 = vmax.f32 %v2543, 0.0
        %v2553 = vmax.f32 %v2545, 0.0
        %v2554 = vmax.f32 %v2548, 0.0
        %v2555 = vmax.f32 %v2550, 0.0
        %v2556 = vadd.f32 %v2041, %v2552
        %v2557 = vadd.f32 %v2042, %v2553
        %v2558 = vadd.f32 %v2043, %v2554
        %v2559 = vadd.f32 %v2044, %v2555
        %s2560 = scalar_lea.vmem %s5, 96
        %v2561 = vld [vmem:[%s2560] sm:$0xf]
        %v2562 = vld [vmem:[%s2560 + $0x4] sm:$0xf]
        %v2563 = vld [vmem:[%s2560 + $0x8] sm:$0xf]
        %v2564 = vld [vmem:[%s2560 + $0xc] sm:$0xf]
        %v2565 = vld [vmem:[%s2560 + $0x10] sm:$0xf]
        %v2566 = vld [vmem:[%s2560 + $0x14] sm:$0xf]
        %v2567 = vld [vmem:[%s2560 + $0x18] sm:$0xf]
        %v2568 = vld [vmem:[%s2560 + $0x1c] sm:$0xf]
        %v2569 = vpack.c.bf16 %v2557, %v2556
        %v2570 = vpack.c.bf16 %v2559, %v2558
        %v2579 = vunpack.c.l.b16 %v2561
        %v2580 = vunpack.c.l.b16 %v2562
        %v2581 = vunpack.c.l.b16 %v2563
        %v2582 = vunpack.c.l.b16 %v2564
        %v2583 = vunpack.c.l.b16 %v2565
        %v2584 = vunpack.c.l.b16 %v2566
        %v2585 = vunpack.c.l.b16 %v2567
        %v2586 = vunpack.c.l.b16 %v2568
        %v2587 = vpack.c.b16 %v2580, %v2579
        %v2588 = vpack.c.b16 %v2582, %v2581
        %v2589 = vpack.c.b16 %v2584, %v2583
        %v2590 = vpack.c.b16 %v2586, %v2585
        %v2592 = vsel %vm528, %v2587, 0
        %v2595 = vsel %vm528, %v2588, 0
        %v2598 = vsel %vm528, %v2589, 0
        %v2601 = vsel %vm528, %v2590, 0
        %2603 = vmatpush.bf16.msra.mxu0 0
        %2604 = vmatpush.bf16.msra.mxu0 0
        %2605 = vmatpush.bf16.msra.mxu0 0
        %2606 = vmatpush.bf16.msra.mxu0 0
        %2607 = vmatpush.bf16.msra.mxu0 0
        %2608 = vmatpush.bf16.msra.mxu0 0
        %2609 = vmatpush.bf16.msra.mxu0 %v2570
        %2610 = vmatpush.bf16.msra.mxu0 %v2569
        %2611 = vmatmul.bf16.gmra.mxu0 %v2592
        %v2612 = vpop.f32.mrf.mxu0
        %v2613 = vadd.f32 0.0, %v2612
        %v2614 = vpop.f32.mrf.mxu0
        %v2615 = vadd.f32 0.0, %v2614
        %2616 = vmatmul.bf16.gmra.mxu0 %v2595
        %v2617 = vpop.f32.mrf.mxu0
        %v2618 = vadd.f32 0.0, %v2617
        %v2619 = vpop.f32.mrf.mxu0
        %v2620 = vadd.f32 0.0, %v2619
        %2621 = vmatmul.bf16.gmra.mxu0 %v2598
        %v2622 = vpop.f32.mrf.mxu0
        %v2623 = vadd.f32 0.0, %v2622
        %v2624 = vpop.f32.mrf.mxu0
        %v2625 = vadd.f32 0.0, %v2624
        %2626 = vmatmul.bf16.gmra.mxu0 %v2601
        %v2627 = vpop.f32.mrf.mxu0
        %v2628 = vadd.f32 0.0, %v2627
        %v2629 = vpop.f32.mrf.mxu0
        %v2630 = vadd.f32 0.0, %v2629
        %2631 = vdwg.mxu0
        %v2632 = vadd.f32 %v2117, %v2613
        %v2633 = vadd.f32 %v2118, %v2615
        %v2634 = vadd.f32 %v2119, %v2618
        %v2635 = vadd.f32 %v2120, %v2620
        %v2636 = vadd.f32 %v2121, %v2623
        %v2637 = vadd.f32 %v2122, %v2625
        %v2638 = vadd.f32 %v2123, %v2628
        %v2639 = vadd.f32 %v2124, %v2630
        %2640 = vmax.xlane.f32.xlu0 %v2556
        %v2641 = vpop.xlane.xlu0 %2640
        %2642 = vmax.xlane.f32.xlu0 %v2557
        %v2643 = vpop.xlane.xlu0 %2642
        %2644 = vmax.xlane.f32.xlu0 %v2558
        %v2645 = vpop.xlane.xlu0 %2644
        %2646 = vmax.xlane.f32.xlu0 %v2559
        %v2647 = vpop.xlane.xlu0 %2646
        %s2648 = scalar_lea.vmem %s5, 224
        %v2649 = vld [vmem:[%s2648] sm:$0xf]
        %v2650 = vld [vmem:[%s2648 + $0x4] sm:$0xf]
        %v2651 = vld [vmem:[%s2648 + $0x8] sm:$0xf]
        %v2652 = vld [vmem:[%s2648 + $0xc] sm:$0xf]
        %v2653 = vld [vmem:[%s2648 + $0x10] sm:$0xf]
        %v2654 = vld [vmem:[%s2648 + $0x14] sm:$0xf]
        %v2655 = vld [vmem:[%s2648 + $0x18] sm:$0xf]
        %v2656 = vld [vmem:[%s2648 + $0x1c] sm:$0xf]
        %v2657 = vpack.c.bf16 %v2643, %v2641
        %v2658 = vpack.c.bf16 %v2647, %v2645
        %v2667 = vunpack.c.l.b16 %v2649
        %v2668 = vunpack.c.l.b16 %v2650
        %v2669 = vunpack.c.l.b16 %v2651
        %v2670 = vunpack.c.l.b16 %v2652
        %v2671 = vunpack.c.l.b16 %v2653
        %v2672 = vunpack.c.l.b16 %v2654
        %v2673 = vunpack.c.l.b16 %v2655
        %v2674 = vunpack.c.l.b16 %v2656
        %v2675 = vpack.c.b16 %v2668, %v2667
        %v2676 = vpack.c.b16 %v2670, %v2669
        %v2677 = vpack.c.b16 %v2672, %v2671
        %v2678 = vpack.c.b16 %v2674, %v2673
        %v2680 = vsel %vm528, %v2675, 0
        %v2683 = vsel %vm528, %v2676, 0
        %v2686 = vsel %vm528, %v2677, 0
        %v2689 = vsel %vm528, %v2678, 0
        %2691 = vmatpush.bf16.msra.mxu0 0
        %2692 = vmatpush.bf16.msra.mxu0 0
        %2693 = vmatpush.bf16.msra.mxu0 0
        %2694 = vmatpush.bf16.msra.mxu0 0
        %2695 = vmatpush.bf16.msra.mxu0 0
        %2696 = vmatpush.bf16.msra.mxu0 0
        %2697 = vmatpush.bf16.msra.mxu0 %v2658
        %2698 = vmatpush.bf16.msra.mxu0 %v2657
        %2699 = vmatmul.bf16.gmra.mxu0 %v2680
        %v2700 = vpop.f32.mrf.mxu0
        %v2701 = vadd.f32 0.0, %v2700
        %v2702 = vpop.f32.mrf.mxu0
        %v2703 = vadd.f32 0.0, %v2702
        %2704 = vmatmul.bf16.gmra.mxu0 %v2683
        %v2705 = vpop.f32.mrf.mxu0
        %v2706 = vadd.f32 0.0, %v2705
        %v2707 = vpop.f32.mrf.mxu0
        %v2708 = vadd.f32 0.0, %v2707
        %2709 = vmatmul.bf16.gmra.mxu0 %v2686
        %v2710 = vpop.f32.mrf.mxu0
        %v2711 = vadd.f32 0.0, %v2710
        %v2712 = vpop.f32.mrf.mxu0
        %v2713 = vadd.f32 0.0, %v2712
        %2714 = vmatmul.bf16.gmra.mxu0 %v2689
        %v2715 = vpop.f32.mrf.mxu0
        %v2716 = vadd.f32 0.0, %v2715
        %v2717 = vpop.f32.mrf.mxu0
        %v2718 = vadd.f32 0.0, %v2717
        %2719 = vdwg.mxu0
        %v2720 = vadd.f32 %v2205, %v2701
        %v2721 = vadd.f32 %v2206, %v2703
        %v2722 = vadd.f32 %v2207, %v2706
        %v2723 = vadd.f32 %v2208, %v2708
        %v2724 = vadd.f32 %v2209, %v2711
        %v2725 = vadd.f32 %v2210, %v2713
        %v2726 = vadd.f32 %v2211, %v2716
        %v2727 = vadd.f32 %v2212, %v2718
        %2729 = vset.pattern.permute.xlu0 0
        %2730 = vperm.xlu0 %2729, %v2720
        %v2731 = vpop.permute.xlu0 %2730
        %2734 = vset.pattern.permute.xlu0 0
        %2735 = vperm.xlu0 %2734, %v2721
        %v2736 = vpop.permute.xlu0 %2735
        %2739 = vset.pattern.permute.xlu0 0
        %2740 = vperm.xlu0 %2739, %v2722
        %v2741 = vpop.permute.xlu0 %2740
        %2744 = vset.pattern.permute.xlu0 0
        %2745 = vperm.xlu0 %2744, %v2723
        %v2746 = vpop.permute.xlu0 %2745
        %2749 = vset.pattern.permute.xlu0 0
        %2750 = vperm.xlu0 %2749, %v2724
        %v2751 = vpop.permute.xlu0 %2750
        %2754 = vset.pattern.permute.xlu0 0
        %2755 = vperm.xlu0 %2754, %v2725
        %v2756 = vpop.permute.xlu0 %2755
        %2759 = vset.pattern.permute.xlu0 0
        %2760 = vperm.xlu0 %2759, %v2726
        %v2761 = vpop.permute.xlu0 %2760
        %2764 = vset.pattern.permute.xlu0 0
        %2765 = vperm.xlu0 %2764, %v2727
        %v2766 = vpop.permute.xlu0 %2765
        %v2768 = vadd.f32 %v2632, %v2731
        %v2769 = vadd.f32 %v2633, %v2736
        %v2770 = vadd.f32 %v2634, %v2741
        %v2771 = vadd.f32 %v2635, %v2746
        %v2772 = vadd.f32 %v2636, %v2751
        %v2773 = vadd.f32 %v2637, %v2756
        %v2774 = vadd.f32 %v2638, %v2761
        %v2775 = vadd.f32 %v2639, %v2766
        %v2776 = vld [vmem:[%s10] sm:$0xff]
        %v2777 = vld [vmem:[%s10 + $0x8] sm:$0xff]
        %v2778 = vld [vmem:[%s10 + $0x10] sm:$0xff]
        %v2779 = vld [vmem:[%s10 + $0x18] sm:$0xff]
        %v2780 = vld [vmem:[%s10 + $0x20] sm:$0xff]
        %v2781 = vld [vmem:[%s10 + $0x28] sm:$0xff]
        %v2782 = vld [vmem:[%s10 + $0x30] sm:$0xff]
        %v2783 = vld [vmem:[%s10 + $0x38] sm:$0xff]
        %2785 = vset.pattern.permute.xlu0 0
        %2786 = vperm.xlu0 %2785, %v2776
        %v2787 = vpop.permute.xlu0 %2786
        %2790 = vset.pattern.permute.xlu0 0
        %2791 = vperm.xlu0 %2790, %v2777
        %v2792 = vpop.permute.xlu0 %2791
        %2795 = vset.pattern.permute.xlu0 0
        %2796 = vperm.xlu0 %2795, %v2778
        %v2797 = vpop.permute.xlu0 %2796
        %2800 = vset.pattern.permute.xlu0 0
        %2801 = vperm.xlu0 %2800, %v2779
        %v2802 = vpop.permute.xlu0 %2801
        %2805 = vset.pattern.permute.xlu0 0
        %2806 = vperm.xlu0 %2805, %v2780
        %v2807 = vpop.permute.xlu0 %2806
        %2810 = vset.pattern.permute.xlu0 0
        %2811 = vperm.xlu0 %2810, %v2781
        %v2812 = vpop.permute.xlu0 %2811
        %2815 = vset.pattern.permute.xlu0 0
        %2816 = vperm.xlu0 %2815, %v2782
        %v2817 = vpop.permute.xlu0 %2816
        %2820 = vset.pattern.permute.xlu0 0
        %2821 = vperm.xlu0 %2820, %v2783
        %v2822 = vpop.permute.xlu0 %2821
        %v2824 = vadd.f32 %v2768, %v2787
        %v2825 = vadd.f32 %v2769, %v2792
        %v2826 = vadd.f32 %v2770, %v2797
        %v2827 = vadd.f32 %v2771, %v2802
        %v2828 = vadd.f32 %v2772, %v2807
        %v2829 = vadd.f32 %v2773, %v2812
        %v2830 = vadd.f32 %v2774, %v2817
        %v2831 = vadd.f32 %v2775, %v2822
        %v2832 = vmax.f32 %v2824, 0.0
        %v2833 = vmax.f32 %v2825, 0.0
        %v2834 = vmax.f32 %v2826, 0.0
        %v2835 = vmax.f32 %v2827, 0.0
        %v2836 = vmax.f32 %v2828, 0.0
        %v2837 = vmax.f32 %v2829, 0.0
        %v2838 = vmax.f32 %v2830, 0.0
        %v2839 = vmax.f32 %v2831, 0.0
        %v2840 = vld [vmem:[%s6] sm:$0xf]
        %v2841 = vld [vmem:[%s6 + $0x4] sm:$0xf]
        %v2842 = vld [vmem:[%s6 + $0x8] sm:$0xf]
        %v2843 = vld [vmem:[%s6 + $0xc] sm:$0xf]
        %v2844 = vld [vmem:[%s6 + $0x10] sm:$0xf]
        %v2845 = vld [vmem:[%s6 + $0x14] sm:$0xf]
        %v2846 = vld [vmem:[%s6 + $0x18] sm:$0xf]
        %v2847 = vld [vmem:[%s6 + $0x1c] sm:$0xf]
        %v2848 = vpack.c.bf16 %v2833, %v2832
        %v2849 = vpack.c.bf16 %v2835, %v2834
        %v2850 = vpack.c.bf16 %v2837, %v2836
        %v2851 = vpack.c.bf16 %v2839, %v2838
        %s2852 = scalar_lea.vmem %s10, 64
        %v2853 = vld [vmem:[%s2852] sm:$0xff]
        %v2854 = vld [vmem:[%s2852 + $0x8] sm:$0xff]
        %v2855 = vld [vmem:[%s2852 + $0x10] sm:$0xff]
        %v2856 = vld [vmem:[%s2852 + $0x18] sm:$0xff]
        %v2857 = vld [vmem:[%s2852 + $0x20] sm:$0xff]
        %v2858 = vld [vmem:[%s2852 + $0x28] sm:$0xff]
        %v2859 = vld [vmem:[%s2852 + $0x30] sm:$0xff]
        %v2860 = vld [vmem:[%s2852 + $0x38] sm:$0xff]
        %2862 = vset.pattern.permute.xlu0 0
        %2863 = vperm.xlu0 %2862, %v2853
        %v2864 = vpop.permute.xlu0 %2863
        %2867 = vset.pattern.permute.xlu0 0
        %2868 = vperm.xlu0 %2867, %v2854
        %v2869 = vpop.permute.xlu0 %2868
        %2872 = vset.pattern.permute.xlu0 0
        %2873 = vperm.xlu0 %2872, %v2855
        %v2874 = vpop.permute.xlu0 %2873
        %2877 = vset.pattern.permute.xlu0 0
        %2878 = vperm.xlu0 %2877, %v2856
        %v2879 = vpop.permute.xlu0 %2878
        %2882 = vset.pattern.permute.xlu0 0
        %2883 = vperm.xlu0 %2882, %v2857
        %v2884 = vpop.permute.xlu0 %2883
        %2887 = vset.pattern.permute.xlu0 0
        %2888 = vperm.xlu0 %2887, %v2858
        %v2889 = vpop.permute.xlu0 %2888
        %2892 = vset.pattern.permute.xlu0 0
        %2893 = vperm.xlu0 %2892, %v2859
        %v2894 = vpop.permute.xlu0 %2893
        %2897 = vset.pattern.permute.xlu0 0
        %2898 = vperm.xlu0 %2897, %v2860
        %v2899 = vpop.permute.xlu0 %2898
        %v2909 = vunpack.c.l.b16 %v2840
        %v2910 = vunpack.c.l.b16 %v2841
        %v2911 = vunpack.c.l.b16 %v2842
        %v2912 = vunpack.c.l.b16 %v2843
        %v2913 = vunpack.c.l.b16 %v2844
        %v2914 = vunpack.c.l.b16 %v2845
        %v2915 = vunpack.c.l.b16 %v2846
        %v2916 = vunpack.c.l.b16 %v2847
        %v2917 = vpack.c.b16 %v2910, %v2909
        %v2918 = vpack.c.b16 %v2912, %v2911
        %v2919 = vpack.c.b16 %v2914, %v2913
        %v2920 = vpack.c.b16 %v2916, %v2915
        %vm2921 = vcmask 523264
        %v2923 = vsel %vm2921, %v2917, 0
        %v2926 = vsel %vm2921, %v2918, 0
        %v2929 = vsel %vm2921, %v2919, 0
        %v2932 = vsel %vm2921, %v2920, 0
        %2934 = vmatpush.bf16.msra.mxu0 0
        %2935 = vmatpush.bf16.msra.mxu0 0
        %2936 = vmatpush.bf16.msra.mxu0 0
        %2937 = vmatpush.bf16.msra.mxu0 0
        %2938 = vmatpush.bf16.msra.mxu0 %v2851
        %2939 = vmatpush.bf16.msra.mxu0 %v2850
        %2940 = vmatpush.bf16.msra.mxu0 %v2849
        %2941 = vmatpush.bf16.msra.mxu0 %v2848
        %2942 = vmatmul.bf16.gmra.mxu0 %v2923
        %v2943 = vpop.f32.mrf.mxu0
        %v2944 = vadd.f32 %v2864, %v2943
        %v2945 = vpop.f32.mrf.mxu0
        %v2946 = vadd.f32 %v2869, %v2945
        %2947 = vmatmul.bf16.gmra.mxu0 %v2926
        %v2948 = vpop.f32.mrf.mxu0
        %v2949 = vadd.f32 %v2874, %v2948
        %v2950 = vpop.f32.mrf.mxu0
        %v2951 = vadd.f32 %v2879, %v2950
        %2952 = vmatmul.bf16.gmra.mxu0 %v2929
        %v2953 = vpop.f32.mrf.mxu0
        %v2954 = vadd.f32 %v2884, %v2953
        %v2955 = vpop.f32.mrf.mxu0
        %v2956 = vadd.f32 %v2889, %v2955
        %2957 = vmatmul.bf16.gmra.mxu0 %v2932
        %v2958 = vpop.f32.mrf.mxu0
        %v2959 = vadd.f32 %v2894, %v2958
        %v2960 = vpop.f32.mrf.mxu0
        %v2961 = vadd.f32 %v2899, %v2960
        %2962 = vdwg.mxu0
        %v2963 = vmax.f32 %v2944, 0.0
        %v2964 = vmax.f32 %v2946, 0.0
        %v2965 = vmax.f32 %v2949, 0.0
        %v2966 = vmax.f32 %v2951, 0.0
        %v2967 = vmax.f32 %v2954, 0.0
        %v2968 = vmax.f32 %v2956, 0.0
        %v2969 = vmax.f32 %v2959, 0.0
        %v2970 = vmax.f32 %v2961, 0.0
        %v2971 = vld [vmem:[%s7] sm:$0xf]
        %v2972 = vpack.c.bf16 %v2964, %v2963
        %v2973 = vpack.c.bf16 %v2966, %v2965
        %v2974 = vpack.c.bf16 %v2968, %v2967
        %v2975 = vpack.c.bf16 %v2970, %v2969
        %v2976 = vld [vmem:[%s11] sm:$0xff]
        %2978 = vset.pattern.permute.xlu0 0
        %2979 = vperm.xlu0 %2978, %v2976
        %v2980 = vpop.permute.xlu0 %2979
        %v2983 = vsel %vm2921, %v2971, 0
        %2985 = vmatpush.bf16.msra.mxu0 0
        %2986 = vmatpush.bf16.msra.mxu0 0
        %2987 = vmatpush.bf16.msra.mxu0 0
        %2988 = vmatpush.bf16.msra.mxu0 0
        %2989 = vmatpush.bf16.msra.mxu0 %v2975
        %2990 = vmatpush.bf16.msra.mxu0 %v2974
        %2991 = vmatpush.bf16.msra.mxu0 %v2973
        %2992 = vmatpush.bf16.msra.mxu0 %v2972
        %2993 = vmatmul.bf16.gmra.mxu0 %v2983
        %v2994 = vpop.f32.mrf.mxu0
        %v2995 = vadd.f32 %v2980, %v2994
        %v2996 = vpop.f32.mrf.mxu0
        %2997 = vdwg.mxu0
        %2998 = vst [vmem:[%s404] sm:$0xff] %v2995
        %s2999 = sand.u32 %s291, 1
        %s3000 = scalar_lea.sflag [#allocation3], %s2999
        %s3001 = sand.u32 %s291, 1
        %s3002 = smul.addr %s3001, 8
        %s3003 = scalar_lea.vmem [#allocation2], %s3002
        // Predicated region
        $region69: #{tpu_custom_call.1} parent=67 // pred_check
          %p3004 = pneg %p301
        $region70: #{tpu_custom_call.1} parent=67 // pred_check_branch
          %3006 = sbr.rel (%p3004) target = $region72
        $region71: #{tpu_custom_call.1} parent=67 // pred_region
          %3008 = vsyncadd %s3000, 0
          %s3009 = smul.addr %s26, 8
          %s3010 = scalar_lea.hbm %s12, %s3009
          %s3012 = sshll.u32 %s3003, 4
          %s3013 = int_to_ptr.vmem [resolvable:$true] %s3012
          %s3014 = sshll.u32 %s3010, 4
          %s3015 = int_to_ptr.hbm [resolvable:$true] %s3014
          %3017 = dma.vmem_to_hbm [thread:$0]  %s3013, 128, %s3015, %s3000
        $region72: #{tpu_custom_call.1} parent=67 // pred_fallthru
          _
      $region68: #{tpu_custom_call.1} parent=5 // pred_fallthru
        _
      %p3018 = scmp.le.s32.totalorder 2, %s21
      // Predicated region
      $region73: #{tpu_custom_call.1} parent=5 // pred_check
        %p3019 = pneg %p3018
      $region74: #{tpu_custom_call.1} parent=5 // pred_check_branch
        %3021 = sbr.rel (%p3019) target = $region76
      $region75: #{tpu_custom_call.1} parent=5 // pred_region
        %s3022 = ssub.s32 %s21, 2
        // Predicated region
        $region77: #{tpu_custom_call.1} parent=75 // pred_check
          %p3023 = pneg %p307
        $region78: #{tpu_custom_call.1} parent=75 // pred_check_branch
          %3025 = sbr.rel (%p3023) target = $region80
        $region79: #{tpu_custom_call.1} parent=75 // pred_region
          %s3026 = sand.u32 %s292, 1
          %s3027 = scalar_lea.sflag [#allocation3], %s3026
          %s3028 = sand.u32 %s292, 1
          %s3029 = smul.addr %s3028, 8
          %s3030 = scalar_lea.vmem [#allocation2], %s3029
          %3032 = dma.done %s3027, 128
        $region80: #{tpu_custom_call.1} parent=75 // pred_fallthru
          _
      $region76: #{tpu_custom_call.1} parent=5 // pred_fallthru
        _
    $region6: #{tpu_custom_call.1} parent=1 // loop_footer
      %s25 = sadd.s32 1, %s21
    $region7: #{tpu_custom_call.1} parent=1 // loop_footer_branch
      %20 = sbr.rel target = $region3
    $region8: #{tpu_custom_call.1} parent=1 // loop_exit
      _
    %3033 = vsyncpa [#allocation3], 1
    %s3034 = scalar_lea.sflag [#allocation3], 1
    %3035 = vsyncpa %s3034, 1

</llo_original>
